<compile_context>
chip_gen: v7x
topology: tpu7x:2x2x1
jax: 0.10.0
libtpu: 0.0.40
codegen_flags: <defaults>
</compile_context>

<pallas_src>
import jax
import jax.numpy as jnp
from jax import lax
from jax.experimental import pallas as pl
from jax.experimental.pallas import tpu as pltpu


def _bilstm_kernel(x_ref,
                   wih0_ref, whh0_ref, b0_ref,
                   wih1_ref, whh1_ref, b1_ref,
                   wlin_ref, blin_ref,
                   out_ref,
                   xproj_ref, h0f_ref, h0b_ref, h1f_ref, h1b_ref):
    S, Bt, E = x_ref.shape
    G8 = xproj_ref.shape[-1]          # 8H
    H = G8 // 8
    G = 4 * H
    H2, H3 = 2 * H, 3 * H
    Lp = out_ref.shape[-1]
    # Short fixed trip counts: fully unroll; long: modest unroll for LLO overlap.
    unroll = True if S <= 16 else 2

    def input_proj(lhs_bf16, wih, b_ref):
        # lhs_bf16: (S*Bt, K) bf16 ; wih: (K, 8H) bf16  -> xproj (S, Bt, 8H) f32
        xp = jnp.dot(lhs_bf16, wih, preferred_element_type=jnp.float32)
        xproj_ref[...] = (xp + b_ref[...]).reshape(S, Bt, G8)

    def run_layer(whh_ref, hf_ref, hb_ref):
        # Fused fwd+bwd recurrence.  Gate-column layout of xproj / whh:
        #   [ i_f f_f o_f g_f | i_b f_b o_b g_b ]   (each block H wide)
        whh = whh_ref[...]                                   # (2H, 8H) bf16 block-diag
        h0 = jnp.zeros((Bt, H2), jnp.float32)                # [h_f | h_b]
        c0f = jnp.zeros((Bt, H), jnp.float32)
        c0b = jnp.zeros((Bt, H), jnp.float32)

        def step(s, carry):
            h, c_f, c_b = carry
            t_b = S - 1 - s
            # One 256-wide MXU call covers both directions' recurrent terms.
            rec = jnp.dot(h.astype(jnp.bfloat16), whh,
                          preferred_element_type=jnp.float32)            # (Bt, 8H)
            g_f = xproj_ref[s, :, 0:G] + rec[:, 0:G]                     # fwd @ t = s
            g_b = xproj_ref[t_b, :, G:G8] + rec[:, G:G8]                 # bwd @ t = S-1-s
            sg_f = jax.nn.sigmoid(g_f[:, :H3])     # [i_f f_f o_f]
            sg_b = jax.nn.sigmoid(g_b[:, :H3])     # [i_b f_b o_b]
            c_f = sg_f[:, H:H2] * c_f + sg_f[:, :H] * jnp.tanh(g_f[:, H3:])
            c_b = sg_b[:, H:H2] * c_b + sg_b[:, :H] * jnp.tanh(g_b[:, H3:])
            h_f = sg_f[:, H2:H3] * jnp.tanh(c_f)
            h_b = sg_b[:, H2:H3] * jnp.tanh(c_b)
            hf_ref[s] = h_f
            hb_ref[t_b] = h_b
            return jnp.concatenate([h_f, h_b], axis=-1), c_f, c_b

        lax.fori_loop(0, S, step, (h0, c0f, c0b), unroll=unroll)

    # ---------------- layer 0 ----------------
    input_proj(x_ref[...].reshape(S * Bt, E), wih0_ref[...], b0_ref)
    run_layer(whh0_ref, h0f_ref, h0b_ref)

    # TODO(synk): nn.LSTM inter-layer dropout (p=0.5) is a training-only op;
    # eval/inference semantics (identity) are implemented here.

    # ---------------- layer 1 ----------------
    wih1 = wih1_ref[...]                                     # (2H, 8H): rows 0:H fwd, H:2H bwd
    xp1 = (jnp.dot(h0f_ref[...].reshape(S * Bt, H).astype(jnp.bfloat16), wih1[:H],
                   preferred_element_type=jnp.float32)
           + jnp.dot(h0b_ref[...].reshape(S * Bt, H).astype(jnp.bfloat16), wih1[H:],
                     preferred_element_type=jnp.float32))
    xproj_ref[...] = (xp1 + b1_ref[...]).reshape(S, Bt, G8)
    run_layer(whh1_ref, h1f_ref, h1b_ref)

    # ---------- final linear, lane-dense (Lp = 128-padded) output ----------
    wl = wlin_ref[...]                                       # (2H, Lp): rows 0:H fwd, H:2H bwd
    y = (jnp.dot(h1f_ref[...].reshape(S * Bt, H).astype(jnp.bfloat16), wl[:H],
                 preferred_element_type=jnp.float32)
         + jnp.dot(h1b_ref[...].reshape(S * Bt, H).astype(jnp.bfloat16), wl[H:],
                   preferred_element_type=jnp.float32)
         + blin_ref[...])
    out_ref[...] = y.reshape(S, Bt, Lp).astype(out_ref.dtype)


def bilstm_with_subwords_forward(x_ids, params, *, batch_tile=None):
    """x_ids: (B, 3, S) int32.  Returns logits (B, L, S) like the PyTorch module."""
    B, _, S = x_ids.shape
    word_tab = params["word_embedding"]
    pre_tab = params["prefix_embedding"]
    suf_tab = params["suffix_embedding"]
    E = word_tab.shape[1]
    H = params["whh_l0_f"].shape[1]          # torch layout (4H, H)
    G8 = 8 * H
    wlin = params["linear_w"]                # (L, 2H)
    blin = params["linear_b"]                # (L,)
    L = wlin.shape[0]
    Lp = max(128, ((L + 127) // 128) * 128)  # lane-dense padded label width

    # Embedding lookups + sum (gather glue kept in XLA; padding rows are zero).
    emb = (jnp.take(word_tab, x_ids[:, 0, :], axis=0)
           + jnp.take(pre_tab, x_ids[:, 1, :], axis=0)
           + jnp.take(suf_tab, x_ids[:, 2, :], axis=0))                  # (B, S, E)
    emb_tm = jnp.transpose(emb, (1, 0, 2)).astype(jnp.bfloat16)          # (S, B, E)

    # ---- weight prep: transpose, reorder gates (i,f,g,o)->(i,f,o,g), fuse dirs ----
    def reorder(w):                           # (..., 4H) torch order -> (i,f,o,g)
        return jnp.concatenate([w[..., :2 * H], w[..., 3 * H:], w[..., 2 * H:3 * H]],
                               axis=-1)

    def dir_params(layer, d):
        wih = reorder(jnp.transpose(params[f"wih_l{layer}_{d}"]).astype(jnp.float32))
        whh = reorder(jnp.transpose(params[f"whh_l{layer}_{d}"]).astype(jnp.float32))
        b = reorder((params[f"bih_l{layer}_{d}"] + params[f"bhh_l{layer}_{d}"])
                    .reshape(1, 4 * H).astype(jnp.float32))
        return wih, whh, b

    def layer_weights(layer):
        wih_f, whh_f, b_f = dir_params(layer, "f")
        wih_b, whh_b, b_b = dir_params(layer, "b")
        wih_cat = jnp.concatenate([wih_f, wih_b], axis=-1).astype(jnp.bfloat16)
        whh_cat = jnp.concatenate(                                   # (2H, 8H) block-diag
            [jnp.concatenate([whh_f, jnp.zeros_like(whh_f)], axis=-1),
             jnp.concatenate([jnp.zeros_like(whh_b), whh_b], axis=-1)],
            axis=0).astype(jnp.bfloat16)
        b_cat = jnp.concatenate([b_f, b_b], axis=-1)                 # (1, 8H) f32
        return wih_cat, whh_cat, b_cat

    wih0, whh0, b0 = layer_weights(0)        # wih0: (E, 8H)
    wih1, whh1, b1 = layer_weights(1)        # wih1: (2H, 8H)

    wlin_pad = jnp.zeros((2 * H, Lp), jnp.float32).at[:, :L].set(
        jnp.transpose(wlin).astype(jnp.float32)).astype(jnp.bfloat16)
    blin_pad = jnp.zeros((1, Lp), jnp.float32).at[:, :L].set(
        blin.reshape(1, L).astype(jnp.float32))

    # ---- batch tile from an explicit VMEM budget (v7x has only 64 MiB/TC) ----
    try:
        vmem_cap = int(pltpu.get_tpu_info().vmem_capacity_bytes)
    except Exception:
        vmem_cap = 64 * 1024 * 1024          # conservative fallback
    vmem_limit = int(min(max(vmem_cap - 16 * 1024 * 1024, 32 * 1024 * 1024),
                         112 * 1024 * 1024))
    # per-batch-row VMEM: x block (bf16, 2 bufs) + out block (f32, 2 bufs)
    #                     + xproj (f32, 8H) + 4 per-direction hidden scratches (f32, H).
    per_row = S * (2 * 2 * E + 2 * 4 * Lp + 4 * 8 * H + 4 * 4 * H)
    weight_bytes = 2 * (2 * (E * G8 + 3 * 2 * H * G8 + 2 * H * Lp)
                        + 4 * (2 * G8 + Lp))
    budget = int(vmem_limit * 0.75) - weight_bytes

    if batch_tile is None:
        bt = max(budget // max(per_row, 1), 8)
        bt = (bt // 8) * 8                   # sublane-aligned tile
        if bt >= B:
            bt = B
            if B >= 64 and (B // 2) % 8 == 0:
                bt = B // 2                  # >=2 programs: v7x's 2 TCs can share the grid
        bt = min(bt, 1024)
    else:
        bt = max(1, min(batch_tile, B))
    Bt = int(bt)
    grid = (pl.cdiv(B, Bt),)

    def full(shape):
        n = len(shape)
        return pl.BlockSpec(shape, lambda i, _n=n: (0,) * _n)

    out_tm = pl.pallas_call(
        _bilstm_kernel,
        out_shape=jax.ShapeDtypeStruct((S, B, Lp), jnp.float32),
        grid=grid,
        in_specs=[
            pl.BlockSpec((S, Bt, E), lambda i: (0, i, 0)),
            full((E, G8)), full((2 * H, G8)), full((1, G8)),      # layer 0 fused weights
            full((2 * H, G8)), full((2 * H, G8)), full((1, G8)),  # layer 1 fused weights
            full((2 * H, Lp)), full((1, Lp)),                     # final linear
        ],
        out_specs=pl.BlockSpec((S, Bt, Lp), lambda i: (0, i, 0)),
        scratch_shapes=[
            pltpu.VMEM((S, Bt, G8), jnp.float32),   # shared input-projection scratch (8H)
            pltpu.VMEM((S, Bt, H), jnp.float32),    # layer-0 fwd hidden per step
            pltpu.VMEM((S, Bt, H), jnp.float32),    # layer-0 bwd hidden per step
            pltpu.VMEM((S, Bt, H), jnp.float32),    # layer-1 fwd hidden per step
            pltpu.VMEM((S, Bt, H), jnp.float32),    # layer-1 bwd hidden per step
        ],
        compiler_params=pltpu.CompilerParams(
            dimension_semantics=("parallel",),
            vmem_limit_bytes=vmem_limit),
    )(emb_tm, wih0, whh0, b0, wih1, whh1, b1, wlin_pad, blin_pad)

    # (S, B, Lp) -> drop label padding -> (B, L, S) == y_hat.permute(0, 2, 1)
    return jnp.transpose(out_tm[:, :, :L], (1, 2, 0))


# --------------------------- pure-JAX f32 reference ---------------------------

def _reference_forward(x_ids, params):
    words = x_ids[:, 0, :]
    prefixes = x_ids[:, 1, :]
    suffixes = x_ids[:, 2, :]
    emb = (params["word_embedding"][words]
           + params["prefix_embedding"][prefixes]
           + params["suffix_embedding"][suffixes])                   # (B, S, E)

    def run_dir(x, wih, whh, bih, bhh, reverse):
        Bx = x.shape[0]
        Hh = whh.shape[1]

        def step(carry, x_t):
            h, c = carry
            g = x_t @ wih.T + h @ whh.T + bih + bhh
            i = jax.nn.sigmoid(g[:, :Hh])
            f = jax.nn.sigmoid(g[:, Hh:2 * Hh])
            gg = jnp.tanh(g[:, 2 * Hh:3 * Hh])
            o = jax.nn.sigmoid(g[:, 3 * Hh:])
            c = f * c + i * gg
            h = o * jnp.tanh(c)
            return (h, c), h

        xs = jnp.transpose(x, (1, 0, 2))
        if reverse:
            xs = xs[::-1]
        (_, _), hs = lax.scan(step, (jnp.zeros((Bx, Hh)), jnp.zeros((Bx, Hh))), xs)
        if reverse:
            hs = hs[::-1]
        return jnp.transpose(hs, (1, 0, 2))

    def bilayer(x, layer):
        f = run_dir(x, params[f"wih_l{layer}_f"], params[f"whh_l{layer}_f"],
                    params[f"bih_l{layer}_f"], params[f"bhh_l{layer}_f"], False)
        b = run_dir(x, params[f"wih_l{layer}_b"], params[f"whh_l{layer}_b"],
                    params[f"bih_l{layer}_b"], params[f"bhh_l{layer}_b"], True)
        return jnp.concatenate([f, b], axis=-1)

    h1 = bilayer(bilayer(emb, 0), 1)                                  # (B, S, 2H)
    y = h1 @ params["linear_w"].T + params["linear_b"]                # (B, S, L)
    return jnp.transpose(y, (0, 2, 1))                                # (B, L, S)


if __name__ == "__main__":
    # Small config consistent with the module:
    tokens_dim, prefix_dim, suffix_dim = 100, 60, 60
    padding_idx = 0
    embedding_dim = 32      # E
    hidden_dim = 32         # H
    labels_dim = 8          # L
    batch, seq = 2, 8       # B, S

    key = jax.random.PRNGKey(0)
    keys = iter(jax.random.split(key, 32))

    def rand(shape, scale=0.1):
        return jax.random.normal(next(keys), shape, jnp.float32) * scale

    params = {
        # Embedding tables; padding_idx rows zeroed (nn.Embedding padding_idx semantics).
        "word_embedding": rand((tokens_dim, embedding_dim), 0.5).at[padding_idx].set(0.0),
        "prefix_embedding": rand((prefix_dim, embedding_dim), 0.5).at[padding_idx].set(0.0),
        "suffix_embedding": rand((suffix_dim, embedding_dim), 0.5).at[padding_idx].set(0.0),
        "linear_w": rand((labels_dim, 2 * hidden_dim)),
        "linear_b": rand((labels_dim,)),
    }
    for layer, in_dim in ((0, embedding_dim), (1, 2 * hidden_dim)):
        for d in ("f", "b"):
            params[f"wih_l{layer}_{d}"] = rand((4 * hidden_dim, in_dim))
            params[f"whh_l{layer}_{d}"] = rand((4 * hidden_dim, hidden_dim))
            params[f"bih_l{layer}_{d}"] = rand((4 * hidden_dim,))
            params[f"bhh_l{layer}_{d}"] = rand((4 * hidden_dim,))

    words = jax.random.randint(next(keys), (batch, seq), 0, tokens_dim, dtype=jnp.int32)
    prefixes = jax.random.randint(next(keys), (batch, seq), 0, prefix_dim, dtype=jnp.int32)
    suffixes = jax.random.randint(next(keys), (batch, seq), 0, suffix_dim, dtype=jnp.int32)
    x_ids = jnp.stack([words, prefixes, suffixes], axis=1)            # (B, 3, S)

    y = bilstm_with_subwords_forward(x_ids, params)
    y = jax.block_until_ready(y)

    y_ref = _reference_forward(x_ids, params)
    assert y.shape == (batch, labels_dim, seq)
    # bf16 MXU operands vs f32 reference -> slightly looser tolerance.
    max_err = float(jnp.max(jnp.abs(y - y_ref)))
    assert jnp.allclose(y, y_ref, atol=2.5e-2, rtol=2.5e-2), max_err

    print("KERNEL_OK")
</pallas_src>

<mosaic_0001>
module attributes {stable_mosaic.version = 11 : i64} {
  func.func @_bilstm_kernel(%arg0: i32, %arg1: memref<8x2x32xbf16, #tpu.memory_space<vmem>>, %arg2: memref<32x256xbf16, #tpu.memory_space<vmem>>, %arg3: memref<64x256xbf16, #tpu.memory_space<vmem>>, %arg4: memref<1x256xf32, #tpu.memory_space<vmem>>, %arg5: memref<64x256xbf16, #tpu.memory_space<vmem>>, %arg6: memref<64x256xbf16, #tpu.memory_space<vmem>>, %arg7: memref<1x256xf32, #tpu.memory_space<vmem>>, %arg8: memref<64x128xbf16, #tpu.memory_space<vmem>>, %arg9: memref<1x128xf32, #tpu.memory_space<vmem>>, %arg10: memref<8x2x128xf32, #tpu.memory_space<vmem>>, %arg11: memref<8x2x256xf32, #tpu.memory_space<vmem>>, %arg12: memref<8x2x32xf32, #tpu.memory_space<vmem>>, %arg13: memref<8x2x32xf32, #tpu.memory_space<vmem>>, %arg14: memref<8x2x32xf32, #tpu.memory_space<vmem>>, %arg15: memref<8x2x32xf32, #tpu.memory_space<vmem>>) attributes {dimension_semantics = [#tpu.dimension_semantics<parallel>], iteration_bounds = array<i64: 1>, scalar_prefetch = 0 : i64, scratch_operands = 5 : i64, tpu.core_type = #tpu.core_type<tc>, window_params = [{transform_indices = @transform_0, window_bounds = array<i64: 8, 2, 32>}, {pipeline_mode = #tpu.pipeline_mode<synchronous>, transform_indices = @transform_1, window_bounds = array<i64: 32, 256>}, {pipeline_mode = #tpu.pipeline_mode<synchronous>, transform_indices = @transform_2, window_bounds = array<i64: 64, 256>}, {pipeline_mode = #tpu.pipeline_mode<synchronous>, transform_indices = @transform_3, window_bounds = array<i64: 1, 256>}, {pipeline_mode = #tpu.pipeline_mode<synchronous>, transform_indices = @transform_4, window_bounds = array<i64: 64, 256>}, {pipeline_mode = #tpu.pipeline_mode<synchronous>, transform_indices = @transform_5, window_bounds = array<i64: 64, 256>}, {pipeline_mode = #tpu.pipeline_mode<synchronous>, transform_indices = @transform_6, window_bounds = array<i64: 1, 256>}, {pipeline_mode = #tpu.pipeline_mode<synchronous>, transform_indices = @transform_7, window_bounds = array<i64: 64, 128>}, {pipeline_mode = #tpu.pipeline_mode<synchronous>, transform_indices = @transform_8, window_bounds = array<i64: 1, 128>}, {transform_indices = @transform_9, window_bounds = array<i64: 8, 2, 128>}]} {
    %c0 = arith.constant 0 : index
    %c0_0 = arith.constant 0 : index
    %c0_1 = arith.constant 0 : index
    %0 = vector.load %arg1[%c0, %c0_0, %c0_1] : memref<8x2x32xbf16, #tpu.memory_space<vmem>>, vector<8x2x32xbf16>
    %1 = vector.shape_cast %0 : vector<8x2x32xbf16> to vector<16x32xbf16>
    %c0_2 = arith.constant 0 : index
    %c0_3 = arith.constant 0 : index
    %2 = vector.load %arg2[%c0_2, %c0_3] : memref<32x256xbf16, #tpu.memory_space<vmem>>, vector<32x256xbf16>
    %cst = arith.constant dense<0.000000e+00> : vector<16x256xf32>
    %3 = tpu.matmul %1, %2, %cst {dimension_numbers = #tpu.dot_dimension_numbers<[1], [0], [0], [1], [0, 0, 1, 1], [], []>} : vector<16x32xbf16>, vector<32x256xbf16>, vector<16x256xf32> -> vector<16x256xf32>
    %c0_4 = arith.constant 0 : index
    %c0_5 = arith.constant 0 : index
    %4 = vector.load %arg4[%c0_4, %c0_5] : memref<1x256xf32, #tpu.memory_space<vmem>>, vector<1x256xf32>
    %5 = vector.broadcast %4 : vector<1x256xf32> to vector<16x256xf32>
    %6 = arith.addf %3, %5 : vector<16x256xf32>
    %7 = vector.shape_cast %6 : vector<16x256xf32> to vector<8x2x256xf32>
    %c0_6 = arith.constant 0 : index
    %c0_7 = arith.constant 0 : index
    %c0_8 = arith.constant 0 : index
    %8 = vector.load %arg11[%c0_6, %c0_7, %c0_8] : memref<8x2x256xf32, #tpu.memory_space<vmem>>, vector<8x2x256xf32>
    tpu.vector_store %arg11[%c0_6, %c0_7, %c0_8], %7 {strides = array<i32>} : memref<8x2x256xf32, #tpu.memory_space<vmem>>, vector<8x2x256xf32>,
    %c0_9 = arith.constant 0 : index
    %c0_10 = arith.constant 0 : index
    %9 = vector.load %arg3[%c0_9, %c0_10] : memref<64x256xbf16, #tpu.memory_space<vmem>>, vector<64x256xbf16>
    %cst_11 = arith.constant 0.000000e+00 : f32
    %10 = vector.broadcast %cst_11 : f32 to vector<2x64xf32>
    %cst_12 = arith.constant 0.000000e+00 : f32
    %11 = vector.broadcast %cst_12 : f32 to vector<2x32xf32>
    %cst_13 = arith.constant 0.000000e+00 : f32
    %12 = vector.broadcast %cst_13 : f32 to vector<2x32xf32>
    %c0_i32 = arith.constant 0 : i32
    %c7_i32 = arith.constant 7 : i32
    %13 = arith.subi %c7_i32, %c0_i32 : i32
    %14 = arith.truncf %10 : vector<2x64xf32> to vector<2x64xbf16>
    %cst_14 = arith.constant dense<0.000000e+00> : vector<2x256xf32>
    %15 = tpu.matmul %14, %9, %cst_14 {dimension_numbers = #tpu.dot_dimension_numbers<[1], [0], [0], [1], [0, 0, 1, 1], [], []>} : vector<2x64xbf16>, vector<64x256xbf16>, vector<2x256xf32> -> vector<2x256xf32>
    %16 = arith.index_cast %c0_i32 : i32 to index
    %c0_15 = arith.constant 0 : index
    %c0_16 = arith.constant 0 : index
    %17 = vector.load %arg11[%16, %c0_15, %c0_16] : memref<8x2x256xf32, #tpu.memory_space<vmem>>, vector<1x2x128xf32>
    %18 = vector.shape_cast %17 : vector<1x2x128xf32> to vector<2x128xf32>
    %19 = vector.extract_strided_slice %15 {offsets = [0, 0], sizes = [2, 128], strides = [1, 1]} : vector<2x256xf32> to vector<2x128xf32>
    %20 = arith.addf %18, %19 : vector<2x128xf32>
    %21 = arith.index_cast %13 : i32 to index
    %c0_17 = arith.constant 0 : index
    %c128 = arith.constant 128 : index
    %22 = vector.load %arg11[%21, %c0_17, %c128] : memref<8x2x256xf32, #tpu.memory_space<vmem>>, vector<1x2x128xf32>
    %23 = vector.shape_cast %22 : vector<1x2x128xf32> to vector<2x128xf32>
    %24 = vector.extract_strided_slice %15 {offsets = [0, 128], sizes = [2, 128], strides = [1, 1]} : vector<2x256xf32> to vector<2x128xf32>
    %25 = arith.addf %23, %24 : vector<2x128xf32>
    %26 = vector.extract_strided_slice %20 {offsets = [0, 0], sizes = [2, 96], strides = [1, 1]} : vector<2x128xf32> to vector<2x96xf32>
    %27 = arith.negf %26 : vector<2x96xf32>
    %28 = math.exp %27 : vector<2x96xf32>
    %cst_18 = arith.constant 1.000000e+00 : f32
    %29 = vector.broadcast %cst_18 : f32 to vector<2x96xf32>
    %30 = arith.addf %29, %28 : vector<2x96xf32>
    %31 = arith.divf %29, %30 : vector<2x96xf32>
    %32 = vector.extract_strided_slice %25 {offsets = [0, 0], sizes = [2, 96], strides = [1, 1]} : vector<2x128xf32> to vector<2x96xf32>
    %33 = arith.negf %32 : vector<2x96xf32>
    %34 = math.exp %33 : vector<2x96xf32>
    %cst_19 = arith.constant 1.000000e+00 : f32
    %35 = vector.broadcast %cst_19 : f32 to vector<2x96xf32>
    %36 = arith.addf %35, %34 : vector<2x96xf32>
    %37 = arith.divf %35, %36 : vector<2x96xf32>
    %38 = vector.extract_strided_slice %31 {offsets = [0, 32], sizes = [2, 32], strides = [1, 1]} : vector<2x96xf32> to vector<2x32xf32>
    %39 = arith.mulf %38, %11 : vector<2x32xf32>
    %40 = vector.extract_strided_slice %31 {offsets = [0, 0], sizes = [2, 32], strides = [1, 1]} : vector<2x96xf32> to vector<2x32xf32>
    %41 = vector.extract_strided_slice %20 {offsets = [0, 96], sizes = [2, 32], strides = [1, 1]} : vector<2x128xf32> to vector<2x32xf32>
    %42 = math.tanh %41 : vector<2x32xf32>
    %43 = arith.mulf %40, %42 : vector<2x32xf32>
    %44 = arith.addf %39, %43 : vector<2x32xf32>
    %45 = vector.extract_strided_slice %37 {offsets = [0, 32], sizes = [2, 32], strides = [1, 1]} : vector<2x96xf32> to vector<2x32xf32>
    %46 = arith.mulf %45, %12 : vector<2x32xf32>
    %47 = vector.extract_strided_slice %37 {offsets = [0, 0], sizes = [2, 32], strides = [1, 1]} : vector<2x96xf32> to vector<2x32xf32>
    %48 = vector.extract_strided_slice %25 {offsets = [0, 96], sizes = [2, 32], strides = [1, 1]} : vector<2x128xf32> to vector<2x32xf32>
    %49 = math.tanh %48 : vector<2x32xf32>
    %50 = arith.mulf %47, %49 : vector<2x32xf32>
    %51 = arith.addf %46, %50 : vector<2x32xf32>
    %52 = vector.extract_strided_slice %31 {offsets = [0, 64], sizes = [2, 32], strides = [1, 1]} : vector<2x96xf32> to vector<2x32xf32>
    %53 = math.tanh %44 : vector<2x32xf32>
    %54 = arith.mulf %52, %53 : vector<2x32xf32>
    %55 = vector.extract_strided_slice %37 {offsets = [0, 64], sizes = [2, 32], strides = [1, 1]} : vector<2x96xf32> to vector<2x32xf32>
    %56 = math.tanh %51 : vector<2x32xf32>
    %57 = arith.mulf %55, %56 : vector<2x32xf32>
    %58 = arith.index_cast %c0_i32 : i32 to index
    %c0_20 = arith.constant 0 : index
    %c0_21 = arith.constant 0 : index
    %59 = vector.load %arg12[%58, %c0_20, %c0_21] : memref<8x2x32xf32, #tpu.memory_space<vmem>>, vector<1x2x32xf32>
    %60 = vector.shape_cast %59 : vector<1x2x32xf32> to vector<2x32xf32>
    %61 = vector.shape_cast %54 : vector<2x32xf32> to vector<1x2x32xf32>
    tpu.vector_store %arg12[%58, %c0_20, %c0_21], %61 {strides = array<i32>} : memref<8x2x32xf32, #tpu.memory_space<vmem>>, vector<1x2x32xf32>,
    %62 = arith.index_cast %13 : i32 to index
    %c0_22 = arith.constant 0 : index
    %c0_23 = arith.constant 0 : index
    %63 = vector.load %arg13[%62, %c0_22, %c0_23] : memref<8x2x32xf32, #tpu.memory_space<vmem>>, vector<1x2x32xf32>
    %64 = vector.shape_cast %63 : vector<1x2x32xf32> to vector<2x32xf32>
    %65 = vector.shape_cast %57 : vector<2x32xf32> to vector<1x2x32xf32>
    tpu.vector_store %arg13[%62, %c0_22, %c0_23], %65 {strides = array<i32>} : memref<8x2x32xf32, #tpu.memory_space<vmem>>, vector<1x2x32xf32>,
    %66 = tpu.concatenate %54, %57 in 1 : vector<2x32xf32>, vector<2x32xf32> -> vector<2x64xf32>
    %c1_i32 = arith.constant 1 : i32
    %c7_i32_24 = arith.constant 7 : i32
    %67 = arith.subi %c7_i32_24, %c1_i32 : i32
    %68 = arith.truncf %66 : vector<2x64xf32> to vector<2x64xbf16>
    %cst_25 = arith.constant dense<0.000000e+00> : vector<2x256xf32>
    %69 = tpu.matmul %68, %9, %cst_25 {dimension_numbers = #tpu.dot_dimension_numbers<[1], [0], [0], [1], [0, 0, 1, 1], [], []>} : vector<2x64xbf16>, vector<64x256xbf16>, vector<2x256xf32> -> vector<2x256xf32>
    %70 = arith.index_cast %c1_i32 : i32 to index
    %c0_26 = arith.constant 0 : index
    %c0_27 = arith.constant 0 : index
    %71 = vector.load %arg11[%70, %c0_26, %c0_27] : memref<8x2x256xf32, #tpu.memory_space<vmem>>, vector<1x2x128xf32>
    %72 = vector.shape_cast %71 : vector<1x2x128xf32> to vector<2x128xf32>
    %73 = vector.extract_strided_slice %69 {offsets = [0, 0], sizes = [2, 128], strides = [1, 1]} : vector<2x256xf32> to vector<2x128xf32>
    %74 = arith.addf %72, %73 : vector<2x128xf32>
    %75 = arith.index_cast %67 : i32 to index
    %c0_28 = arith.constant 0 : index
    %c128_29 = arith.constant 128 : index
    %76 = vector.load %arg11[%75, %c0_28, %c128_29] : memref<8x2x256xf32, #tpu.memory_space<vmem>>, vector<1x2x128xf32>
    %77 = vector.shape_cast %76 : vector<1x2x128xf32> to vector<2x128xf32>
    %78 = vector.extract_strided_slice %69 {offsets = [0, 128], sizes = [2, 128], strides = [1, 1]} : vector<2x256xf32> to vector<2x128xf32>
    %79 = arith.addf %77, %78 : vector<2x128xf32>
    %80 = vector.extract_strided_slice %74 {offsets = [0, 0], sizes = [2, 96], strides = [1, 1]} : vector<2x128xf32> to vector<2x96xf32>
    %81 = arith.negf %80 : vector<2x96xf32>
    %82 = math.exp %81 : vector<2x96xf32>
    %cst_30 = arith.constant 1.000000e+00 : f32
    %83 = vector.broadcast %cst_30 : f32 to vector<2x96xf32>
    %84 = arith.addf %83, %82 : vector<2x96xf32>
    %85 = arith.divf %83, %84 : vector<2x96xf32>
    %86 = vector.extract_strided_slice %79 {offsets = [0, 0], sizes = [2, 96], strides = [1, 1]} : vector<2x128xf32> to vector<2x96xf32>
    %87 = arith.negf %86 : vector<2x96xf32>
    %88 = math.exp %87 : vector<2x96xf32>
    %cst_31 = arith.constant 1.000000e+00 : f32
    %89 = vector.broadcast %cst_31 : f32 to vector<2x96xf32>
    %90 = arith.addf %89, %88 : vector<2x96xf32>
    %91 = arith.divf %89, %90 : vector<2x96xf32>
    %92 = vector.extract_strided_slice %85 {offsets = [0, 32], sizes = [2, 32], strides = [1, 1]} : vector<2x96xf32> to vector<2x32xf32>
    %93 = arith.mulf %92, %44 : vector<2x32xf32>
    %94 = vector.extract_strided_slice %85 {offsets = [0, 0], sizes = [2, 32], strides = [1, 1]} : vector<2x96xf32> to vector<2x32xf32>
    %95 = vector.extract_strided_slice %74 {offsets = [0, 96], sizes = [2, 32], strides = [1, 1]} : vector<2x128xf32> to vector<2x32xf32>
    %96 = math.tanh %95 : vector<2x32xf32>
    %97 = arith.mulf %94, %96 : vector<2x32xf32>
    %98 = arith.addf %93, %97 : vector<2x32xf32>
    %99 = vector.extract_strided_slice %91 {offsets = [0, 32], sizes = [2, 32], strides = [1, 1]} : vector<2x96xf32> to vector<2x32xf32>
    %100 = arith.mulf %99, %51 : vector<2x32xf32>
    %101 = vector.extract_strided_slice %91 {offsets = [0, 0], sizes = [2, 32], strides = [1, 1]} : vector<2x96xf32> to vector<2x32xf32>
    %102 = vector.extract_strided_slice %79 {offsets = [0, 96], sizes = [2, 32], strides = [1, 1]} : vector<2x128xf32> to vector<2x32xf32>
    %103 = math.tanh %102 : vector<2x32xf32>
    %104 = arith.mulf %101, %103 : vector<2x32xf32>
    %105 = arith.addf %100, %104 : vector<2x32xf32>
    %106 = vector.extract_strided_slice %85 {offsets = [0, 64], sizes = [2, 32], strides = [1, 1]} : vector<2x96xf32> to vector<2x32xf32>
    %107 = math.tanh %98 : vector<2x32xf32>
    %108 = arith.mulf %106, %107 : vector<2x32xf32>
    %109 = vector.extract_strided_slice %91 {offsets = [0, 64], sizes = [2, 32], strides = [1, 1]} : vector<2x96xf32> to vector<2x32xf32>
    %110 = math.tanh %105 : vector<2x32xf32>
    %111 = arith.mulf %109, %110 : vector<2x32xf32>
    %112 = arith.index_cast %c1_i32 : i32 to index
    %c0_32 = arith.constant 0 : index
    %c0_33 = arith.constant 0 : index
    %113 = vector.load %arg12[%112, %c0_32, %c0_33] : memref<8x2x32xf32, #tpu.memory_space<vmem>>, vector<1x2x32xf32>
    %114 = vector.shape_cast %113 : vector<1x2x32xf32> to vector<2x32xf32>
    %115 = vector.shape_cast %108 : vector<2x32xf32> to vector<1x2x32xf32>
    tpu.vector_store %arg12[%112, %c0_32, %c0_33], %115 {strides = array<i32>} : memref<8x2x32xf32, #tpu.memory_space<vmem>>, vector<1x2x32xf32>,
    %116 = arith.index_cast %67 : i32 to index
    %c0_34 = arith.constant 0 : index
    %c0_35 = arith.constant 0 : index
    %117 = vector.load %arg13[%116, %c0_34, %c0_35] : memref<8x2x32xf32, #tpu.memory_space<vmem>>, vector<1x2x32xf32>
    %118 = vector.shape_cast %117 : vector<1x2x32xf32> to vector<2x32xf32>
    %119 = vector.shape_cast %111 : vector<2x32xf32> to vector<1x2x32xf32>
    tpu.vector_store %arg13[%116, %c0_34, %c0_35], %119 {strides = array<i32>} : memref<8x2x32xf32, #tpu.memory_space<vmem>>, vector<1x2x32xf32>,
    %120 = tpu.concatenate %108, %111 in 1 : vector<2x32xf32>, vector<2x32xf32> -> vector<2x64xf32>
    %c2_i32 = arith.constant 2 : i32
    %c7_i32_36 = arith.constant 7 : i32
    %121 = arith.subi %c7_i32_36, %c2_i32 : i32
    %122 = arith.truncf %120 : vector<2x64xf32> to vector<2x64xbf16>
    %cst_37 = arith.constant dense<0.000000e+00> : vector<2x256xf32>
    %123 = tpu.matmul %122, %9, %cst_37 {dimension_numbers = #tpu.dot_dimension_numbers<[1], [0], [0], [1], [0, 0, 1, 1], [], []>} : vector<2x64xbf16>, vector<64x256xbf16>, vector<2x256xf32> -> vector<2x256xf32>
    %124 = arith.index_cast %c2_i32 : i32 to index
    %c0_38 = arith.constant 0 : index
    %c0_39 = arith.constant 0 : index
    %125 = vector.load %arg11[%124, %c0_38, %c0_39] : memref<8x2x256xf32, #tpu.memory_space<vmem>>, vector<1x2x128xf32>
    %126 = vector.shape_cast %125 : vector<1x2x128xf32> to vector<2x128xf32>
    %127 = vector.extract_strided_slice %123 {offsets = [0, 0], sizes = [2, 128], strides = [1, 1]} : vector<2x256xf32> to vector<2x128xf32>
    %128 = arith.addf %126, %127 : vector<2x128xf32>
    %129 = arith.index_cast %121 : i32 to index
    %c0_40 = arith.constant 0 : index
    %c128_41 = arith.constant 128 : index
    %130 = vector.load %arg11[%129, %c0_40, %c128_41] : memref<8x2x256xf32, #tpu.memory_space<vmem>>, vector<1x2x128xf32>
    %131 = vector.shape_cast %130 : vector<1x2x128xf32> to vector<2x128xf32>
    %132 = vector.extract_strided_slice %123 {offsets = [0, 128], sizes = [2, 128], strides = [1, 1]} : vector<2x256xf32> to vector<2x128xf32>
    %133 = arith.addf %131, %132 : vector<2x128xf32>
    %134 = vector.extract_strided_slice %128 {offsets = [0, 0], sizes = [2, 96], strides = [1, 1]} : vector<2x128xf32> to vector<2x96xf32>
    %135 = arith.negf %134 : vector<2x96xf32>
    %136 = math.exp %135 : vector<2x96xf32>
    %cst_42 = arith.constant 1.000000e+00 : f32
    %137 = vector.broadcast %cst_42 : f32 to vector<2x96xf32>
    %138 = arith.addf %137, %136 : vector<2x96xf32>
    %139 = arith.divf %137, %138 : vector<2x96xf32>
    %140 = vector.extract_strided_slice %133 {offsets = [0, 0], sizes = [2, 96], strides = [1, 1]} : vector<2x128xf32> to vector<2x96xf32>
    %141 = arith.negf %140 : vector<2x96xf32>
    %142 = math.exp %141 : vector<2x96xf32>
    %cst_43 = arith.constant 1.000000e+00 : f32
    %143 = vector.broadcast %cst_43 : f32 to vector<2x96xf32>
    %144 = arith.addf %143, %142 : vector<2x96xf32>
    %145 = arith.divf %143, %144 : vector<2x96xf32>
    %146 = vector.extract_strided_slice %139 {offsets = [0, 32], sizes = [2, 32], strides = [1, 1]} : vector<2x96xf32> to vector<2x32xf32>
    %147 = arith.mulf %146, %98 : vector<2x32xf32>
    %148 = vector.extract_strided_slice %139 {offsets = [0, 0], sizes = [2, 32], strides = [1, 1]} : vector<2x96xf32> to vector<2x32xf32>
    %149 = vector.extract_strided_slice %128 {offsets = [0, 96], sizes = [2, 32], strides = [1, 1]} : vector<2x128xf32> to vector<2x32xf32>
    %150 = math.tanh %149 : vector<2x32xf32>
    %151 = arith.mulf %148, %150 : vector<2x32xf32>
    %152 = arith.addf %147, %151 : vector<2x32xf32>
    %153 = vector.extract_strided_slice %145 {offsets = [0, 32], sizes = [2, 32], strides = [1, 1]} : vector<2x96xf32> to vector<2x32xf32>
    %154 = arith.mulf %153, %105 : vector<2x32xf32>
    %155 = vector.extract_strided_slice %145 {offsets = [0, 0], sizes = [2, 32], strides = [1, 1]} : vector<2x96xf32> to vector<2x32xf32>
    %156 = vector.extract_strided_slice %133 {offsets = [0, 96], sizes = [2, 32], strides = [1, 1]} : vector<2x128xf32> to vector<2x32xf32>
    %157 = math.tanh %156 : vector<2x32xf32>
    %158 = arith.mulf %155, %157 : vector<2x32xf32>
    %159 = arith.addf %154, %158 : vector<2x32xf32>
    %160 = vector.extract_strided_slice %139 {offsets = [0, 64], sizes = [2, 32], strides = [1, 1]} : vector<2x96xf32> to vector<2x32xf32>
    %161 = math.tanh %152 : vector<2x32xf32>
    %162 = arith.mulf %160, %161 : vector<2x32xf32>
    %163 = vector.extract_strided_slice %145 {offsets = [0, 64], sizes = [2, 32], strides = [1, 1]} : vector<2x96xf32> to vector<2x32xf32>
    %164 = math.tanh %159 : vector<2x32xf32>
    %165 = arith.mulf %163, %164 : vector<2x32xf32>
    %166 = arith.index_cast %c2_i32 : i32 to index
    %c0_44 = arith.constant 0 : index
    %c0_45 = arith.constant 0 : index
    %167 = vector.load %arg12[%166, %c0_44, %c0_45] : memref<8x2x32xf32, #tpu.memory_space<vmem>>, vector<1x2x32xf32>
    %168 = vector.shape_cast %167 : vector<1x2x32xf32> to vector<2x32xf32>
    %169 = vector.shape_cast %162 : vector<2x32xf32> to vector<1x2x32xf32>
    tpu.vector_store %arg12[%166, %c0_44, %c0_45], %169 {strides = array<i32>} : memref<8x2x32xf32, #tpu.memory_space<vmem>>, vector<1x2x32xf32>,
    %170 = arith.index_cast %121 : i32 to index
    %c0_46 = arith.constant 0 : index
    %c0_47 = arith.constant 0 : index
    %171 = vector.load %arg13[%170, %c0_46, %c0_47] : memref<8x2x32xf32, #tpu.memory_space<vmem>>, vector<1x2x32xf32>
    %172 = vector.shape_cast %171 : vector<1x2x32xf32> to vector<2x32xf32>
    %173 = vector.shape_cast %165 : vector<2x32xf32> to vector<1x2x32xf32>
    tpu.vector_store %arg13[%170, %c0_46, %c0_47], %173 {strides = array<i32>} : memref<8x2x32xf32, #tpu.memory_space<vmem>>, vector<1x2x32xf32>,
    %174 = tpu.concatenate %162, %165 in 1 : vector<2x32xf32>, vector<2x32xf32> -> vector<2x64xf32>
    %c3_i32 = arith.constant 3 : i32
    %c7_i32_48 = arith.constant 7 : i32
    %175 = arith.subi %c7_i32_48, %c3_i32 : i32
    %176 = arith.truncf %174 : vector<2x64xf32> to vector<2x64xbf16>
    %cst_49 = arith.constant dense<0.000000e+00> : vector<2x256xf32>
    %177 = tpu.matmul %176, %9, %cst_49 {dimension_numbers = #tpu.dot_dimension_numbers<[1], [0], [0], [1], [0, 0, 1, 1], [], []>} : vector<2x64xbf16>, vector<64x256xbf16>, vector<2x256xf32> -> vector<2x256xf32>
    %178 = arith.index_cast %c3_i32 : i32 to index
    %c0_50 = arith.constant 0 : index
    %c0_51 = arith.constant 0 : index
    %179 = vector.load %arg11[%178, %c0_50, %c0_51] : memref<8x2x256xf32, #tpu.memory_space<vmem>>, vector<1x2x128xf32>
    %180 = vector.shape_cast %179 : vector<1x2x128xf32> to vector<2x128xf32>
    %181 = vector.extract_strided_slice %177 {offsets = [0, 0], sizes = [2, 128], strides = [1, 1]} : vector<2x256xf32> to vector<2x128xf32>
    %182 = arith.addf %180, %181 : vector<2x128xf32>
    %183 = arith.index_cast %175 : i32 to index
    %c0_52 = arith.constant 0 : index
    %c128_53 = arith.constant 128 : index
    %184 = vector.load %arg11[%183, %c0_52, %c128_53] : memref<8x2x256xf32, #tpu.memory_space<vmem>>, vector<1x2x128xf32>
    %185 = vector.shape_cast %184 : vector<1x2x128xf32> to vector<2x128xf32>
    %186 = vector.extract_strided_slice %177 {offsets = [0, 128], sizes = [2, 128], strides = [1, 1]} : vector<2x256xf32> to vector<2x128xf32>
    %187 = arith.addf %185, %186 : vector<2x128xf32>
    %188 = vector.extract_strided_slice %182 {offsets = [0, 0], sizes = [2, 96], strides = [1, 1]} : vector<2x128xf32> to vector<2x96xf32>
    %189 = arith.negf %188 : vector<2x96xf32>
    %190 = math.exp %189 : vector<2x96xf32>
    %cst_54 = arith.constant 1.000000e+00 : f32
    %191 = vector.broadcast %cst_54 : f32 to vector<2x96xf32>
    %192 = arith.addf %191, %190 : vector<2x96xf32>
    %193 = arith.divf %191, %192 : vector<2x96xf32>
    %194 = vector.extract_strided_slice %187 {offsets = [0, 0], sizes = [2, 96], strides = [1, 1]} : vector<2x128xf32> to vector<2x96xf32>
    %195 = arith.negf %194 : vector<2x96xf32>
    %196 = math.exp %195 : vector<2x96xf32>
    %cst_55 = arith.constant 1.000000e+00 : f32
    %197 = vector.broadcast %cst_55 : f32 to vector<2x96xf32>
    %198 = arith.addf %197, %196 : vector<2x96xf32>
    %199 = arith.divf %197, %198 : vector<2x96xf32>
    %200 = vector.extract_strided_slice %193 {offsets = [0, 32], sizes = [2, 32], strides = [1, 1]} : vector<2x96xf32> to vector<2x32xf32>
    %201 = arith.mulf %200, %152 : vector<2x32xf32>
    %202 = vector.extract_strided_slice %193 {offsets = [0, 0], sizes = [2, 32], strides = [1, 1]} : vector<2x96xf32> to vector<2x32xf32>
    %203 = vector.extract_strided_slice %182 {offsets = [0, 96], sizes = [2, 32], strides = [1, 1]} : vector<2x128xf32> to vector<2x32xf32>
    %204 = math.tanh %203 : vector<2x32xf32>
    %205 = arith.mulf %202, %204 : vector<2x32xf32>
    %206 = arith.addf %201, %205 : vector<2x32xf32>
    %207 = vector.extract_strided_slice %199 {offsets = [0, 32], sizes = [2, 32], strides = [1, 1]} : vector<2x96xf32> to vector<2x32xf32>
    %208 = arith.mulf %207, %159 : vector<2x32xf32>
    %209 = vector.extract_strided_slice %199 {offsets = [0, 0], sizes = [2, 32], strides = [1, 1]} : vector<2x96xf32> to vector<2x32xf32>
    %210 = vector.extract_strided_slice %187 {offsets = [0, 96], sizes = [2, 32], strides = [1, 1]} : vector<2x128xf32> to vector<2x32xf32>
    %211 = math.tanh %210 : vector<2x32xf32>
    %212 = arith.mulf %209, %211 : vector<2x32xf32>
    %213 = arith.addf %208, %212 : vector<2x32xf32>
    %214 = vector.extract_strided_slice %193 {offsets = [0, 64], sizes = [2, 32], strides = [1, 1]} : vector<2x96xf32> to vector<2x32xf32>
    %215 = math.tanh %206 : vector<2x32xf32>
    %216 = arith.mulf %214, %215 : vector<2x32xf32>
    %217 = vector.extract_strided_slice %199 {offsets = [0, 64], sizes = [2, 32], strides = [1, 1]} : vector<2x96xf32> to vector<2x32xf32>
    %218 = math.tanh %213 : vector<2x32xf32>
    %219 = arith.mulf %217, %218 : vector<2x32xf32>
    %220 = arith.index_cast %c3_i32 : i32 to index
    %c0_56 = arith.constant 0 : index
    %c0_57 = arith.constant 0 : index
    %221 = vector.load %arg12[%220, %c0_56, %c0_57] : memref<8x2x32xf32, #tpu.memory_space<vmem>>, vector<1x2x32xf32>
    %222 = vector.shape_cast %221 : vector<1x2x32xf32> to vector<2x32xf32>
    %223 = vector.shape_cast %216 : vector<2x32xf32> to vector<1x2x32xf32>
    tpu.vector_store %arg12[%220, %c0_56, %c0_57], %223 {strides = array<i32>} : memref<8x2x32xf32, #tpu.memory_space<vmem>>, vector<1x2x32xf32>,
    %224 = arith.index_cast %175 : i32 to index
    %c0_58 = arith.constant 0 : index
    %c0_59 = arith.constant 0 : index
    %225 = vector.load %arg13[%224, %c0_58, %c0_59] : memref<8x2x32xf32, #tpu.memory_space<vmem>>, vector<1x2x32xf32>
    %226 = vector.shape_cast %225 : vector<1x2x32xf32> to vector<2x32xf32>
    %227 = vector.shape_cast %219 : vector<2x32xf32> to vector<1x2x32xf32>
    tpu.vector_store %arg13[%224, %c0_58, %c0_59], %227 {strides = array<i32>} : memref<8x2x32xf32, #tpu.memory_space<vmem>>, vector<1x2x32xf32>,
    %228 = tpu.concatenate %216, %219 in 1 : vector<2x32xf32>, vector<2x32xf32> -> vector<2x64xf32>
    %c4_i32 = arith.constant 4 : i32
    %c7_i32_60 = arith.constant 7 : i32
    %229 = arith.subi %c7_i32_60, %c4_i32 : i32
    %230 = arith.truncf %228 : vector<2x64xf32> to vector<2x64xbf16>
    %cst_61 = arith.constant dense<0.000000e+00> : vector<2x256xf32>
    %231 = tpu.matmul %230, %9, %cst_61 {dimension_numbers = #tpu.dot_dimension_numbers<[1], [0], [0], [1], [0, 0, 1, 1], [], []>} : vector<2x64xbf16>, vector<64x256xbf16>, vector<2x256xf32> -> vector<2x256xf32>
    %232 = arith.index_cast %c4_i32 : i32 to index
    %c0_62 = arith.constant 0 : index
    %c0_63 = arith.constant 0 : index
    %233 = vector.load %arg11[%232, %c0_62, %c0_63] : memref<8x2x256xf32, #tpu.memory_space<vmem>>, vector<1x2x128xf32>
    %234 = vector.shape_cast %233 : vector<1x2x128xf32> to vector<2x128xf32>
    %235 = vector.extract_strided_slice %231 {offsets = [0, 0], sizes = [2, 128], strides = [1, 1]} : vector<2x256xf32> to vector<2x128xf32>
    %236 = arith.addf %234, %235 : vector<2x128xf32>
    %237 = arith.index_cast %229 : i32 to index
    %c0_64 = arith.constant 0 : index
    %c128_65 = arith.constant 128 : index
    %238 = vector.load %arg11[%237, %c0_64, %c128_65] : memref<8x2x256xf32, #tpu.memory_space<vmem>>, vector<1x2x128xf32>
    %239 = vector.shape_cast %238 : vector<1x2x128xf32> to vector<2x128xf32>
    %240 = vector.extract_strided_slice %231 {offsets = [0, 128], sizes = [2, 128], strides = [1, 1]} : vector<2x256xf32> to vector<2x128xf32>
    %241 = arith.addf %239, %240 : vector<2x128xf32>
    %242 = vector.extract_strided_slice %236 {offsets = [0, 0], sizes = [2, 96], strides = [1, 1]} : vector<2x128xf32> to vector<2x96xf32>
    %243 = arith.negf %242 : vector<2x96xf32>
    %244 = math.exp %243 : vector<2x96xf32>
    %cst_66 = arith.constant 1.000000e+00 : f32
    %245 = vector.broadcast %cst_66 : f32 to vector<2x96xf32>
    %246 = arith.addf %245, %244 : vector<2x96xf32>
    %247 = arith.divf %245, %246 : vector<2x96xf32>
    %248 = vector.extract_strided_slice %241 {offsets = [0, 0], sizes = [2, 96], strides = [1, 1]} : vector<2x128xf32> to vector<2x96xf32>
    %249 = arith.negf %248 : vector<2x96xf32>
    %250 = math.exp %249 : vector<2x96xf32>
    %cst_67 = arith.constant 1.000000e+00 : f32
    %251 = vector.broadcast %cst_67 : f32 to vector<2x96xf32>
    %252 = arith.addf %251, %250 : vector<2x96xf32>
    %253 = arith.divf %251, %252 : vector<2x96xf32>
    %254 = vector.extract_strided_slice %247 {offsets = [0, 32], sizes = [2, 32], strides = [1, 1]} : vector<2x96xf32> to vector<2x32xf32>
    %255 = arith.mulf %254, %206 : vector<2x32xf32>
    %256 = vector.extract_strided_slice %247 {offsets = [0, 0], sizes = [2, 32], strides = [1, 1]} : vector<2x96xf32> to vector<2x32xf32>
    %257 = vector.extract_strided_slice %236 {offsets = [0, 96], sizes = [2, 32], strides = [1, 1]} : vector<2x128xf32> to vector<2x32xf32>
    %258 = math.tanh %257 : vector<2x32xf32>
    %259 = arith.mulf %256, %258 : vector<2x32xf32>
    %260 = arith.addf %255, %259 : vector<2x32xf32>
    %261 = vector.extract_strided_slice %253 {offsets = [0, 32], sizes = [2, 32], strides = [1, 1]} : vector<2x96xf32> to vector<2x32xf32>
    %262 = arith.mulf %261, %213 : vector<2x32xf32>
    %263 = vector.extract_strided_slice %253 {offsets = [0, 0], sizes = [2, 32], strides = [1, 1]} : vector<2x96xf32> to vector<2x32xf32>
    %264 = vector.extract_strided_slice %241 {offsets = [0, 96], sizes = [2, 32], strides = [1, 1]} : vector<2x128xf32> to vector<2x32xf32>
    %265 = math.tanh %264 : vector<2x32xf32>
    %266 = arith.mulf %263, %265 : vector<2x32xf32>
    %267 = arith.addf %262, %266 : vector<2x32xf32>
    %268 = vector.extract_strided_slice %247 {offsets = [0, 64], sizes = [2, 32], strides = [1, 1]} : vector<2x96xf32> to vector<2x32xf32>
    %269 = math.tanh %260 : vector<2x32xf32>
    %270 = arith.mulf %268, %269 : vector<2x32xf32>
    %271 = vector.extract_strided_slice %253 {offsets = [0, 64], sizes = [2, 32], strides = [1, 1]} : vector<2x96xf32> to vector<2x32xf32>
    %272 = math.tanh %267 : vector<2x32xf32>
    %273 = arith.mulf %271, %272 : vector<2x32xf32>
    %274 = arith.index_cast %c4_i32 : i32 to index
    %c0_68 = arith.constant 0 : index
    %c0_69 = arith.constant 0 : index
    %275 = vector.load %arg12[%274, %c0_68, %c0_69] : memref<8x2x32xf32, #tpu.memory_space<vmem>>, vector<1x2x32xf32>
    %276 = vector.shape_cast %275 : vector<1x2x32xf32> to vector<2x32xf32>
    %277 = vector.shape_cast %270 : vector<2x32xf32> to vector<1x2x32xf32>
    tpu.vector_store %arg12[%274, %c0_68, %c0_69], %277 {strides = array<i32>} : memref<8x2x32xf32, #tpu.memory_space<vmem>>, vector<1x2x32xf32>,
    %278 = arith.index_cast %229 : i32 to index
    %c0_70 = arith.constant 0 : index
    %c0_71 = arith.constant 0 : index
    %279 = vector.load %arg13[%278, %c0_70, %c0_71] : memref<8x2x32xf32, #tpu.memory_space<vmem>>, vector<1x2x32xf32>
    %280 = vector.shape_cast %279 : vector<1x2x32xf32> to vector<2x32xf32>
    %281 = vector.shape_cast %273 : vector<2x32xf32> to vector<1x2x32xf32>
    tpu.vector_store %arg13[%278, %c0_70, %c0_71], %281 {strides = array<i32>} : memref<8x2x32xf32, #tpu.memory_space<vmem>>, vector<1x2x32xf32>,
    %282 = tpu.concatenate %270, %273 in 1 : vector<2x32xf32>, vector<2x32xf32> -> vector<2x64xf32>
    %c5_i32 = arith.constant 5 : i32
    %c7_i32_72 = arith.constant 7 : i32
    %283 = arith.subi %c7_i32_72, %c5_i32 : i32
    %284 = arith.truncf %282 : vector<2x64xf32> to vector<2x64xbf16>
    %cst_73 = arith.constant dense<0.000000e+00> : vector<2x256xf32>
    %285 = tpu.matmul %284, %9, %cst_73 {dimension_numbers = #tpu.dot_dimension_numbers<[1], [0], [0], [1], [0, 0, 1, 1], [], []>} : vector<2x64xbf16>, vector<64x256xbf16>, vector<2x256xf32> -> vector<2x256xf32>
    %286 = arith.index_cast %c5_i32 : i32 to index
    %c0_74 = arith.constant 0 : index
    %c0_75 = arith.constant 0 : index
    %287 = vector.load %arg11[%286, %c0_74, %c0_75] : memref<8x2x256xf32, #tpu.memory_space<vmem>>, vector<1x2x128xf32>
    %288 = vector.shape_cast %287 : vector<1x2x128xf32> to vector<2x128xf32>
    %289 = vector.extract_strided_slice %285 {offsets = [0, 0], sizes = [2, 128], strides = [1, 1]} : vector<2x256xf32> to vector<2x128xf32>
    %290 = arith.addf %288, %289 : vector<2x128xf32>
    %291 = arith.index_cast %283 : i32 to index
    %c0_76 = arith.constant 0 : index
    %c128_77 = arith.constant 128 : index
    %292 = vector.load %arg11[%291, %c0_76, %c128_77] : memref<8x2x256xf32, #tpu.memory_space<vmem>>, vector<1x2x128xf32>
    %293 = vector.shape_cast %292 : vector<1x2x128xf32> to vector<2x128xf32>
    %294 = vector.extract_strided_slice %285 {offsets = [0, 128], sizes = [2, 128], strides = [1, 1]} : vector<2x256xf32> to vector<2x128xf32>
    %295 = arith.addf %293, %294 : vector<2x128xf32>
    %296 = vector.extract_strided_slice %290 {offsets = [0, 0], sizes = [2, 96], strides = [1, 1]} : vector<2x128xf32> to vector<2x96xf32>
    %297 = arith.negf %296 : vector<2x96xf32>
    %298 = math.exp %297 : vector<2x96xf32>
    %cst_78 = arith.constant 1.000000e+00 : f32
    %299 = vector.broadcast %cst_78 : f32 to vector<2x96xf32>
    %300 = arith.addf %299, %298 : vector<2x96xf32>
    %301 = arith.divf %299, %300 : vector<2x96xf32>
    %302 = vector.extract_strided_slice %295 {offsets = [0, 0], sizes = [2, 96], strides = [1, 1]} : vector<2x128xf32> to vector<2x96xf32>
    %303 = arith.negf %302 : vector<2x96xf32>
    %304 = math.exp %303 : vector<2x96xf32>
    %cst_79 = arith.constant 1.000000e+00 : f32
    %305 = vector.broadcast %cst_79 : f32 to vector<2x96xf32>
    %306 = arith.addf %305, %304 : vector<2x96xf32>
    %307 = arith.divf %305, %306 : vector<2x96xf32>
    %308 = vector.extract_strided_slice %301 {offsets = [0, 32], sizes = [2, 32], strides = [1, 1]} : vector<2x96xf32> to vector<2x32xf32>
    %309 = arith.mulf %308, %260 : vector<2x32xf32>
    %310 = vector.extract_strided_slice %301 {offsets = [0, 0], sizes = [2, 32], strides = [1, 1]} : vector<2x96xf32> to vector<2x32xf32>
    %311 = vector.extract_strided_slice %290 {offsets = [0, 96], sizes = [2, 32], strides = [1, 1]} : vector<2x128xf32> to vector<2x32xf32>
    %312 = math.tanh %311 : vector<2x32xf32>
    %313 = arith.mulf %310, %312 : vector<2x32xf32>
    %314 = arith.addf %309, %313 : vector<2x32xf32>
    %315 = vector.extract_strided_slice %307 {offsets = [0, 32], sizes = [2, 32], strides = [1, 1]} : vector<2x96xf32> to vector<2x32xf32>
    %316 = arith.mulf %315, %267 : vector<2x32xf32>
    %317 = vector.extract_strided_slice %307 {offsets = [0, 0], sizes = [2, 32], strides = [1, 1]} : vector<2x96xf32> to vector<2x32xf32>
    %318 = vector.extract_strided_slice %295 {offsets = [0, 96], sizes = [2, 32], strides = [1, 1]} : vector<2x128xf32> to vector<2x32xf32>
    %319 = math.tanh %318 : vector<2x32xf32>
    %320 = arith.mulf %317, %319 : vector<2x32xf32>
    %321 = arith.addf %316, %320 : vector<2x32xf32>
    %322 = vector.extract_strided_slice %301 {offsets = [0, 64], sizes = [2, 32], strides = [1, 1]} : vector<2x96xf32> to vector<2x32xf32>
    %323 = math.tanh %314 : vector<2x32xf32>
    %324 = arith.mulf %322, %323 : vector<2x32xf32>
    %325 = vector.extract_strided_slice %307 {offsets = [0, 64], sizes = [2, 32], strides = [1, 1]} : vector<2x96xf32> to vector<2x32xf32>
    %326 = math.tanh %321 : vector<2x32xf32>
    %327 = arith.mulf %325, %326 : vector<2x32xf32>
    %328 = arith.index_cast %c5_i32 : i32 to index
    %c0_80 = arith.constant 0 : index
    %c0_81 = arith.constant 0 : index
    %329 = vector.load %arg12[%328, %c0_80, %c0_81] : memref<8x2x32xf32, #tpu.memory_space<vmem>>, vector<1x2x32xf32>
    %330 = vector.shape_cast %329 : vector<1x2x32xf32> to vector<2x32xf32>
    %331 = vector.shape_cast %324 : vector<2x32xf32> to vector<1x2x32xf32>
    tpu.vector_store %arg12[%328, %c0_80, %c0_81], %331 {strides = array<i32>} : memref<8x2x32xf32, #tpu.memory_space<vmem>>, vector<1x2x32xf32>,
    %332 = arith.index_cast %283 : i32 to index
    %c0_82 = arith.constant 0 : index
    %c0_83 = arith.constant 0 : index
    %333 = vector.load %arg13[%332, %c0_82, %c0_83] : memref<8x2x32xf32, #tpu.memory_space<vmem>>, vector<1x2x32xf32>
    %334 = vector.shape_cast %333 : vector<1x2x32xf32> to vector<2x32xf32>
    %335 = vector.shape_cast %327 : vector<2x32xf32> to vector<1x2x32xf32>
    tpu.vector_store %arg13[%332, %c0_82, %c0_83], %335 {strides = array<i32>} : memref<8x2x32xf32, #tpu.memory_space<vmem>>, vector<1x2x32xf32>,
    %336 = tpu.concatenate %324, %327 in 1 : vector<2x32xf32>, vector<2x32xf32> -> vector<2x64xf32>
    %c6_i32 = arith.constant 6 : i32
    %c7_i32_84 = arith.constant 7 : i32
    %337 = arith.subi %c7_i32_84, %c6_i32 : i32
    %338 = arith.truncf %336 : vector<2x64xf32> to vector<2x64xbf16>
    %cst_85 = arith.constant dense<0.000000e+00> : vector<2x256xf32>
    %339 = tpu.matmul %338, %9, %cst_85 {dimension_numbers = #tpu.dot_dimension_numbers<[1], [0], [0], [1], [0, 0, 1, 1], [], []>} : vector<2x64xbf16>, vector<64x256xbf16>, vector<2x256xf32> -> vector<2x256xf32>
    %340 = arith.index_cast %c6_i32 : i32 to index
    %c0_86 = arith.constant 0 : index
    %c0_87 = arith.constant 0 : index
    %341 = vector.load %arg11[%340, %c0_86, %c0_87] : memref<8x2x256xf32, #tpu.memory_space<vmem>>, vector<1x2x128xf32>
    %342 = vector.shape_cast %341 : vector<1x2x128xf32> to vector<2x128xf32>
    %343 = vector.extract_strided_slice %339 {offsets = [0, 0], sizes = [2, 128], strides = [1, 1]} : vector<2x256xf32> to vector<2x128xf32>
    %344 = arith.addf %342, %343 : vector<2x128xf32>
    %345 = arith.index_cast %337 : i32 to index
    %c0_88 = arith.constant 0 : index
    %c128_89 = arith.constant 128 : index
    %346 = vector.load %arg11[%345, %c0_88, %c128_89] : memref<8x2x256xf32, #tpu.memory_space<vmem>>, vector<1x2x128xf32>
    %347 = vector.shape_cast %346 : vector<1x2x128xf32> to vector<2x128xf32>
    %348 = vector.extract_strided_slice %339 {offsets = [0, 128], sizes = [2, 128], strides = [1, 1]} : vector<2x256xf32> to vector<2x128xf32>
    %349 = arith.addf %347, %348 : vector<2x128xf32>
    %350 = vector.extract_strided_slice %344 {offsets = [0, 0], sizes = [2, 96], strides = [1, 1]} : vector<2x128xf32> to vector<2x96xf32>
    %351 = arith.negf %350 : vector<2x96xf32>
    %352 = math.exp %351 : vector<2x96xf32>
    %cst_90 = arith.constant 1.000000e+00 : f32
    %353 = vector.broadcast %cst_90 : f32 to vector<2x96xf32>
    %354 = arith.addf %353, %352 : vector<2x96xf32>
    %355 = arith.divf %353, %354 : vector<2x96xf32>
    %356 = vector.extract_strided_slice %349 {offsets = [0, 0], sizes = [2, 96], strides = [1, 1]} : vector<2x128xf32> to vector<2x96xf32>
    %357 = arith.negf %356 : vector<2x96xf32>
    %358 = math.exp %357 : vector<2x96xf32>
    %cst_91 = arith.constant 1.000000e+00 : f32
    %359 = vector.broadcast %cst_91 : f32 to vector<2x96xf32>
    %360 = arith.addf %359, %358 : vector<2x96xf32>
    %361 = arith.divf %359, %360 : vector<2x96xf32>
    %362 = vector.extract_strided_slice %355 {offsets = [0, 32], sizes = [2, 32], strides = [1, 1]} : vector<2x96xf32> to vector<2x32xf32>
    %363 = arith.mulf %362, %314 : vector<2x32xf32>
    %364 = vector.extract_strided_slice %355 {offsets = [0, 0], sizes = [2, 32], strides = [1, 1]} : vector<2x96xf32> to vector<2x32xf32>
    %365 = vector.extract_strided_slice %344 {offsets = [0, 96], sizes = [2, 32], strides = [1, 1]} : vector<2x128xf32> to vector<2x32xf32>
    %366 = math.tanh %365 : vector<2x32xf32>
    %367 = arith.mulf %364, %366 : vector<2x32xf32>
    %368 = arith.addf %363, %367 : vector<2x32xf32>
    %369 = vector.extract_strided_slice %361 {offsets = [0, 32], sizes = [2, 32], strides = [1, 1]} : vector<2x96xf32> to vector<2x32xf32>
    %370 = arith.mulf %369, %321 : vector<2x32xf32>
    %371 = vector.extract_strided_slice %361 {offsets = [0, 0], sizes = [2, 32], strides = [1, 1]} : vector<2x96xf32> to vector<2x32xf32>
    %372 = vector.extract_strided_slice %349 {offsets = [0, 96], sizes = [2, 32], strides = [1, 1]} : vector<2x128xf32> to vector<2x32xf32>
    %373 = math.tanh %372 : vector<2x32xf32>
    %374 = arith.mulf %371, %373 : vector<2x32xf32>
    %375 = arith.addf %370, %374 : vector<2x32xf32>
    %376 = vector.extract_strided_slice %355 {offsets = [0, 64], sizes = [2, 32], strides = [1, 1]} : vector<2x96xf32> to vector<2x32xf32>
    %377 = math.tanh %368 : vector<2x32xf32>
    %378 = arith.mulf %376, %377 : vector<2x32xf32>
    %379 = vector.extract_strided_slice %361 {offsets = [0, 64], sizes = [2, 32], strides = [1, 1]} : vector<2x96xf32> to vector<2x32xf32>
    %380 = math.tanh %375 : vector<2x32xf32>
    %381 = arith.mulf %379, %380 : vector<2x32xf32>
    %382 = arith.index_cast %c6_i32 : i32 to index
    %c0_92 = arith.constant 0 : index
    %c0_93 = arith.constant 0 : index
    %383 = vector.load %arg12[%382, %c0_92, %c0_93] : memref<8x2x32xf32, #tpu.memory_space<vmem>>, vector<1x2x32xf32>
    %384 = vector.shape_cast %383 : vector<1x2x32xf32> to vector<2x32xf32>
    %385 = vector.shape_cast %378 : vector<2x32xf32> to vector<1x2x32xf32>
    tpu.vector_store %arg12[%382, %c0_92, %c0_93], %385 {strides = array<i32>} : memref<8x2x32xf32, #tpu.memory_space<vmem>>, vector<1x2x32xf32>,
    %386 = arith.index_cast %337 : i32 to index
    %c0_94 = arith.constant 0 : index
    %c0_95 = arith.constant 0 : index
    %387 = vector.load %arg13[%386, %c0_94, %c0_95] : memref<8x2x32xf32, #tpu.memory_space<vmem>>, vector<1x2x32xf32>
    %388 = vector.shape_cast %387 : vector<1x2x32xf32> to vector<2x32xf32>
    %389 = vector.shape_cast %381 : vector<2x32xf32> to vector<1x2x32xf32>
    tpu.vector_store %arg13[%386, %c0_94, %c0_95], %389 {strides = array<i32>} : memref<8x2x32xf32, #tpu.memory_space<vmem>>, vector<1x2x32xf32>,
    %390 = tpu.concatenate %378, %381 in 1 : vector<2x32xf32>, vector<2x32xf32> -> vector<2x64xf32>
    %c7_i32_96 = arith.constant 7 : i32
    %c7_i32_97 = arith.constant 7 : i32
    %391 = arith.subi %c7_i32_97, %c7_i32_96 : i32
    %392 = arith.truncf %390 : vector<2x64xf32> to vector<2x64xbf16>
    %cst_98 = arith.constant dense<0.000000e+00> : vector<2x256xf32>
    %393 = tpu.matmul %392, %9, %cst_98 {dimension_numbers = #tpu.dot_dimension_numbers<[1], [0], [0], [1], [0, 0, 1, 1], [], []>} : vector<2x64xbf16>, vector<64x256xbf16>, vector<2x256xf32> -> vector<2x256xf32>
    %394 = arith.index_cast %c7_i32_96 : i32 to index
    %c0_99 = arith.constant 0 : index
    %c0_100 = arith.constant 0 : index
    %395 = vector.load %arg11[%394, %c0_99, %c0_100] : memref<8x2x256xf32, #tpu.memory_space<vmem>>, vector<1x2x128xf32>
    %396 = vector.shape_cast %395 : vector<1x2x128xf32> to vector<2x128xf32>
    %397 = vector.extract_strided_slice %393 {offsets = [0, 0], sizes = [2, 128], strides = [1, 1]} : vector<2x256xf32> to vector<2x128xf32>
    %398 = arith.addf %396, %397 : vector<2x128xf32>
    %399 = arith.index_cast %391 : i32 to index
    %c0_101 = arith.constant 0 : index
    %c128_102 = arith.constant 128 : index
    %400 = vector.load %arg11[%399, %c0_101, %c128_102] : memref<8x2x256xf32, #tpu.memory_space<vmem>>, vector<1x2x128xf32>
    %401 = vector.shape_cast %400 : vector<1x2x128xf32> to vector<2x128xf32>
    %402 = vector.extract_strided_slice %393 {offsets = [0, 128], sizes = [2, 128], strides = [1, 1]} : vector<2x256xf32> to vector<2x128xf32>
    %403 = arith.addf %401, %402 : vector<2x128xf32>
    %404 = vector.extract_strided_slice %398 {offsets = [0, 0], sizes = [2, 96], strides = [1, 1]} : vector<2x128xf32> to vector<2x96xf32>
    %405 = arith.negf %404 : vector<2x96xf32>
    %406 = math.exp %405 : vector<2x96xf32>
    %cst_103 = arith.constant 1.000000e+00 : f32
    %407 = vector.broadcast %cst_103 : f32 to vector<2x96xf32>
    %408 = arith.addf %407, %406 : vector<2x96xf32>
    %409 = arith.divf %407, %408 : vector<2x96xf32>
    %410 = vector.extract_strided_slice %403 {offsets = [0, 0], sizes = [2, 96], strides = [1, 1]} : vector<2x128xf32> to vector<2x96xf32>
    %411 = arith.negf %410 : vector<2x96xf32>
    %412 = math.exp %411 : vector<2x96xf32>
    %cst_104 = arith.constant 1.000000e+00 : f32
    %413 = vector.broadcast %cst_104 : f32 to vector<2x96xf32>
    %414 = arith.addf %413, %412 : vector<2x96xf32>
    %415 = arith.divf %413, %414 : vector<2x96xf32>
    %416 = vector.extract_strided_slice %409 {offsets = [0, 32], sizes = [2, 32], strides = [1, 1]} : vector<2x96xf32> to vector<2x32xf32>
    %417 = arith.mulf %416, %368 : vector<2x32xf32>
    %418 = vector.extract_strided_slice %409 {offsets = [0, 0], sizes = [2, 32], strides = [1, 1]} : vector<2x96xf32> to vector<2x32xf32>
    %419 = vector.extract_strided_slice %398 {offsets = [0, 96], sizes = [2, 32], strides = [1, 1]} : vector<2x128xf32> to vector<2x32xf32>
    %420 = math.tanh %419 : vector<2x32xf32>
    %421 = arith.mulf %418, %420 : vector<2x32xf32>
    %422 = arith.addf %417, %421 : vector<2x32xf32>
    %423 = vector.extract_strided_slice %415 {offsets = [0, 32], sizes = [2, 32], strides = [1, 1]} : vector<2x96xf32> to vector<2x32xf32>
    %424 = arith.mulf %423, %375 : vector<2x32xf32>
    %425 = vector.extract_strided_slice %415 {offsets = [0, 0], sizes = [2, 32], strides = [1, 1]} : vector<2x96xf32> to vector<2x32xf32>
    %426 = vector.extract_strided_slice %403 {offsets = [0, 96], sizes = [2, 32], strides = [1, 1]} : vector<2x128xf32> to vector<2x32xf32>
    %427 = math.tanh %426 : vector<2x32xf32>
    %428 = arith.mulf %425, %427 : vector<2x32xf32>
    %429 = arith.addf %424, %428 : vector<2x32xf32>
    %430 = vector.extract_strided_slice %409 {offsets = [0, 64], sizes = [2, 32], strides = [1, 1]} : vector<2x96xf32> to vector<2x32xf32>
    %431 = math.tanh %422 : vector<2x32xf32>
    %432 = arith.mulf %430, %431 : vector<2x32xf32>
    %433 = vector.extract_strided_slice %415 {offsets = [0, 64], sizes = [2, 32], strides = [1, 1]} : vector<2x96xf32> to vector<2x32xf32>
    %434 = math.tanh %429 : vector<2x32xf32>
    %435 = arith.mulf %433, %434 : vector<2x32xf32>
    %436 = arith.index_cast %c7_i32_96 : i32 to index
    %c0_105 = arith.constant 0 : index
    %c0_106 = arith.constant 0 : index
    %437 = vector.load %arg12[%436, %c0_105, %c0_106] : memref<8x2x32xf32, #tpu.memory_space<vmem>>, vector<1x2x32xf32>
    %438 = vector.shape_cast %437 : vector<1x2x32xf32> to vector<2x32xf32>
    %439 = vector.shape_cast %432 : vector<2x32xf32> to vector<1x2x32xf32>
    tpu.vector_store %arg12[%436, %c0_105, %c0_106], %439 {strides = array<i32>} : memref<8x2x32xf32, #tpu.memory_space<vmem>>, vector<1x2x32xf32>,
    %440 = arith.index_cast %391 : i32 to index
    %c0_107 = arith.constant 0 : index
    %c0_108 = arith.constant 0 : index
    %441 = vector.load %arg13[%440, %c0_107, %c0_108] : memref<8x2x32xf32, #tpu.memory_space<vmem>>, vector<1x2x32xf32>
    %442 = vector.shape_cast %441 : vector<1x2x32xf32> to vector<2x32xf32>
    %443 = vector.shape_cast %435 : vector<2x32xf32> to vector<1x2x32xf32>
    tpu.vector_store %arg13[%440, %c0_107, %c0_108], %443 {strides = array<i32>} : memref<8x2x32xf32, #tpu.memory_space<vmem>>, vector<1x2x32xf32>,
    %444 = tpu.concatenate %432, %435 in 1 : vector<2x32xf32>, vector<2x32xf32> -> vector<2x64xf32>
    %c8_i32 = arith.constant 8 : i32
    %c0_109 = arith.constant 0 : index
    %c0_110 = arith.constant 0 : index
    %445 = vector.load %arg5[%c0_109, %c0_110] : memref<64x256xbf16, #tpu.memory_space<vmem>>, vector<64x256xbf16>
    %c0_111 = arith.constant 0 : index
    %c0_112 = arith.constant 0 : index
    %c0_113 = arith.constant 0 : index
    %446 = vector.load %arg12[%c0_111, %c0_112, %c0_113] : memref<8x2x32xf32, #tpu.memory_space<vmem>>, vector<8x2x32xf32>
    %447 = vector.shape_cast %446 : vector<8x2x32xf32> to vector<16x32xf32>
    %448 = arith.truncf %447 : vector<16x32xf32> to vector<16x32xbf16>
    %449 = vector.extract_strided_slice %445 {offsets = [0, 0], sizes = [32, 256], strides = [1, 1]} : vector<64x256xbf16> to vector<32x256xbf16>
    %cst_114 = arith.constant dense<0.000000e+00> : vector<16x256xf32>
    %450 = tpu.matmul %448, %449, %cst_114 {dimension_numbers = #tpu.dot_dimension_numbers<[1], [0], [0], [1], [0, 0, 1, 1], [], []>} : vector<16x32xbf16>, vector<32x256xbf16>, vector<16x256xf32> -> vector<16x256xf32>
    %c0_115 = arith.constant 0 : index
    %c0_116 = arith.constant 0 : index
    %c0_117 = arith.constant 0 : index
    %451 = vector.load %arg13[%c0_115, %c0_116, %c0_117] : memref<8x2x32xf32, #tpu.memory_space<vmem>>, vector<8x2x32xf32>
    %452 = vector.shape_cast %451 : vector<8x2x32xf32> to vector<16x32xf32>
    %453 = arith.truncf %452 : vector<16x32xf32> to vector<16x32xbf16>
    %454 = vector.extract_strided_slice %445 {offsets = [32, 0], sizes = [32, 256], strides = [1, 1]} : vector<64x256xbf16> to vector<32x256xbf16>
    %cst_118 = arith.constant dense<0.000000e+00> : vector<16x256xf32>
    %455 = tpu.matmul %453, %454, %cst_118 {dimension_numbers = #tpu.dot_dimension_numbers<[1], [0], [0], [1], [0, 0, 1, 1], [], []>} : vector<16x32xbf16>, vector<32x256xbf16>, vector<16x256xf32> -> vector<16x256xf32>
    %456 = arith.addf %450, %455 : vector<16x256xf32>
    %c0_119 = arith.constant 0 : index
    %c0_120 = arith.constant 0 : index
    %457 = vector.load %arg7[%c0_119, %c0_120] : memref<1x256xf32, #tpu.memory_space<vmem>>, vector<1x256xf32>
    %458 = vector.broadcast %457 : vector<1x256xf32> to vector<16x256xf32>
    %459 = arith.addf %456, %458 : vector<16x256xf32>
    %460 = vector.shape_cast %459 : vector<16x256xf32> to vector<8x2x256xf32>
    %c0_121 = arith.constant 0 : index
    %c0_122 = arith.constant 0 : index
    %c0_123 = arith.constant 0 : index
    %461 = vector.load %arg11[%c0_121, %c0_122, %c0_123] : memref<8x2x256xf32, #tpu.memory_space<vmem>>, vector<8x2x256xf32>
    tpu.vector_store %arg11[%c0_121, %c0_122, %c0_123], %460 {strides = array<i32>} : memref<8x2x256xf32, #tpu.memory_space<vmem>>, vector<8x2x256xf32>,
    %c0_124 = arith.constant 0 : index
    %c0_125 = arith.constant 0 : index
    %462 = vector.load %arg6[%c0_124, %c0_125] : memref<64x256xbf16, #tpu.memory_space<vmem>>, vector<64x256xbf16>
    %cst_126 = arith.constant 0.000000e+00 : f32
    %463 = vector.broadcast %cst_126 : f32 to vector<2x64xf32>
    %cst_127 = arith.constant 0.000000e+00 : f32
    %464 = vector.broadcast %cst_127 : f32 to vector<2x32xf32>
    %cst_128 = arith.constant 0.000000e+00 : f32
    %465 = vector.broadcast %cst_128 : f32 to vector<2x32xf32>
    %c0_i32_129 = arith.constant 0 : i32
    %c7_i32_130 = arith.constant 7 : i32
    %466 = arith.subi %c7_i32_130, %c0_i32_129 : i32
    %467 = arith.truncf %463 : vector<2x64xf32> to vector<2x64xbf16>
    %cst_131 = arith.constant dense<0.000000e+00> : vector<2x256xf32>
    %468 = tpu.matmul %467, %462, %cst_131 {dimension_numbers = #tpu.dot_dimension_numbers<[1], [0], [0], [1], [0, 0, 1, 1], [], []>} : vector<2x64xbf16>, vector<64x256xbf16>, vector<2x256xf32> -> vector<2x256xf32>
    %469 = arith.index_cast %c0_i32_129 : i32 to index
    %c0_132 = arith.constant 0 : index
    %c0_133 = arith.constant 0 : index
    %470 = vector.load %arg11[%469, %c0_132, %c0_133] : memref<8x2x256xf32, #tpu.memory_space<vmem>>, vector<1x2x128xf32>
    %471 = vector.shape_cast %470 : vector<1x2x128xf32> to vector<2x128xf32>
    %472 = vector.extract_strided_slice %468 {offsets = [0, 0], sizes = [2, 128], strides = [1, 1]} : vector<2x256xf32> to vector<2x128xf32>
    %473 = arith.addf %471, %472 : vector<2x128xf32>
    %474 = arith.index_cast %466 : i32 to index
    %c0_134 = arith.constant 0 : index
    %c128_135 = arith.constant 128 : index
    %475 = vector.load %arg11[%474, %c0_134, %c128_135] : memref<8x2x256xf32, #tpu.memory_space<vmem>>, vector<1x2x128xf32>
    %476 = vector.shape_cast %475 : vector<1x2x128xf32> to vector<2x128xf32>
    %477 = vector.extract_strided_slice %468 {offsets = [0, 128], sizes = [2, 128], strides = [1, 1]} : vector<2x256xf32> to vector<2x128xf32>
    %478 = arith.addf %476, %477 : vector<2x128xf32>
    %479 = vector.extract_strided_slice %473 {offsets = [0, 0], sizes = [2, 96], strides = [1, 1]} : vector<2x128xf32> to vector<2x96xf32>
    %480 = arith.negf %479 : vector<2x96xf32>
    %481 = math.exp %480 : vector<2x96xf32>
    %cst_136 = arith.constant 1.000000e+00 : f32
    %482 = vector.broadcast %cst_136 : f32 to vector<2x96xf32>
    %483 = arith.addf %482, %481 : vector<2x96xf32>
    %484 = arith.divf %482, %483 : vector<2x96xf32>
    %485 = vector.extract_strided_slice %478 {offsets = [0, 0], sizes = [2, 96], strides = [1, 1]} : vector<2x128xf32> to vector<2x96xf32>
    %486 = arith.negf %485 : vector<2x96xf32>
    %487 = math.exp %486 : vector<2x96xf32>
    %cst_137 = arith.constant 1.000000e+00 : f32
    %488 = vector.broadcast %cst_137 : f32 to vector<2x96xf32>
    %489 = arith.addf %488, %487 : vector<2x96xf32>
    %490 = arith.divf %488, %489 : vector<2x96xf32>
    %491 = vector.extract_strided_slice %484 {offsets = [0, 32], sizes = [2, 32], strides = [1, 1]} : vector<2x96xf32> to vector<2x32xf32>
    %492 = arith.mulf %491, %464 : vector<2x32xf32>
    %493 = vector.extract_strided_slice %484 {offsets = [0, 0], sizes = [2, 32], strides = [1, 1]} : vector<2x96xf32> to vector<2x32xf32>
    %494 = vector.extract_strided_slice %473 {offsets = [0, 96], sizes = [2, 32], strides = [1, 1]} : vector<2x128xf32> to vector<2x32xf32>
    %495 = math.tanh %494 : vector<2x32xf32>
    %496 = arith.mulf %493, %495 : vector<2x32xf32>
    %497 = arith.addf %492, %496 : vector<2x32xf32>
    %498 = vector.extract_strided_slice %490 {offsets = [0, 32], sizes = [2, 32], strides = [1, 1]} : vector<2x96xf32> to vector<2x32xf32>
    %499 = arith.mulf %498, %465 : vector<2x32xf32>
    %500 = vector.extract_strided_slice %490 {offsets = [0, 0], sizes = [2, 32], strides = [1, 1]} : vector<2x96xf32> to vector<2x32xf32>
    %501 = vector.extract_strided_slice %478 {offsets = [0, 96], sizes = [2, 32], strides = [1, 1]} : vector<2x128xf32> to vector<2x32xf32>
    %502 = math.tanh %501 : vector<2x32xf32>
    %503 = arith.mulf %500, %502 : vector<2x32xf32>
    %504 = arith.addf %499, %503 : vector<2x32xf32>
    %505 = vector.extract_strided_slice %484 {offsets = [0, 64], sizes = [2, 32], strides = [1, 1]} : vector<2x96xf32> to vector<2x32xf32>
    %506 = math.tanh %497 : vector<2x32xf32>
    %507 = arith.mulf %505, %506 : vector<2x32xf32>
    %508 = vector.extract_strided_slice %490 {offsets = [0, 64], sizes = [2, 32], strides = [1, 1]} : vector<2x96xf32> to vector<2x32xf32>
    %509 = math.tanh %504 : vector<2x32xf32>
    %510 = arith.mulf %508, %509 : vector<2x32xf32>
    %511 = arith.index_cast %c0_i32_129 : i32 to index
    %c0_138 = arith.constant 0 : index
    %c0_139 = arith.constant 0 : index
    %512 = vector.load %arg14[%511, %c0_138, %c0_139] : memref<8x2x32xf32, #tpu.memory_space<vmem>>, vector<1x2x32xf32>
    %513 = vector.shape_cast %512 : vector<1x2x32xf32> to vector<2x32xf32>
    %514 = vector.shape_cast %507 : vector<2x32xf32> to vector<1x2x32xf32>
    tpu.vector_store %arg14[%511, %c0_138, %c0_139], %514 {strides = array<i32>} : memref<8x2x32xf32, #tpu.memory_space<vmem>>, vector<1x2x32xf32>,
    %515 = arith.index_cast %466 : i32 to index
    %c0_140 = arith.constant 0 : index
    %c0_141 = arith.constant 0 : index
    %516 = vector.load %arg15[%515, %c0_140, %c0_141] : memref<8x2x32xf32, #tpu.memory_space<vmem>>, vector<1x2x32xf32>
    %517 = vector.shape_cast %516 : vector<1x2x32xf32> to vector<2x32xf32>
    %518 = vector.shape_cast %510 : vector<2x32xf32> to vector<1x2x32xf32>
    tpu.vector_store %arg15[%515, %c0_140, %c0_141], %518 {strides = array<i32>} : memref<8x2x32xf32, #tpu.memory_space<vmem>>, vector<1x2x32xf32>,
    %519 = tpu.concatenate %507, %510 in 1 : vector<2x32xf32>, vector<2x32xf32> -> vector<2x64xf32>
    %c1_i32_142 = arith.constant 1 : i32
    %c7_i32_143 = arith.constant 7 : i32
    %520 = arith.subi %c7_i32_143, %c1_i32_142 : i32
    %521 = arith.truncf %519 : vector<2x64xf32> to vector<2x64xbf16>
    %cst_144 = arith.constant dense<0.000000e+00> : vector<2x256xf32>
    %522 = tpu.matmul %521, %462, %cst_144 {dimension_numbers = #tpu.dot_dimension_numbers<[1], [0], [0], [1], [0, 0, 1, 1], [], []>} : vector<2x64xbf16>, vector<64x256xbf16>, vector<2x256xf32> -> vector<2x256xf32>
    %523 = arith.index_cast %c1_i32_142 : i32 to index
    %c0_145 = arith.constant 0 : index
    %c0_146 = arith.constant 0 : index
    %524 = vector.load %arg11[%523, %c0_145, %c0_146] : memref<8x2x256xf32, #tpu.memory_space<vmem>>, vector<1x2x128xf32>
    %525 = vector.shape_cast %524 : vector<1x2x128xf32> to vector<2x128xf32>
    %526 = vector.extract_strided_slice %522 {offsets = [0, 0], sizes = [2, 128], strides = [1, 1]} : vector<2x256xf32> to vector<2x128xf32>
    %527 = arith.addf %525, %526 : vector<2x128xf32>
    %528 = arith.index_cast %520 : i32 to index
    %c0_147 = arith.constant 0 : index
    %c128_148 = arith.constant 128 : index
    %529 = vector.load %arg11[%528, %c0_147, %c128_148] : memref<8x2x256xf32, #tpu.memory_space<vmem>>, vector<1x2x128xf32>
    %530 = vector.shape_cast %529 : vector<1x2x128xf32> to vector<2x128xf32>
    %531 = vector.extract_strided_slice %522 {offsets = [0, 128], sizes = [2, 128], strides = [1, 1]} : vector<2x256xf32> to vector<2x128xf32>
    %532 = arith.addf %530, %531 : vector<2x128xf32>
    %533 = vector.extract_strided_slice %527 {offsets = [0, 0], sizes = [2, 96], strides = [1, 1]} : vector<2x128xf32> to vector<2x96xf32>
    %534 = arith.negf %533 : vector<2x96xf32>
    %535 = math.exp %534 : vector<2x96xf32>
    %cst_149 = arith.constant 1.000000e+00 : f32
    %536 = vector.broadcast %cst_149 : f32 to vector<2x96xf32>
    %537 = arith.addf %536, %535 : vector<2x96xf32>
    %538 = arith.divf %536, %537 : vector<2x96xf32>
    %539 = vector.extract_strided_slice %532 {offsets = [0, 0], sizes = [2, 96], strides = [1, 1]} : vector<2x128xf32> to vector<2x96xf32>
    %540 = arith.negf %539 : vector<2x96xf32>
    %541 = math.exp %540 : vector<2x96xf32>
    %cst_150 = arith.constant 1.000000e+00 : f32
    %542 = vector.broadcast %cst_150 : f32 to vector<2x96xf32>
    %543 = arith.addf %542, %541 : vector<2x96xf32>
    %544 = arith.divf %542, %543 : vector<2x96xf32>
    %545 = vector.extract_strided_slice %538 {offsets = [0, 32], sizes = [2, 32], strides = [1, 1]} : vector<2x96xf32> to vector<2x32xf32>
    %546 = arith.mulf %545, %497 : vector<2x32xf32>
    %547 = vector.extract_strided_slice %538 {offsets = [0, 0], sizes = [2, 32], strides = [1, 1]} : vector<2x96xf32> to vector<2x32xf32>
    %548 = vector.extract_strided_slice %527 {offsets = [0, 96], sizes = [2, 32], strides = [1, 1]} : vector<2x128xf32> to vector<2x32xf32>
    %549 = math.tanh %548 : vector<2x32xf32>
    %550 = arith.mulf %547, %549 : vector<2x32xf32>
    %551 = arith.addf %546, %550 : vector<2x32xf32>
    %552 = vector.extract_strided_slice %544 {offsets = [0, 32], sizes = [2, 32], strides = [1, 1]} : vector<2x96xf32> to vector<2x32xf32>
    %553 = arith.mulf %552, %504 : vector<2x32xf32>
    %554 = vector.extract_strided_slice %544 {offsets = [0, 0], sizes = [2, 32], strides = [1, 1]} : vector<2x96xf32> to vector<2x32xf32>
    %555 = vector.extract_strided_slice %532 {offsets = [0, 96], sizes = [2, 32], strides = [1, 1]} : vector<2x128xf32> to vector<2x32xf32>
    %556 = math.tanh %555 : vector<2x32xf32>
    %557 = arith.mulf %554, %556 : vector<2x32xf32>
    %558 = arith.addf %553, %557 : vector<2x32xf32>
    %559 = vector.extract_strided_slice %538 {offsets = [0, 64], sizes = [2, 32], strides = [1, 1]} : vector<2x96xf32> to vector<2x32xf32>
    %560 = math.tanh %551 : vector<2x32xf32>
    %561 = arith.mulf %559, %560 : vector<2x32xf32>
    %562 = vector.extract_strided_slice %544 {offsets = [0, 64], sizes = [2, 32], strides = [1, 1]} : vector<2x96xf32> to vector<2x32xf32>
    %563 = math.tanh %558 : vector<2x32xf32>
    %564 = arith.mulf %562, %563 : vector<2x32xf32>
    %565 = arith.index_cast %c1_i32_142 : i32 to index
    %c0_151 = arith.constant 0 : index
    %c0_152 = arith.constant 0 : index
    %566 = vector.load %arg14[%565, %c0_151, %c0_152] : memref<8x2x32xf32, #tpu.memory_space<vmem>>, vector<1x2x32xf32>
    %567 = vector.shape_cast %566 : vector<1x2x32xf32> to vector<2x32xf32>
    %568 = vector.shape_cast %561 : vector<2x32xf32> to vector<1x2x32xf32>
    tpu.vector_store %arg14[%565, %c0_151, %c0_152], %568 {strides = array<i32>} : memref<8x2x32xf32, #tpu.memory_space<vmem>>, vector<1x2x32xf32>,
    %569 = arith.index_cast %520 : i32 to index
    %c0_153 = arith.constant 0 : index
    %c0_154 = arith.constant 0 : index
    %570 = vector.load %arg15[%569, %c0_153, %c0_154] : memref<8x2x32xf32, #tpu.memory_space<vmem>>, vector<1x2x32xf32>
    %571 = vector.shape_cast %570 : vector<1x2x32xf32> to vector<2x32xf32>
    %572 = vector.shape_cast %564 : vector<2x32xf32> to vector<1x2x32xf32>
    tpu.vector_store %arg15[%569, %c0_153, %c0_154], %572 {strides = array<i32>} : memref<8x2x32xf32, #tpu.memory_space<vmem>>, vector<1x2x32xf32>,
    %573 = tpu.concatenate %561, %564 in 1 : vector<2x32xf32>, vector<2x32xf32> -> vector<2x64xf32>
    %c2_i32_155 = arith.constant 2 : i32
    %c7_i32_156 = arith.constant 7 : i32
    %574 = arith.subi %c7_i32_156, %c2_i32_155 : i32
    %575 = arith.truncf %573 : vector<2x64xf32> to vector<2x64xbf16>
    %cst_157 = arith.constant dense<0.000000e+00> : vector<2x256xf32>
    %576 = tpu.matmul %575, %462, %cst_157 {dimension_numbers = #tpu.dot_dimension_numbers<[1], [0], [0], [1], [0, 0, 1, 1], [], []>} : vector<2x64xbf16>, vector<64x256xbf16>, vector<2x256xf32> -> vector<2x256xf32>
    %577 = arith.index_cast %c2_i32_155 : i32 to index
    %c0_158 = arith.constant 0 : index
    %c0_159 = arith.constant 0 : index
    %578 = vector.load %arg11[%577, %c0_158, %c0_159] : memref<8x2x256xf32, #tpu.memory_space<vmem>>, vector<1x2x128xf32>
    %579 = vector.shape_cast %578 : vector<1x2x128xf32> to vector<2x128xf32>
    %580 = vector.extract_strided_slice %576 {offsets = [0, 0], sizes = [2, 128], strides = [1, 1]} : vector<2x256xf32> to vector<2x128xf32>
    %581 = arith.addf %579, %580 : vector<2x128xf32>
    %582 = arith.index_cast %574 : i32 to index
    %c0_160 = arith.constant 0 : index
    %c128_161 = arith.constant 128 : index
    %583 = vector.load %arg11[%582, %c0_160, %c128_161] : memref<8x2x256xf32, #tpu.memory_space<vmem>>, vector<1x2x128xf32>
    %584 = vector.shape_cast %583 : vector<1x2x128xf32> to vector<2x128xf32>
    %585 = vector.extract_strided_slice %576 {offsets = [0, 128], sizes = [2, 128], strides = [1, 1]} : vector<2x256xf32> to vector<2x128xf32>
    %586 = arith.addf %584, %585 : vector<2x128xf32>
    %587 = vector.extract_strided_slice %581 {offsets = [0, 0], sizes = [2, 96], strides = [1, 1]} : vector<2x128xf32> to vector<2x96xf32>
    %588 = arith.negf %587 : vector<2x96xf32>
    %589 = math.exp %588 : vector<2x96xf32>
    %cst_162 = arith.constant 1.000000e+00 : f32
    %590 = vector.broadcast %cst_162 : f32 to vector<2x96xf32>
    %591 = arith.addf %590, %589 : vector<2x96xf32>
    %592 = arith.divf %590, %591 : vector<2x96xf32>
    %593 = vector.extract_strided_slice %586 {offsets = [0, 0], sizes = [2, 96], strides = [1, 1]} : vector<2x128xf32> to vector<2x96xf32>
    %594 = arith.negf %593 : vector<2x96xf32>
    %595 = math.exp %594 : vector<2x96xf32>
    %cst_163 = arith.constant 1.000000e+00 : f32
    %596 = vector.broadcast %cst_163 : f32 to vector<2x96xf32>
    %597 = arith.addf %596, %595 : vector<2x96xf32>
    %598 = arith.divf %596, %597 : vector<2x96xf32>
    %599 = vector.extract_strided_slice %592 {offsets = [0, 32], sizes = [2, 32], strides = [1, 1]} : vector<2x96xf32> to vector<2x32xf32>
    %600 = arith.mulf %599, %551 : vector<2x32xf32>
    %601 = vector.extract_strided_slice %592 {offsets = [0, 0], sizes = [2, 32], strides = [1, 1]} : vector<2x96xf32> to vector<2x32xf32>
    %602 = vector.extract_strided_slice %581 {offsets = [0, 96], sizes = [2, 32], strides = [1, 1]} : vector<2x128xf32> to vector<2x32xf32>
    %603 = math.tanh %602 : vector<2x32xf32>
    %604 = arith.mulf %601, %603 : vector<2x32xf32>
    %605 = arith.addf %600, %604 : vector<2x32xf32>
    %606 = vector.extract_strided_slice %598 {offsets = [0, 32], sizes = [2, 32], strides = [1, 1]} : vector<2x96xf32> to vector<2x32xf32>
    %607 = arith.mulf %606, %558 : vector<2x32xf32>
    %608 = vector.extract_strided_slice %598 {offsets = [0, 0], sizes = [2, 32], strides = [1, 1]} : vector<2x96xf32> to vector<2x32xf32>
    %609 = vector.extract_strided_slice %586 {offsets = [0, 96], sizes = [2, 32], strides = [1, 1]} : vector<2x128xf32> to vector<2x32xf32>
    %610 = math.tanh %609 : vector<2x32xf32>
    %611 = arith.mulf %608, %610 : vector<2x32xf32>
    %612 = arith.addf %607, %611 : vector<2x32xf32>
    %613 = vector.extract_strided_slice %592 {offsets = [0, 64], sizes = [2, 32], strides = [1, 1]} : vector<2x96xf32> to vector<2x32xf32>
    %614 = math.tanh %605 : vector<2x32xf32>
    %615 = arith.mulf %613, %614 : vector<2x32xf32>
    %616 = vector.extract_strided_slice %598 {offsets = [0, 64], sizes = [2, 32], strides = [1, 1]} : vector<2x96xf32> to vector<2x32xf32>
    %617 = math.tanh %612 : vector<2x32xf32>
    %618 = arith.mulf %616, %617 : vector<2x32xf32>
    %619 = arith.index_cast %c2_i32_155 : i32 to index
    %c0_164 = arith.constant 0 : index
    %c0_165 = arith.constant 0 : index
    %620 = vector.load %arg14[%619, %c0_164, %c0_165] : memref<8x2x32xf32, #tpu.memory_space<vmem>>, vector<1x2x32xf32>
    %621 = vector.shape_cast %620 : vector<1x2x32xf32> to vector<2x32xf32>
    %622 = vector.shape_cast %615 : vector<2x32xf32> to vector<1x2x32xf32>
    tpu.vector_store %arg14[%619, %c0_164, %c0_165], %622 {strides = array<i32>} : memref<8x2x32xf32, #tpu.memory_space<vmem>>, vector<1x2x32xf32>,
    %623 = arith.index_cast %574 : i32 to index
    %c0_166 = arith.constant 0 : index
    %c0_167 = arith.constant 0 : index
    %624 = vector.load %arg15[%623, %c0_166, %c0_167] : memref<8x2x32xf32, #tpu.memory_space<vmem>>, vector<1x2x32xf32>
    %625 = vector.shape_cast %624 : vector<1x2x32xf32> to vector<2x32xf32>
    %626 = vector.shape_cast %618 : vector<2x32xf32> to vector<1x2x32xf32>
    tpu.vector_store %arg15[%623, %c0_166, %c0_167], %626 {strides = array<i32>} : memref<8x2x32xf32, #tpu.memory_space<vmem>>, vector<1x2x32xf32>,
    %627 = tpu.concatenate %615, %618 in 1 : vector<2x32xf32>, vector<2x32xf32> -> vector<2x64xf32>
    %c3_i32_168 = arith.constant 3 : i32
    %c7_i32_169 = arith.constant 7 : i32
    %628 = arith.subi %c7_i32_169, %c3_i32_168 : i32
    %629 = arith.truncf %627 : vector<2x64xf32> to vector<2x64xbf16>
    %cst_170 = arith.constant dense<0.000000e+00> : vector<2x256xf32>
    %630 = tpu.matmul %629, %462, %cst_170 {dimension_numbers = #tpu.dot_dimension_numbers<[1], [0], [0], [1], [0, 0, 1, 1], [], []>} : vector<2x64xbf16>, vector<64x256xbf16>, vector<2x256xf32> -> vector<2x256xf32>
    %631 = arith.index_cast %c3_i32_168 : i32 to index
    %c0_171 = arith.constant 0 : index
    %c0_172 = arith.constant 0 : index
    %632 = vector.load %arg11[%631, %c0_171, %c0_172] : memref<8x2x256xf32, #tpu.memory_space<vmem>>, vector<1x2x128xf32>
    %633 = vector.shape_cast %632 : vector<1x2x128xf32> to vector<2x128xf32>
    %634 = vector.extract_strided_slice %630 {offsets = [0, 0], sizes = [2, 128], strides = [1, 1]} : vector<2x256xf32> to vector<2x128xf32>
    %635 = arith.addf %633, %634 : vector<2x128xf32>
    %636 = arith.index_cast %628 : i32 to index
    %c0_173 = arith.constant 0 : index
    %c128_174 = arith.constant 128 : index
    %637 = vector.load %arg11[%636, %c0_173, %c128_174] : memref<8x2x256xf32, #tpu.memory_space<vmem>>, vector<1x2x128xf32>
    %638 = vector.shape_cast %637 : vector<1x2x128xf32> to vector<2x128xf32>
    %639 = vector.extract_strided_slice %630 {offsets = [0, 128], sizes = [2, 128], strides = [1, 1]} : vector<2x256xf32> to vector<2x128xf32>
    %640 = arith.addf %638, %639 : vector<2x128xf32>
    %641 = vector.extract_strided_slice %635 {offsets = [0, 0], sizes = [2, 96], strides = [1, 1]} : vector<2x128xf32> to vector<2x96xf32>
    %642 = arith.negf %641 : vector<2x96xf32>
    %643 = math.exp %642 : vector<2x96xf32>
    %cst_175 = arith.constant 1.000000e+00 : f32
    %644 = vector.broadcast %cst_175 : f32 to vector<2x96xf32>
    %645 = arith.addf %644, %643 : vector<2x96xf32>
    %646 = arith.divf %644, %645 : vector<2x96xf32>
    %647 = vector.extract_strided_slice %640 {offsets = [0, 0], sizes = [2, 96], strides = [1, 1]} : vector<2x128xf32> to vector<2x96xf32>
    %648 = arith.negf %647 : vector<2x96xf32>
    %649 = math.exp %648 : vector<2x96xf32>
    %cst_176 = arith.constant 1.000000e+00 : f32
    %650 = vector.broadcast %cst_176 : f32 to vector<2x96xf32>
    %651 = arith.addf %650, %649 : vector<2x96xf32>
    %652 = arith.divf %650, %651 : vector<2x96xf32>
    %653 = vector.extract_strided_slice %646 {offsets = [0, 32], sizes = [2, 32], strides = [1, 1]} : vector<2x96xf32> to vector<2x32xf32>
    %654 = arith.mulf %653, %605 : vector<2x32xf32>
    %655 = vector.extract_strided_slice %646 {offsets = [0, 0], sizes = [2, 32], strides = [1, 1]} : vector<2x96xf32> to vector<2x32xf32>
    %656 = vector.extract_strided_slice %635 {offsets = [0, 96], sizes = [2, 32], strides = [1, 1]} : vector<2x128xf32> to vector<2x32xf32>
    %657 = math.tanh %656 : vector<2x32xf32>
    %658 = arith.mulf %655, %657 : vector<2x32xf32>
    %659 = arith.addf %654, %658 : vector<2x32xf32>
    %660 = vector.extract_strided_slice %652 {offsets = [0, 32], sizes = [2, 32], strides = [1, 1]} : vector<2x96xf32> to vector<2x32xf32>
    %661 = arith.mulf %660, %612 : vector<2x32xf32>
    %662 = vector.extract_strided_slice %652 {offsets = [0, 0], sizes = [2, 32], strides = [1, 1]} : vector<2x96xf32> to vector<2x32xf32>
    %663 = vector.extract_strided_slice %640 {offsets = [0, 96], sizes = [2, 32], strides = [1, 1]} : vector<2x128xf32> to vector<2x32xf32>
    %664 = math.tanh %663 : vector<2x32xf32>
    %665 = arith.mulf %662, %664 : vector<2x32xf32>
    %666 = arith.addf %661, %665 : vector<2x32xf32>
    %667 = vector.extract_strided_slice %646 {offsets = [0, 64], sizes = [2, 32], strides = [1, 1]} : vector<2x96xf32> to vector<2x32xf32>
    %668 = math.tanh %659 : vector<2x32xf32>
    %669 = arith.mulf %667, %668 : vector<2x32xf32>
    %670 = vector.extract_strided_slice %652 {offsets = [0, 64], sizes = [2, 32], strides = [1, 1]} : vector<2x96xf32> to vector<2x32xf32>
    %671 = math.tanh %666 : vector<2x32xf32>
    %672 = arith.mulf %670, %671 : vector<2x32xf32>
    %673 = arith.index_cast %c3_i32_168 : i32 to index
    %c0_177 = arith.constant 0 : index
    %c0_178 = arith.constant 0 : index
    %674 = vector.load %arg14[%673, %c0_177, %c0_178] : memref<8x2x32xf32, #tpu.memory_space<vmem>>, vector<1x2x32xf32>
    %675 = vector.shape_cast %674 : vector<1x2x32xf32> to vector<2x32xf32>
    %676 = vector.shape_cast %669 : vector<2x32xf32> to vector<1x2x32xf32>
    tpu.vector_store %arg14[%673, %c0_177, %c0_178], %676 {strides = array<i32>} : memref<8x2x32xf32, #tpu.memory_space<vmem>>, vector<1x2x32xf32>,
    %677 = arith.index_cast %628 : i32 to index
    %c0_179 = arith.constant 0 : index
    %c0_180 = arith.constant 0 : index
    %678 = vector.load %arg15[%677, %c0_179, %c0_180] : memref<8x2x32xf32, #tpu.memory_space<vmem>>, vector<1x2x32xf32>
    %679 = vector.shape_cast %678 : vector<1x2x32xf32> to vector<2x32xf32>
    %680 = vector.shape_cast %672 : vector<2x32xf32> to vector<1x2x32xf32>
    tpu.vector_store %arg15[%677, %c0_179, %c0_180], %680 {strides = array<i32>} : memref<8x2x32xf32, #tpu.memory_space<vmem>>, vector<1x2x32xf32>,
    %681 = tpu.concatenate %669, %672 in 1 : vector<2x32xf32>, vector<2x32xf32> -> vector<2x64xf32>
    %c4_i32_181 = arith.constant 4 : i32
    %c7_i32_182 = arith.constant 7 : i32
    %682 = arith.subi %c7_i32_182, %c4_i32_181 : i32
    %683 = arith.truncf %681 : vector<2x64xf32> to vector<2x64xbf16>
    %cst_183 = arith.constant dense<0.000000e+00> : vector<2x256xf32>
    %684 = tpu.matmul %683, %462, %cst_183 {dimension_numbers = #tpu.dot_dimension_numbers<[1], [0], [0], [1], [0, 0, 1, 1], [], []>} : vector<2x64xbf16>, vector<64x256xbf16>, vector<2x256xf32> -> vector<2x256xf32>
    %685 = arith.index_cast %c4_i32_181 : i32 to index
    %c0_184 = arith.constant 0 : index
    %c0_185 = arith.constant 0 : index
    %686 = vector.load %arg11[%685, %c0_184, %c0_185] : memref<8x2x256xf32, #tpu.memory_space<vmem>>, vector<1x2x128xf32>
    %687 = vector.shape_cast %686 : vector<1x2x128xf32> to vector<2x128xf32>
    %688 = vector.extract_strided_slice %684 {offsets = [0, 0], sizes = [2, 128], strides = [1, 1]} : vector<2x256xf32> to vector<2x128xf32>
    %689 = arith.addf %687, %688 : vector<2x128xf32>
    %690 = arith.index_cast %682 : i32 to index
    %c0_186 = arith.constant 0 : index
    %c128_187 = arith.constant 128 : index
    %691 = vector.load %arg11[%690, %c0_186, %c128_187] : memref<8x2x256xf32, #tpu.memory_space<vmem>>, vector<1x2x128xf32>
    %692 = vector.shape_cast %691 : vector<1x2x128xf32> to vector<2x128xf32>
    %693 = vector.extract_strided_slice %684 {offsets = [0, 128], sizes = [2, 128], strides = [1, 1]} : vector<2x256xf32> to vector<2x128xf32>
    %694 = arith.addf %692, %693 : vector<2x128xf32>
    %695 = vector.extract_strided_slice %689 {offsets = [0, 0], sizes = [2, 96], strides = [1, 1]} : vector<2x128xf32> to vector<2x96xf32>
    %696 = arith.negf %695 : vector<2x96xf32>
    %697 = math.exp %696 : vector<2x96xf32>
    %cst_188 = arith.constant 1.000000e+00 : f32
    %698 = vector.broadcast %cst_188 : f32 to vector<2x96xf32>
    %699 = arith.addf %698, %697 : vector<2x96xf32>
    %700 = arith.divf %698, %699 : vector<2x96xf32>
    %701 = vector.extract_strided_slice %694 {offsets = [0, 0], sizes = [2, 96], strides = [1, 1]} : vector<2x128xf32> to vector<2x96xf32>
    %702 = arith.negf %701 : vector<2x96xf32>
    %703 = math.exp %702 : vector<2x96xf32>
    %cst_189 = arith.constant 1.000000e+00 : f32
    %704 = vector.broadcast %cst_189 : f32 to vector<2x96xf32>
    %705 = arith.addf %704, %703 : vector<2x96xf32>
    %706 = arith.divf %704, %705 : vector<2x96xf32>
    %707 = vector.extract_strided_slice %700 {offsets = [0, 32], sizes = [2, 32], strides = [1, 1]} : vector<2x96xf32> to vector<2x32xf32>
    %708 = arith.mulf %707, %659 : vector<2x32xf32>
    %709 = vector.extract_strided_slice %700 {offsets = [0, 0], sizes = [2, 32], strides = [1, 1]} : vector<2x96xf32> to vector<2x32xf32>
    %710 = vector.extract_strided_slice %689 {offsets = [0, 96], sizes = [2, 32], strides = [1, 1]} : vector<2x128xf32> to vector<2x32xf32>
    %711 = math.tanh %710 : vector<2x32xf32>
    %712 = arith.mulf %709, %711 : vector<2x32xf32>
    %713 = arith.addf %708, %712 : vector<2x32xf32>
    %714 = vector.extract_strided_slice %706 {offsets = [0, 32], sizes = [2, 32], strides = [1, 1]} : vector<2x96xf32> to vector<2x32xf32>
    %715 = arith.mulf %714, %666 : vector<2x32xf32>
    %716 = vector.extract_strided_slice %706 {offsets = [0, 0], sizes = [2, 32], strides = [1, 1]} : vector<2x96xf32> to vector<2x32xf32>
    %717 = vector.extract_strided_slice %694 {offsets = [0, 96], sizes = [2, 32], strides = [1, 1]} : vector<2x128xf32> to vector<2x32xf32>
    %718 = math.tanh %717 : vector<2x32xf32>
    %719 = arith.mulf %716, %718 : vector<2x32xf32>
    %720 = arith.addf %715, %719 : vector<2x32xf32>
    %721 = vector.extract_strided_slice %700 {offsets = [0, 64], sizes = [2, 32], strides = [1, 1]} : vector<2x96xf32> to vector<2x32xf32>
    %722 = math.tanh %713 : vector<2x32xf32>
    %723 = arith.mulf %721, %722 : vector<2x32xf32>
    %724 = vector.extract_strided_slice %706 {offsets = [0, 64], sizes = [2, 32], strides = [1, 1]} : vector<2x96xf32> to vector<2x32xf32>
    %725 = math.tanh %720 : vector<2x32xf32>
    %726 = arith.mulf %724, %725 : vector<2x32xf32>
    %727 = arith.index_cast %c4_i32_181 : i32 to index
    %c0_190 = arith.constant 0 : index
    %c0_191 = arith.constant 0 : index
    %728 = vector.load %arg14[%727, %c0_190, %c0_191] : memref<8x2x32xf32, #tpu.memory_space<vmem>>, vector<1x2x32xf32>
    %729 = vector.shape_cast %728 : vector<1x2x32xf32> to vector<2x32xf32>
    %730 = vector.shape_cast %723 : vector<2x32xf32> to vector<1x2x32xf32>
    tpu.vector_store %arg14[%727, %c0_190, %c0_191], %730 {strides = array<i32>} : memref<8x2x32xf32, #tpu.memory_space<vmem>>, vector<1x2x32xf32>,
    %731 = arith.index_cast %682 : i32 to index
    %c0_192 = arith.constant 0 : index
    %c0_193 = arith.constant 0 : index
    %732 = vector.load %arg15[%731, %c0_192, %c0_193] : memref<8x2x32xf32, #tpu.memory_space<vmem>>, vector<1x2x32xf32>
    %733 = vector.shape_cast %732 : vector<1x2x32xf32> to vector<2x32xf32>
    %734 = vector.shape_cast %726 : vector<2x32xf32> to vector<1x2x32xf32>
    tpu.vector_store %arg15[%731, %c0_192, %c0_193], %734 {strides = array<i32>} : memref<8x2x32xf32, #tpu.memory_space<vmem>>, vector<1x2x32xf32>,
    %735 = tpu.concatenate %723, %726 in 1 : vector<2x32xf32>, vector<2x32xf32> -> vector<2x64xf32>
    %c5_i32_194 = arith.constant 5 : i32
    %c7_i32_195 = arith.constant 7 : i32
    %736 = arith.subi %c7_i32_195, %c5_i32_194 : i32
    %737 = arith.truncf %735 : vector<2x64xf32> to vector<2x64xbf16>
    %cst_196 = arith.constant dense<0.000000e+00> : vector<2x256xf32>
    %738 = tpu.matmul %737, %462, %cst_196 {dimension_numbers = #tpu.dot_dimension_numbers<[1], [0], [0], [1], [0, 0, 1, 1], [], []>} : vector<2x64xbf16>, vector<64x256xbf16>, vector<2x256xf32> -> vector<2x256xf32>
    %739 = arith.index_cast %c5_i32_194 : i32 to index
    %c0_197 = arith.constant 0 : index
    %c0_198 = arith.constant 0 : index
    %740 = vector.load %arg11[%739, %c0_197, %c0_198] : memref<8x2x256xf32, #tpu.memory_space<vmem>>, vector<1x2x128xf32>
    %741 = vector.shape_cast %740 : vector<1x2x128xf32> to vector<2x128xf32>
    %742 = vector.extract_strided_slice %738 {offsets = [0, 0], sizes = [2, 128], strides = [1, 1]} : vector<2x256xf32> to vector<2x128xf32>
    %743 = arith.addf %741, %742 : vector<2x128xf32>
    %744 = arith.index_cast %736 : i32 to index
    %c0_199 = arith.constant 0 : index
    %c128_200 = arith.constant 128 : index
    %745 = vector.load %arg11[%744, %c0_199, %c128_200] : memref<8x2x256xf32, #tpu.memory_space<vmem>>, vector<1x2x128xf32>
    %746 = vector.shape_cast %745 : vector<1x2x128xf32> to vector<2x128xf32>
    %747 = vector.extract_strided_slice %738 {offsets = [0, 128], sizes = [2, 128], strides = [1, 1]} : vector<2x256xf32> to vector<2x128xf32>
    %748 = arith.addf %746, %747 : vector<2x128xf32>
    %749 = vector.extract_strided_slice %743 {offsets = [0, 0], sizes = [2, 96], strides = [1, 1]} : vector<2x128xf32> to vector<2x96xf32>
    %750 = arith.negf %749 : vector<2x96xf32>
    %751 = math.exp %750 : vector<2x96xf32>
    %cst_201 = arith.constant 1.000000e+00 : f32
    %752 = vector.broadcast %cst_201 : f32 to vector<2x96xf32>
    %753 = arith.addf %752, %751 : vector<2x96xf32>
    %754 = arith.divf %752, %753 : vector<2x96xf32>
    %755 = vector.extract_strided_slice %748 {offsets = [0, 0], sizes = [2, 96], strides = [1, 1]} : vector<2x128xf32> to vector<2x96xf32>
    %756 = arith.negf %755 : vector<2x96xf32>
    %757 = math.exp %756 : vector<2x96xf32>
    %cst_202 = arith.constant 1.000000e+00 : f32
    %758 = vector.broadcast %cst_202 : f32 to vector<2x96xf32>
    %759 = arith.addf %758, %757 : vector<2x96xf32>
    %760 = arith.divf %758, %759 : vector<2x96xf32>
    %761 = vector.extract_strided_slice %754 {offsets = [0, 32], sizes = [2, 32], strides = [1, 1]} : vector<2x96xf32> to vector<2x32xf32>
    %762 = arith.mulf %761, %713 : vector<2x32xf32>
    %763 = vector.extract_strided_slice %754 {offsets = [0, 0], sizes = [2, 32], strides = [1, 1]} : vector<2x96xf32> to vector<2x32xf32>
    %764 = vector.extract_strided_slice %743 {offsets = [0, 96], sizes = [2, 32], strides = [1, 1]} : vector<2x128xf32> to vector<2x32xf32>
    %765 = math.tanh %764 : vector<2x32xf32>
    %766 = arith.mulf %763, %765 : vector<2x32xf32>
    %767 = arith.addf %762, %766 : vector<2x32xf32>
    %768 = vector.extract_strided_slice %760 {offsets = [0, 32], sizes = [2, 32], strides = [1, 1]} : vector<2x96xf32> to vector<2x32xf32>
    %769 = arith.mulf %768, %720 : vector<2x32xf32>
    %770 = vector.extract_strided_slice %760 {offsets = [0, 0], sizes = [2, 32], strides = [1, 1]} : vector<2x96xf32> to vector<2x32xf32>
    %771 = vector.extract_strided_slice %748 {offsets = [0, 96], sizes = [2, 32], strides = [1, 1]} : vector<2x128xf32> to vector<2x32xf32>
    %772 = math.tanh %771 : vector<2x32xf32>
    %773 = arith.mulf %770, %772 : vector<2x32xf32>
    %774 = arith.addf %769, %773 : vector<2x32xf32>
    %775 = vector.extract_strided_slice %754 {offsets = [0, 64], sizes = [2, 32], strides = [1, 1]} : vector<2x96xf32> to vector<2x32xf32>
    %776 = math.tanh %767 : vector<2x32xf32>
    %777 = arith.mulf %775, %776 : vector<2x32xf32>
    %778 = vector.extract_strided_slice %760 {offsets = [0, 64], sizes = [2, 32], strides = [1, 1]} : vector<2x96xf32> to vector<2x32xf32>
    %779 = math.tanh %774 : vector<2x32xf32>
    %780 = arith.mulf %778, %779 : vector<2x32xf32>
    %781 = arith.index_cast %c5_i32_194 : i32 to index
    %c0_203 = arith.constant 0 : index
    %c0_204 = arith.constant 0 : index
    %782 = vector.load %arg14[%781, %c0_203, %c0_204] : memref<8x2x32xf32, #tpu.memory_space<vmem>>, vector<1x2x32xf32>
    %783 = vector.shape_cast %782 : vector<1x2x32xf32> to vector<2x32xf32>
    %784 = vector.shape_cast %777 : vector<2x32xf32> to vector<1x2x32xf32>
    tpu.vector_store %arg14[%781, %c0_203, %c0_204], %784 {strides = array<i32>} : memref<8x2x32xf32, #tpu.memory_space<vmem>>, vector<1x2x32xf32>,
    %785 = arith.index_cast %736 : i32 to index
    %c0_205 = arith.constant 0 : index
    %c0_206 = arith.constant 0 : index
    %786 = vector.load %arg15[%785, %c0_205, %c0_206] : memref<8x2x32xf32, #tpu.memory_space<vmem>>, vector<1x2x32xf32>
    %787 = vector.shape_cast %786 : vector<1x2x32xf32> to vector<2x32xf32>
    %788 = vector.shape_cast %780 : vector<2x32xf32> to vector<1x2x32xf32>
    tpu.vector_store %arg15[%785, %c0_205, %c0_206], %788 {strides = array<i32>} : memref<8x2x32xf32, #tpu.memory_space<vmem>>, vector<1x2x32xf32>,
    %789 = tpu.concatenate %777, %780 in 1 : vector<2x32xf32>, vector<2x32xf32> -> vector<2x64xf32>
    %c6_i32_207 = arith.constant 6 : i32
    %c7_i32_208 = arith.constant 7 : i32
    %790 = arith.subi %c7_i32_208, %c6_i32_207 : i32
    %791 = arith.truncf %789 : vector<2x64xf32> to vector<2x64xbf16>
    %cst_209 = arith.constant dense<0.000000e+00> : vector<2x256xf32>
    %792 = tpu.matmul %791, %462, %cst_209 {dimension_numbers = #tpu.dot_dimension_numbers<[1], [0], [0], [1], [0, 0, 1, 1], [], []>} : vector<2x64xbf16>, vector<64x256xbf16>, vector<2x256xf32> -> vector<2x256xf32>
    %793 = arith.index_cast %c6_i32_207 : i32 to index
    %c0_210 = arith.constant 0 : index
    %c0_211 = arith.constant 0 : index
    %794 = vector.load %arg11[%793, %c0_210, %c0_211] : memref<8x2x256xf32, #tpu.memory_space<vmem>>, vector<1x2x128xf32>
    %795 = vector.shape_cast %794 : vector<1x2x128xf32> to vector<2x128xf32>
    %796 = vector.extract_strided_slice %792 {offsets = [0, 0], sizes = [2, 128], strides = [1, 1]} : vector<2x256xf32> to vector<2x128xf32>
    %797 = arith.addf %795, %796 : vector<2x128xf32>
    %798 = arith.index_cast %790 : i32 to index
    %c0_212 = arith.constant 0 : index
    %c128_213 = arith.constant 128 : index
    %799 = vector.load %arg11[%798, %c0_212, %c128_213] : memref<8x2x256xf32, #tpu.memory_space<vmem>>, vector<1x2x128xf32>
    %800 = vector.shape_cast %799 : vector<1x2x128xf32> to vector<2x128xf32>
    %801 = vector.extract_strided_slice %792 {offsets = [0, 128], sizes = [2, 128], strides = [1, 1]} : vector<2x256xf32> to vector<2x128xf32>
    %802 = arith.addf %800, %801 : vector<2x128xf32>
    %803 = vector.extract_strided_slice %797 {offsets = [0, 0], sizes = [2, 96], strides = [1, 1]} : vector<2x128xf32> to vector<2x96xf32>
    %804 = arith.negf %803 : vector<2x96xf32>
    %805 = math.exp %804 : vector<2x96xf32>
    %cst_214 = arith.constant 1.000000e+00 : f32
    %806 = vector.broadcast %cst_214 : f32 to vector<2x96xf32>
    %807 = arith.addf %806, %805 : vector<2x96xf32>
    %808 = arith.divf %806, %807 : vector<2x96xf32>
    %809 = vector.extract_strided_slice %802 {offsets = [0, 0], sizes = [2, 96], strides = [1, 1]} : vector<2x128xf32> to vector<2x96xf32>
    %810 = arith.negf %809 : vector<2x96xf32>
    %811 = math.exp %810 : vector<2x96xf32>
    %cst_215 = arith.constant 1.000000e+00 : f32
    %812 = vector.broadcast %cst_215 : f32 to vector<2x96xf32>
    %813 = arith.addf %812, %811 : vector<2x96xf32>
    %814 = arith.divf %812, %813 : vector<2x96xf32>
    %815 = vector.extract_strided_slice %808 {offsets = [0, 32], sizes = [2, 32], strides = [1, 1]} : vector<2x96xf32> to vector<2x32xf32>
    %816 = arith.mulf %815, %767 : vector<2x32xf32>
    %817 = vector.extract_strided_slice %808 {offsets = [0, 0], sizes = [2, 32], strides = [1, 1]} : vector<2x96xf32> to vector<2x32xf32>
    %818 = vector.extract_strided_slice %797 {offsets = [0, 96], sizes = [2, 32], strides = [1, 1]} : vector<2x128xf32> to vector<2x32xf32>
    %819 = math.tanh %818 : vector<2x32xf32>
    %820 = arith.mulf %817, %819 : vector<2x32xf32>
    %821 = arith.addf %816, %820 : vector<2x32xf32>
    %822 = vector.extract_strided_slice %814 {offsets = [0, 32], sizes = [2, 32], strides = [1, 1]} : vector<2x96xf32> to vector<2x32xf32>
    %823 = arith.mulf %822, %774 : vector<2x32xf32>
    %824 = vector.extract_strided_slice %814 {offsets = [0, 0], sizes = [2, 32], strides = [1, 1]} : vector<2x96xf32> to vector<2x32xf32>
    %825 = vector.extract_strided_slice %802 {offsets = [0, 96], sizes = [2, 32], strides = [1, 1]} : vector<2x128xf32> to vector<2x32xf32>
    %826 = math.tanh %825 : vector<2x32xf32>
    %827 = arith.mulf %824, %826 : vector<2x32xf32>
    %828 = arith.addf %823, %827 : vector<2x32xf32>
    %829 = vector.extract_strided_slice %808 {offsets = [0, 64], sizes = [2, 32], strides = [1, 1]} : vector<2x96xf32> to vector<2x32xf32>
    %830 = math.tanh %821 : vector<2x32xf32>
    %831 = arith.mulf %829, %830 : vector<2x32xf32>
    %832 = vector.extract_strided_slice %814 {offsets = [0, 64], sizes = [2, 32], strides = [1, 1]} : vector<2x96xf32> to vector<2x32xf32>
    %833 = math.tanh %828 : vector<2x32xf32>
    %834 = arith.mulf %832, %833 : vector<2x32xf32>
    %835 = arith.index_cast %c6_i32_207 : i32 to index
    %c0_216 = arith.constant 0 : index
    %c0_217 = arith.constant 0 : index
    %836 = vector.load %arg14[%835, %c0_216, %c0_217] : memref<8x2x32xf32, #tpu.memory_space<vmem>>, vector<1x2x32xf32>
    %837 = vector.shape_cast %836 : vector<1x2x32xf32> to vector<2x32xf32>
    %838 = vector.shape_cast %831 : vector<2x32xf32> to vector<1x2x32xf32>
    tpu.vector_store %arg14[%835, %c0_216, %c0_217], %838 {strides = array<i32>} : memref<8x2x32xf32, #tpu.memory_space<vmem>>, vector<1x2x32xf32>,
    %839 = arith.index_cast %790 : i32 to index
    %c0_218 = arith.constant 0 : index
    %c0_219 = arith.constant 0 : index
    %840 = vector.load %arg15[%839, %c0_218, %c0_219] : memref<8x2x32xf32, #tpu.memory_space<vmem>>, vector<1x2x32xf32>
    %841 = vector.shape_cast %840 : vector<1x2x32xf32> to vector<2x32xf32>
    %842 = vector.shape_cast %834 : vector<2x32xf32> to vector<1x2x32xf32>
    tpu.vector_store %arg15[%839, %c0_218, %c0_219], %842 {strides = array<i32>} : memref<8x2x32xf32, #tpu.memory_space<vmem>>, vector<1x2x32xf32>,
    %843 = tpu.concatenate %831, %834 in 1 : vector<2x32xf32>, vector<2x32xf32> -> vector<2x64xf32>
    %c7_i32_220 = arith.constant 7 : i32
    %c7_i32_221 = arith.constant 7 : i32
    %844 = arith.subi %c7_i32_221, %c7_i32_220 : i32
    %845 = arith.truncf %843 : vector<2x64xf32> to vector<2x64xbf16>
    %cst_222 = arith.constant dense<0.000000e+00> : vector<2x256xf32>
    %846 = tpu.matmul %845, %462, %cst_222 {dimension_numbers = #tpu.dot_dimension_numbers<[1], [0], [0], [1], [0, 0, 1, 1], [], []>} : vector<2x64xbf16>, vector<64x256xbf16>, vector<2x256xf32> -> vector<2x256xf32>
    %847 = arith.index_cast %c7_i32_220 : i32 to index
    %c0_223 = arith.constant 0 : index
    %c0_224 = arith.constant 0 : index
    %848 = vector.load %arg11[%847, %c0_223, %c0_224] : memref<8x2x256xf32, #tpu.memory_space<vmem>>, vector<1x2x128xf32>
    %849 = vector.shape_cast %848 : vector<1x2x128xf32> to vector<2x128xf32>
    %850 = vector.extract_strided_slice %846 {offsets = [0, 0], sizes = [2, 128], strides = [1, 1]} : vector<2x256xf32> to vector<2x128xf32>
    %851 = arith.addf %849, %850 : vector<2x128xf32>
    %852 = arith.index_cast %844 : i32 to index
    %c0_225 = arith.constant 0 : index
    %c128_226 = arith.constant 128 : index
    %853 = vector.load %arg11[%852, %c0_225, %c128_226] : memref<8x2x256xf32, #tpu.memory_space<vmem>>, vector<1x2x128xf32>
    %854 = vector.shape_cast %853 : vector<1x2x128xf32> to vector<2x128xf32>
    %855 = vector.extract_strided_slice %846 {offsets = [0, 128], sizes = [2, 128], strides = [1, 1]} : vector<2x256xf32> to vector<2x128xf32>
    %856 = arith.addf %854, %855 : vector<2x128xf32>
    %857 = vector.extract_strided_slice %851 {offsets = [0, 0], sizes = [2, 96], strides = [1, 1]} : vector<2x128xf32> to vector<2x96xf32>
    %858 = arith.negf %857 : vector<2x96xf32>
    %859 = math.exp %858 : vector<2x96xf32>
    %cst_227 = arith.constant 1.000000e+00 : f32
    %860 = vector.broadcast %cst_227 : f32 to vector<2x96xf32>
    %861 = arith.addf %860, %859 : vector<2x96xf32>
    %862 = arith.divf %860, %861 : vector<2x96xf32>
    %863 = vector.extract_strided_slice %856 {offsets = [0, 0], sizes = [2, 96], strides = [1, 1]} : vector<2x128xf32> to vector<2x96xf32>
    %864 = arith.negf %863 : vector<2x96xf32>
    %865 = math.exp %864 : vector<2x96xf32>
    %cst_228 = arith.constant 1.000000e+00 : f32
    %866 = vector.broadcast %cst_228 : f32 to vector<2x96xf32>
    %867 = arith.addf %866, %865 : vector<2x96xf32>
    %868 = arith.divf %866, %867 : vector<2x96xf32>
    %869 = vector.extract_strided_slice %862 {offsets = [0, 32], sizes = [2, 32], strides = [1, 1]} : vector<2x96xf32> to vector<2x32xf32>
    %870 = arith.mulf %869, %821 : vector<2x32xf32>
    %871 = vector.extract_strided_slice %862 {offsets = [0, 0], sizes = [2, 32], strides = [1, 1]} : vector<2x96xf32> to vector<2x32xf32>
    %872 = vector.extract_strided_slice %851 {offsets = [0, 96], sizes = [2, 32], strides = [1, 1]} : vector<2x128xf32> to vector<2x32xf32>
    %873 = math.tanh %872 : vector<2x32xf32>
    %874 = arith.mulf %871, %873 : vector<2x32xf32>
    %875 = arith.addf %870, %874 : vector<2x32xf32>
    %876 = vector.extract_strided_slice %868 {offsets = [0, 32], sizes = [2, 32], strides = [1, 1]} : vector<2x96xf32> to vector<2x32xf32>
    %877 = arith.mulf %876, %828 : vector<2x32xf32>
    %878 = vector.extract_strided_slice %868 {offsets = [0, 0], sizes = [2, 32], strides = [1, 1]} : vector<2x96xf32> to vector<2x32xf32>
    %879 = vector.extract_strided_slice %856 {offsets = [0, 96], sizes = [2, 32], strides = [1, 1]} : vector<2x128xf32> to vector<2x32xf32>
    %880 = math.tanh %879 : vector<2x32xf32>
    %881 = arith.mulf %878, %880 : vector<2x32xf32>
    %882 = arith.addf %877, %881 : vector<2x32xf32>
    %883 = vector.extract_strided_slice %862 {offsets = [0, 64], sizes = [2, 32], strides = [1, 1]} : vector<2x96xf32> to vector<2x32xf32>
    %884 = math.tanh %875 : vector<2x32xf32>
    %885 = arith.mulf %883, %884 : vector<2x32xf32>
    %886 = vector.extract_strided_slice %868 {offsets = [0, 64], sizes = [2, 32], strides = [1, 1]} : vector<2x96xf32> to vector<2x32xf32>
    %887 = math.tanh %882 : vector<2x32xf32>
    %888 = arith.mulf %886, %887 : vector<2x32xf32>
    %889 = arith.index_cast %c7_i32_220 : i32 to index
    %c0_229 = arith.constant 0 : index
    %c0_230 = arith.constant 0 : index
    %890 = vector.load %arg14[%889, %c0_229, %c0_230] : memref<8x2x32xf32, #tpu.memory_space<vmem>>, vector<1x2x32xf32>
    %891 = vector.shape_cast %890 : vector<1x2x32xf32> to vector<2x32xf32>
    %892 = vector.shape_cast %885 : vector<2x32xf32> to vector<1x2x32xf32>
    tpu.vector_store %arg14[%889, %c0_229, %c0_230], %892 {strides = array<i32>} : memref<8x2x32xf32, #tpu.memory_space<vmem>>, vector<1x2x32xf32>,
    %893 = arith.index_cast %844 : i32 to index
    %c0_231 = arith.constant 0 : index
    %c0_232 = arith.constant 0 : index
    %894 = vector.load %arg15[%893, %c0_231, %c0_232] : memref<8x2x32xf32, #tpu.memory_space<vmem>>, vector<1x2x32xf32>
    %895 = vector.shape_cast %894 : vector<1x2x32xf32> to vector<2x32xf32>
    %896 = vector.shape_cast %888 : vector<2x32xf32> to vector<1x2x32xf32>
    tpu.vector_store %arg15[%893, %c0_231, %c0_232], %896 {strides = array<i32>} : memref<8x2x32xf32, #tpu.memory_space<vmem>>, vector<1x2x32xf32>,
    %897 = tpu.concatenate %885, %888 in 1 : vector<2x32xf32>, vector<2x32xf32> -> vector<2x64xf32>
    %c8_i32_233 = arith.constant 8 : i32
    %c0_234 = arith.constant 0 : index
    %c0_235 = arith.constant 0 : index
    %898 = vector.load %arg8[%c0_234, %c0_235] : memref<64x128xbf16, #tpu.memory_space<vmem>>, vector<64x128xbf16>
    %c0_236 = arith.constant 0 : index
    %c0_237 = arith.constant 0 : index
    %c0_238 = arith.constant 0 : index
    %899 = vector.load %arg14[%c0_236, %c0_237, %c0_238] : memref<8x2x32xf32, #tpu.memory_space<vmem>>, vector<8x2x32xf32>
    %900 = vector.shape_cast %899 : vector<8x2x32xf32> to vector<16x32xf32>
    %901 = arith.truncf %900 : vector<16x32xf32> to vector<16x32xbf16>
    %902 = vector.extract_strided_slice %898 {offsets = [0, 0], sizes = [32, 128], strides = [1, 1]} : vector<64x128xbf16> to vector<32x128xbf16>
    %cst_239 = arith.constant dense<0.000000e+00> : vector<16x128xf32>
    %903 = tpu.matmul %901, %902, %cst_239 {dimension_numbers = #tpu.dot_dimension_numbers<[1], [0], [0], [1], [0, 0, 1, 1], [], []>} : vector<16x32xbf16>, vector<32x128xbf16>, vector<16x128xf32> -> vector<16x128xf32>
    %c0_240 = arith.constant 0 : index
    %c0_241 = arith.constant 0 : index
    %c0_242 = arith.constant 0 : index
    %904 = vector.load %arg15[%c0_240, %c0_241, %c0_242] : memref<8x2x32xf32, #tpu.memory_space<vmem>>, vector<8x2x32xf32>
    %905 = vector.shape_cast %904 : vector<8x2x32xf32> to vector<16x32xf32>
    %906 = arith.truncf %905 : vector<16x32xf32> to vector<16x32xbf16>
    %907 = vector.extract_strided_slice %898 {offsets = [32, 0], sizes = [32, 128], strides = [1, 1]} : vector<64x128xbf16> to vector<32x128xbf16>
    %cst_243 = arith.constant dense<0.000000e+00> : vector<16x128xf32>
    %908 = tpu.matmul %906, %907, %cst_243 {dimension_numbers = #tpu.dot_dimension_numbers<[1], [0], [0], [1], [0, 0, 1, 1], [], []>} : vector<16x32xbf16>, vector<32x128xbf16>, vector<16x128xf32> -> vector<16x128xf32>
    %909 = arith.addf %903, %908 : vector<16x128xf32>
    %c0_244 = arith.constant 0 : index
    %c0_245 = arith.constant 0 : index
    %910 = vector.load %arg9[%c0_244, %c0_245] : memref<1x128xf32, #tpu.memory_space<vmem>>, vector<1x128xf32>
    %911 = vector.broadcast %910 : vector<1x128xf32> to vector<16x128xf32>
    %912 = arith.addf %909, %911 : vector<16x128xf32>
    %913 = vector.shape_cast %912 : vector<16x128xf32> to vector<8x2x128xf32>
    %c0_246 = arith.constant 0 : index
    %c0_247 = arith.constant 0 : index
    %c0_248 = arith.constant 0 : index
    %914 = vector.load %arg10[%c0_246, %c0_247, %c0_248] : memref<8x2x128xf32, #tpu.memory_space<vmem>>, vector<8x2x128xf32>
    tpu.vector_store %arg10[%c0_246, %c0_247, %c0_248], %913 {strides = array<i32>} : memref<8x2x128xf32, #tpu.memory_space<vmem>>, vector<8x2x128xf32>,
    return
  }
  func.func @transform_0(%arg0: i32) -> (i32, i32, i32) {
    %c0_i32 = arith.constant 0 : i32
    %c0_i32_0 = arith.constant 0 : i32
    %c0_i32_1 = arith.constant 0 : i32
    return %c0_i32, %arg0, %c0_i32_0 : i32, i32, i32
  }
  func.func @transform_1(%arg0: i32) -> (i32, i32) {
    %c0_i32 = arith.constant 0 : i32
    %c0_i32_0 = arith.constant 0 : i32
    %c0_i32_1 = arith.constant 0 : i32
    return %c0_i32, %c0_i32_0 : i32, i32
  }
  func.func @transform_2(%arg0: i32) -> (i32, i32) {
    %c0_i32 = arith.constant 0 : i32
    %c0_i32_0 = arith.constant 0 : i32
    %c0_i32_1 = arith.constant 0 : i32
    return %c0_i32, %c0_i32_0 : i32, i32
  }
  func.func @transform_3(%arg0: i32) -> (i32, i32) {
    %c0_i32 = arith.constant 0 : i32
    %c0_i32_0 = arith.constant 0 : i32
    %c0_i32_1 = arith.constant 0 : i32
    return %c0_i32, %c0_i32_0 : i32, i32
  }
  func.func @transform_4(%arg0: i32) -> (i32, i32) {
    %c0_i32 = arith.constant 0 : i32
    %c0_i32_0 = arith.constant 0 : i32
    %c0_i32_1 = arith.constant 0 : i32
    return %c0_i32, %c0_i32_0 : i32, i32
  }
  func.func @transform_5(%arg0: i32) -> (i32, i32) {
    %c0_i32 = arith.constant 0 : i32
    %c0_i32_0 = arith.constant 0 : i32
    %c0_i32_1 = arith.constant 0 : i32
    return %c0_i32, %c0_i32_0 : i32, i32
  }
  func.func @transform_6(%arg0: i32) -> (i32, i32) {
    %c0_i32 = arith.constant 0 : i32
    %c0_i32_0 = arith.constant 0 : i32
    %c0_i32_1 = arith.constant 0 : i32
    return %c0_i32, %c0_i32_0 : i32, i32
  }
  func.func @transform_7(%arg0: i32) -> (i32, i32) {
    %c0_i32 = arith.constant 0 : i32
    %c0_i32_0 = arith.constant 0 : i32
    %c0_i32_1 = arith.constant 0 : i32
    return %c0_i32, %c0_i32_0 : i32, i32
  }
  func.func @transform_8(%arg0: i32) -> (i32, i32) {
    %c0_i32 = arith.constant 0 : i32
    %c0_i32_0 = arith.constant 0 : i32
    %c0_i32_1 = arith.constant 0 : i32
    return %c0_i32, %c0_i32_0 : i32, i32
  }
  func.func @transform_9(%arg0: i32) -> (i32, i32, i32) {
    %c0_i32 = arith.constant 0 : i32
    %c0_i32_0 = arith.constant 0 : i32
    %c0_i32_1 = arith.constant 0 : i32
    return %c0_i32, %arg0, %c0_i32_0 : i32, i32, i32
  }
}

</mosaic_0001>

<llo_original>
// kernel: tpu_custom_call.1
$region0: #{tpu_custom_call.1}
  #allocation0 [shape = 'u32[]', space=smem, size = 0x4, offset = 0x4, fixed_abs, tag = 'smem constant byte address 0x4 - core index']
  #allocation1 [shape = 'u32[144,128]{1,0:T(1,128)}', space=vmem, size = 0x12000, scoped, tag = 'internal scratch']
  #allocation2 [shape = 'f32[8,2,256]{2,1,0:T(2,128)}', space=vmem, size = 0x4000, scoped, tag = 'scratch operand']
  #allocation3 [shape = 'f32[8,2,32]{2,1,0:T(2,128)}', space=vmem, size = 0x2000, scoped, tag = 'scratch operand']
  #allocation4 [shape = 'f32[8,2,32]{2,1,0:T(2,128)}', space=vmem, size = 0x2000, scoped, tag = 'scratch operand']
  #allocation5 [shape = 'f32[8,2,32]{2,1,0:T(2,128)}', space=vmem, size = 0x2000, scoped, tag = 'scratch operand']
  #allocation6 [shape = 'f32[8,2,32]{2,1,0:T(2,128)}', space=vmem, size = 0x2000, scoped, tag = 'scratch operand']
  %s0 = inlined_call_operand.hbm [shape: bf16[8,2,32], index: 0, kind: input, shape index: {}]
  %s1 = inlined_call_operand.hbm [shape: bf16[32,256], index: 1, kind: input, shape index: {}]
  %s2 = inlined_call_operand.hbm [shape: bf16[64,256], index: 2, kind: input, shape index: {}]
  %s3 = inlined_call_operand.vmem [shape: f32[1,256], index: 3, kind: input, shape index: {}]
  %s4 = inlined_call_operand.hbm [shape: bf16[64,256], index: 4, kind: input, shape index: {}]
  %s5 = inlined_call_operand.hbm [shape: bf16[64,256], index: 5, kind: input, shape index: {}]
  %s6 = inlined_call_operand.vmem [shape: f32[1,256], index: 6, kind: input, shape index: {}]
  %s7 = inlined_call_operand.hbm [shape: bf16[64,128], index: 7, kind: input, shape index: {}]
  %s8 = inlined_call_operand.vmem [shape: f32[1,128], index: 8, kind: input, shape index: {}]
  %s9 = inlined_call_operand.hbm [shape: f32[8,2,128], index: 9, kind: output, shape index: {}]
  %s10 = sld [smem:[#allocation0]]
  $region70: #{tpu_custom_call.1} parent=0
    _
  %s12 = ssub.s32 1, %s10
  %s13 = scalar_select 0, %s12, %s10
  $region1: #{tpu_custom_call.1} parent=0
    #allocation7 [shape = 'u8[4096]{0}', space=vmem, size = 0x1000, scoped, tag = 'input window, operand 0, single buffered']
    #allocation8 [shape = 's32[1]{0}', space=sflag, size = 0x4, scoped, tag = 'scoped memory for tpu_custom_call.1']
    #allocation9 [shape = 's32[1]{0}', space=sflag, size = 0x4, scoped, tag = 'scoped memory for tpu_custom_call.1']
    #allocation10 [shape = 'u8[16384]{0}', space=vmem, size = 0x4000, scoped, tag = 'input window, operand 1, single buffered']
    #allocation11 [shape = 's32[1]{0}', space=sflag, size = 0x4, scoped, tag = 'scoped memory for tpu_custom_call.1']
    #allocation12 [shape = 'u8[32768]{0}', space=vmem, size = 0x8000, scoped, tag = 'input window, operand 2, single buffered']
    #allocation13 [shape = 'u8[32768]{0}', space=vmem, size = 0x8000, scoped, tag = 'input window, operand 4, single buffered']
    #allocation14 [shape = 's32[1]{0}', space=sflag, size = 0x4, scoped, tag = 'scoped memory for tpu_custom_call.1']
    #allocation15 [shape = 'u8[32768]{0}', space=vmem, size = 0x8000, scoped, tag = 'input window, operand 5, single buffered']
    #allocation16 [shape = 'u8[16384]{0}', space=vmem, size = 0x4000, scoped, tag = 'input window, operand 7, single buffered']
    #allocation17 [shape = 's32[1]{0}', space=sflag, size = 0x4, scoped, tag = 'scoped memory for tpu_custom_call.1']
    #allocation18 [shape = 'u8[8192]{0}', space=vmem, size = 0x2000, scoped, tag = 'output window, operand 0, single buffered']
    %14 = vsyncpa [#allocation8], 0
    %15 = vsyncpa [#allocation11], 0
    %16 = vsyncpa [#allocation14], 0
    %17 = vsyncpa [#allocation17], 0
    %18 = vsyncpa [#allocation9], 0
    // Predicated region
    $region2: #{tpu_custom_call.1} parent=1 // pred_check
      _
    $region3: #{tpu_custom_call.1} parent=1 // pred_check_branch
      %20 = sbr.rel (0) target = $region5
    $region4: #{tpu_custom_call.1} parent=1 // pred_region
      %s22 = ssub.s32 128, 128
      %23 = vsyncadd [#allocation8], %s22
      %s24 = sshll.u32 [#allocation7], 4
      %s25 = int_to_ptr.vmem [resolvable:$true] %s24
      %30 = dma.hbm_to_vmem [thread:$0]  %s0, 128, %s25, [#allocation8], 16, 16, 1
    $region5: #{tpu_custom_call.1} parent=1 // pred_fallthru
      _
    // Predicated region
    $region6: #{tpu_custom_call.1} parent=1 // pred_check
      _
    $region7: #{tpu_custom_call.1} parent=1 // pred_check_branch
      %32 = sbr.rel (0) target = $region9
    $region8: #{tpu_custom_call.1} parent=1 // pred_region
      %s34 = ssub.s32 512, 512
      %35 = vsyncadd [#allocation11], %s34
      %s36 = sshll.u32 [#allocation10], 4
      %s37 = int_to_ptr.vmem [resolvable:$true] %s36
      %42 = dma.hbm_to_vmem [thread:$0]  %s1, 512, %s37, [#allocation11], 128, 128, 8
    $region9: #{tpu_custom_call.1} parent=1 // pred_fallthru
      _
    // Predicated region
    $region10: #{tpu_custom_call.1} parent=1 // pred_check
      _
    $region11: #{tpu_custom_call.1} parent=1 // pred_check_branch
      %44 = sbr.rel (0) target = $region13
    $region12: #{tpu_custom_call.1} parent=1 // pred_region
      %s46 = ssub.s32 1024, 1024
      %47 = vsyncadd [#allocation11], %s46
      %s48 = sshll.u32 [#allocation12], 4
      %s49 = int_to_ptr.vmem [resolvable:$true] %s48
      %54 = dma.hbm_to_vmem [thread:$0]  %s2, 1024, %s49, [#allocation11], 128, 128, 8
    $region13: #{tpu_custom_call.1} parent=1 // pred_fallthru
      _
    // Predicated region
    $region14: #{tpu_custom_call.1} parent=1 // pred_check
      _
    $region15: #{tpu_custom_call.1} parent=1 // pred_check_branch
      %56 = sbr.rel (0) target = $region17
    $region16: #{tpu_custom_call.1} parent=1 // pred_region
      _
    $region17: #{tpu_custom_call.1} parent=1 // pred_fallthru
      _
    // Predicated region
    $region18: #{tpu_custom_call.1} parent=1 // pred_check
      _
    $region19: #{tpu_custom_call.1} parent=1 // pred_check_branch
      %58 = sbr.rel (0) target = $region21
    $region20: #{tpu_custom_call.1} parent=1 // pred_region
      %s60 = ssub.s32 1024, 1024
      %61 = vsyncadd [#allocation14], %s60
      %s62 = sshll.u32 [#allocation13], 4
      %s63 = int_to_ptr.vmem [resolvable:$true] %s62
      %68 = dma.hbm_to_vmem [thread:$0]  %s4, 1024, %s63, [#allocation14], 128, 128, 8
    $region21: #{tpu_custom_call.1} parent=1 // pred_fallthru
      _
    // Predicated region
    $region22: #{tpu_custom_call.1} parent=1 // pred_check
      _
    $region23: #{tpu_custom_call.1} parent=1 // pred_check_branch
      %70 = sbr.rel (0) target = $region25
    $region24: #{tpu_custom_call.1} parent=1 // pred_region
      %s72 = ssub.s32 1024, 1024
      %73 = vsyncadd [#allocation14], %s72
      %s74 = sshll.u32 [#allocation15], 4
      %s75 = int_to_ptr.vmem [resolvable:$true] %s74
      %80 = dma.hbm_to_vmem [thread:$0]  %s5, 1024, %s75, [#allocation14], 128, 128, 8
    $region25: #{tpu_custom_call.1} parent=1 // pred_fallthru
      _
    // Predicated region
    $region26: #{tpu_custom_call.1} parent=1 // pred_check
      _
    $region27: #{tpu_custom_call.1} parent=1 // pred_check_branch
      %82 = sbr.rel (0) target = $region29
    $region28: #{tpu_custom_call.1} parent=1 // pred_region
      _
    $region29: #{tpu_custom_call.1} parent=1 // pred_fallthru
      _
    // Predicated region
    $region30: #{tpu_custom_call.1} parent=1 // pred_check
      _
    $region31: #{tpu_custom_call.1} parent=1 // pred_check_branch
      %84 = sbr.rel (0) target = $region33
    $region32: #{tpu_custom_call.1} parent=1 // pred_region
      %s86 = ssub.s32 512, 512
      %87 = vsyncadd [#allocation17], %s86
      %s88 = sshll.u32 [#allocation16], 4
      %s89 = int_to_ptr.vmem [resolvable:$true] %s88
      %94 = dma.hbm_to_vmem [thread:$0]  %s7, 512, %s89, [#allocation17], 64, 64, 4
    $region33: #{tpu_custom_call.1} parent=1 // pred_fallthru
      _
    // Predicated region
    $region34: #{tpu_custom_call.1} parent=1 // pred_check
      _
    $region35: #{tpu_custom_call.1} parent=1 // pred_check_branch
      %96 = sbr.rel (0) target = $region37
    $region36: #{tpu_custom_call.1} parent=1 // pred_region
      _
    $region37: #{tpu_custom_call.1} parent=1 // pred_fallthru
      _
    // Predicated region
    $region38: #{tpu_custom_call.1} parent=1 // pred_check
      _
    $region39: #{tpu_custom_call.1} parent=1 // pred_check_branch
      %98 = sbr.rel (0) target = $region41
    $region40: #{tpu_custom_call.1} parent=1 // pred_region
      %99 = dma.done [#allocation8], 128
    $region41: #{tpu_custom_call.1} parent=1 // pred_fallthru
      _
    // Predicated region
    $region42: #{tpu_custom_call.1} parent=1 // pred_check
      _
    $region43: #{tpu_custom_call.1} parent=1 // pred_check_branch
      %101 = sbr.rel (0) target = $region45
    $region44: #{tpu_custom_call.1} parent=1 // pred_region
      %102 = dma.done [#allocation11], 512
    $region45: #{tpu_custom_call.1} parent=1 // pred_fallthru
      _
    // Predicated region
    $region46: #{tpu_custom_call.1} parent=1 // pred_check
      _
    $region47: #{tpu_custom_call.1} parent=1 // pred_check_branch
      %104 = sbr.rel (0) target = $region49
    $region48: #{tpu_custom_call.1} parent=1 // pred_region
      %105 = dma.done [#allocation11], 1024
    $region49: #{tpu_custom_call.1} parent=1 // pred_fallthru
      _
    // Predicated region
    $region50: #{tpu_custom_call.1} parent=1 // pred_check
      _
    $region51: #{tpu_custom_call.1} parent=1 // pred_check_branch
      %107 = sbr.rel (0) target = $region53
    $region52: #{tpu_custom_call.1} parent=1 // pred_region
      %108 = dma.done [#allocation14], 1024
    $region53: #{tpu_custom_call.1} parent=1 // pred_fallthru
      _
    // Predicated region
    $region54: #{tpu_custom_call.1} parent=1 // pred_check
      _
    $region55: #{tpu_custom_call.1} parent=1 // pred_check_branch
      %110 = sbr.rel (0) target = $region57
    $region56: #{tpu_custom_call.1} parent=1 // pred_region
      %111 = dma.done [#allocation14], 1024
    $region57: #{tpu_custom_call.1} parent=1 // pred_fallthru
      _
    // Predicated region
    $region58: #{tpu_custom_call.1} parent=1 // pred_check
      _
    $region59: #{tpu_custom_call.1} parent=1 // pred_check_branch
      %113 = sbr.rel (0) target = $region61
    $region60: #{tpu_custom_call.1} parent=1 // pred_region
      %114 = dma.done [#allocation17], 512
    $region61: #{tpu_custom_call.1} parent=1 // pred_fallthru
      _
    %v116 = vld [vmem:[#allocation7] sm:$0x1]
    %v117 = vld [vmem:[#allocation7 + $0x1] sm:$0x1]
    %v118 = vld [vmem:[#allocation7 + $0x2] sm:$0x1]
    %v119 = vld [vmem:[#allocation7 + $0x3] sm:$0x1]
    %v120 = vld [vmem:[#allocation7 + $0x4] sm:$0x1]
    %v121 = vld [vmem:[#allocation7 + $0x5] sm:$0x1]
    %v122 = vld [vmem:[#allocation7 + $0x6] sm:$0x1]
    %v123 = vld [vmem:[#allocation7 + $0x7] sm:$0x1]
    %v124 = vld [vmem:[#allocation10] sm:$0xff]
    %v125 = vld [vmem:[#allocation10 + $0x8] sm:$0xff]
    %v126 = vld [vmem:[#allocation10 + $0x10] sm:$0xff]
    %v127 = vld [vmem:[#allocation10 + $0x18] sm:$0xff]
    %v128 = vld [vmem:[%s3] sm:$0x3]
    %v130 = vlaneseq
    %v131 = vshrl.u32 %v130, 7
    %v132 = vsub.s32 0, %v131
    %v133 = vrot.slane %v128, %v132
    %v134 = vlaneseq
    %v135 = vshrl.u32 %v134, 7
    %v136 = vsub.s32 1, %v135
    %v137 = vrot.slane %v128, %v136
    %v148 = vcombine.low %v116, %v117
    %v149 = vcombine.low %v118, %v119
    %v150 = vcombine.low %v120, %v121
    %v151 = vcombine.low %v122, %v123
    %v153 = vunpack.c.l.s4 1966171168
    %v154 = vunpack.c.0.s8 %v153
    %v155 = vlaneseq
    %v156 = vshrl.u32 %v155, 7
    %v157 = vsub.s32 %v154, %v156
    %v158 = vrot.slane %v148, %v157
    %v160 = vunpack.c.l.s4 1966171168
    %v161 = vunpack.c.0.s8 %v160
    %v162 = vlaneseq
    %v163 = vshrl.u32 %v162, 7
    %v164 = vsub.s32 %v161, %v163
    %v165 = vrot.slane %v149, %v164
    %v167 = vunpack.c.l.s4 1966171168
    %v168 = vunpack.c.0.s8 %v167
    %v169 = vlaneseq
    %v170 = vshrl.u32 %v169, 7
    %v171 = vsub.s32 %v168, %v170
    %v172 = vrot.slane %v150, %v171
    %v174 = vunpack.c.l.s4 1966171168
    %v175 = vunpack.c.0.s8 %v174
    %v176 = vlaneseq
    %v177 = vshrl.u32 %v176, 7
    %v178 = vsub.s32 %v175, %v177
    %v179 = vrot.slane %v151, %v178
    %v180 = vcombine.low %v158, %v165
    %v181 = vcombine.low %v172, %v179
    %v183 = vunpack.c.l.s4 1966171168
    %v184 = vunpack.c.0.s8 %v183
    %v185 = vlaneseq
    %v186 = vshrl.u32 %v185, 7
    %v187 = vsub.s32 %v184, %v186
    %v188 = vrot.slane %v180, %v187
    %v190 = vunpack.c.l.s4 1966171168
    %v191 = vunpack.c.0.s8 %v190
    %v192 = vlaneseq
    %v193 = vshrl.u32 %v192, 7
    %v194 = vsub.s32 %v191, %v193
    %v195 = vrot.slane %v181, %v194
    %v196 = vcombine.low %v188, %v195
    %v201 = vunpack.c.l.b16 %v124
    %v202 = vunpack.c.h.b16 %v124
    %v203 = vunpack.c.l.b16 %v125
    %v204 = vunpack.c.h.b16 %v125
    %v205 = vunpack.c.l.b16 %v126
    %v206 = vunpack.c.h.b16 %v126
    %v207 = vunpack.c.l.b16 %v127
    %v208 = vunpack.c.h.b16 %v127
    %v209 = vpack.c.b16 %v203, %v201
    %v210 = vpack.c.b16 %v204, %v202
    %v211 = vpack.c.b16 %v207, %v205
    %v212 = vpack.c.b16 %v208, %v206
    %vm217 = vcmask 261120
    %v219 = vsel %vm217, %v196, 0
    %221 = vmatprep.subr.bf16.mxu0 %v210
    %222 = vmatpush1.bf16.msra.mxu0 %v209
    %223 = vmatprep.subr.bf16.mxu0 %v212
    %224 = vmatpush1.bf16.msra.mxu0 %v211
    %225 = vmatprep.subr.bf16.mxu0 0
    %226 = vmatpush1.bf16.msra.mxu0 0
    %227 = vmatprep.subr.bf16.mxu0 0
    %228 = vmatpush1.bf16.msra.mxu0 0
    %229 = vmatprep.subr.bf16.mxu0 0
    %230 = vmatpush1.bf16.msra.mxu0 0
    %231 = vmatprep.subr.bf16.mxu0 0
    %232 = vmatpush1.bf16.msra.mxu0 0
    %233 = vmatprep.subr.bf16.mxu0 0
    %234 = vmatpush1.bf16.msra.mxu0 0
    %235 = vmatprep.subr.bf16.mxu0 0
    %236 = vmatpush1.bf16.msra.mxu0 0
    %237 = vmatprep.subr.bf16.mxu0 0
    %238 = vmatpush1.bf16.msra.mxu0 0
    %239 = vmatprep.subr.bf16.mxu0 0
    %240 = vmatpush1.bf16.msra.mxu0 0
    %241 = vmatprep.subr.bf16.mxu0 0
    %242 = vmatpush1.bf16.msra.mxu0 0
    %243 = vmatprep.subr.bf16.mxu0 0
    %244 = vmatpush1.bf16.msra.mxu0 0
    %245 = vmatprep.subr.bf16.mxu0 0
    %246 = vmatpush1.bf16.msra.mxu0 0
    %247 = vmatprep.subr.bf16.mxu0 0
    %248 = vmatpush1.bf16.msra.mxu0 0
    %249 = vmatprep.subr.bf16.mxu0 0
    %250 = vmatpush1.bf16.msra.mxu0 0
    %251 = vmatprep.subr.bf16.mxu0 0
    %252 = vmatpush1.bf16.msra.mxu0 0
    %253 = vmatprep.mubr.bf16.mxu0 0
    %254 = vmatmul.mubr.bf16.gmra.mrb[0].mxu0 %v219
    %v255 = vpop.f32.mrb[0].mxu0
    %v256 = vadd.f32 %v133, %v255
    %v257 = vpop.f32.mrb[0].mxu0
    %v258 = vadd.f32 %v137, %v257
    %v259 = vpop.f32.mrb[0].mxu0
    %v260 = vadd.f32 %v133, %v259
    %v261 = vpop.f32.mrb[0].mxu0
    %v262 = vadd.f32 %v137, %v261
    %263 = vdwg.mxu0
    %v268 = vcombine.low %v256, %v258
    %v269 = vcombine.high %v256, %v258
    %v271 = vunpack.c.l.s4 1983009808
    %v272 = vunpack.c.0.s8 %v271
    %v273 = vlaneseq
    %v274 = vshrl.u32 %v273, 7
    %v275 = vsub.s32 %v272, %v274
    %v276 = vrot.slane %v268, %v275
    %v278 = vunpack.c.l.s4 1983009808
    %v279 = vunpack.c.0.s8 %v278
    %v280 = vlaneseq
    %v281 = vshrl.u32 %v280, 7
    %v282 = vsub.s32 %v279, %v281
    %v283 = vrot.slane %v269, %v282
    %v284 = vcombine.high %v276, %v276
    %v285 = vcombine.high %v283, %v283
    %v286 = vcombine.low %v260, %v262
    %v287 = vcombine.high %v260, %v262
    %v289 = vunpack.c.l.s4 1983009808
    %v290 = vunpack.c.0.s8 %v289
    %v291 = vlaneseq
    %v292 = vshrl.u32 %v291, 7
    %v293 = vsub.s32 %v290, %v292
    %v294 = vrot.slane %v286, %v293
    %v296 = vunpack.c.l.s4 1983009808
    %v297 = vunpack.c.0.s8 %v296
    %v298 = vlaneseq
    %v299 = vshrl.u32 %v298, 7
    %v300 = vsub.s32 %v297, %v299
    %v301 = vrot.slane %v287, %v300
    %v302 = vcombine.high %v294, %v294
    %v303 = vcombine.high %v301, %v301
    %312 = vst [vmem:[#allocation2] sm:$0xf] %v276
    %313 = vst [vmem:[#allocation2 + $0x4] sm:$0xf] %v284
    %314 = vst [vmem:[#allocation2 + $0x8] sm:$0xf] %v283
    %315 = vst [vmem:[#allocation2 + $0xc] sm:$0xf] %v285
    %316 = vst [vmem:[#allocation2 + $0x10] sm:$0xf] %v294
    %317 = vst [vmem:[#allocation2 + $0x14] sm:$0xf] %v302
    %318 = vst [vmem:[#allocation2 + $0x18] sm:$0xf] %v301
    %319 = vst [vmem:[#allocation2 + $0x1c] sm:$0xf] %v303
    %v320 = vld [vmem:[#allocation12] sm:$0xff]
    %v321 = vld [vmem:[#allocation12 + $0x8] sm:$0xff]
    %v322 = vld [vmem:[#allocation12 + $0x10] sm:$0xff]
    %v323 = vld [vmem:[#allocation12 + $0x18] sm:$0xff]
    %v324 = vld [vmem:[#allocation12 + $0x20] sm:$0xff]
    %v325 = vld [vmem:[#allocation12 + $0x28] sm:$0xff]
    %v326 = vld [vmem:[#allocation12 + $0x30] sm:$0xff]
    %v327 = vld [vmem:[#allocation12 + $0x38] sm:$0xff]
    %v336 = vunpack.c.l.b16 %v320
    %v337 = vunpack.c.h.b16 %v320
    %v338 = vunpack.c.l.b16 %v321
    %v339 = vunpack.c.h.b16 %v321
    %v340 = vunpack.c.l.b16 %v322
    %v341 = vunpack.c.h.b16 %v322
    %v342 = vunpack.c.l.b16 %v323
    %v343 = vunpack.c.h.b16 %v323
    %v344 = vunpack.c.l.b16 %v324
    %v345 = vunpack.c.h.b16 %v324
    %v346 = vunpack.c.l.b16 %v325
    %v347 = vunpack.c.h.b16 %v325
    %v348 = vunpack.c.l.b16 %v326
    %v349 = vunpack.c.h.b16 %v326
    %v350 = vunpack.c.l.b16 %v327
    %v351 = vunpack.c.h.b16 %v327
    %v352 = vpack.c.b16 %v338, %v336
    %v353 = vpack.c.b16 %v339, %v337
    %v354 = vpack.c.b16 %v342, %v340
    %v355 = vpack.c.b16 %v343, %v341
    %v356 = vpack.c.b16 %v346, %v344
    %v357 = vpack.c.b16 %v347, %v345
    %v358 = vpack.c.b16 %v350, %v348
    %v359 = vpack.c.b16 %v351, %v349
    %vm368 = vcmask 523264
    %v370 = vsel %vm368, 0, 0
    %372 = vmatprep.subr.bf16.mxu0 %v353
    %373 = vmatpush1.bf16.msra.mxu0 %v352
    %374 = vmatprep.subr.bf16.mxu0 %v355
    %375 = vmatpush1.bf16.msra.mxu0 %v354
    %376 = vmatprep.subr.bf16.mxu0 %v357
    %377 = vmatpush1.bf16.msra.mxu0 %v356
    %378 = vmatprep.subr.bf16.mxu0 %v359
    %379 = vmatpush1.bf16.msra.mxu0 %v358
    %380 = vmatprep.subr.bf16.mxu0 0
    %381 = vmatpush1.bf16.msra.mxu0 0
    %382 = vmatprep.subr.bf16.mxu0 0
    %383 = vmatpush1.bf16.msra.mxu0 0
    %384 = vmatprep.subr.bf16.mxu0 0
    %385 = vmatpush1.bf16.msra.mxu0 0
    %386 = vmatprep.subr.bf16.mxu0 0
    %387 = vmatpush1.bf16.msra.mxu0 0
    %388 = vmatprep.subr.bf16.mxu0 0
    %389 = vmatpush1.bf16.msra.mxu0 0
    %390 = vmatprep.subr.bf16.mxu0 0
    %391 = vmatpush1.bf16.msra.mxu0 0
    %392 = vmatprep.subr.bf16.mxu0 0
    %393 = vmatpush1.bf16.msra.mxu0 0
    %394 = vmatprep.subr.bf16.mxu0 0
    %395 = vmatpush1.bf16.msra.mxu0 0
    %396 = vmatprep.subr.bf16.mxu0 0
    %397 = vmatpush1.bf16.msra.mxu0 0
    %398 = vmatprep.subr.bf16.mxu0 0
    %399 = vmatpush1.bf16.msra.mxu0 0
    %400 = vmatprep.subr.bf16.mxu0 0
    %401 = vmatpush1.bf16.msra.mxu0 0
    %402 = vmatprep.subr.bf16.mxu0 0
    %403 = vmatpush1.bf16.msra.mxu0 0
    %404 = vmatprep.mubr.bf16.mxu0 0
    %405 = vmatmul.mubr.bf16.gmra.mrb[0].mxu0 %v370
    %v406 = vpop.f32.mrb[0].mxu0
    %v407 = vadd.f32 0.0, %v406
    %v408 = vpop.f32.mrb[0].mxu0
    %v409 = vadd.f32 0.0, %v408
    %v410 = vpop.f32.mrb[0].mxu0
    %v411 = vpop.f32.mrb[0].mxu0
    %412 = vdwg.mxu0
    %v413 = vld [vmem:[#allocation2] sm:$0x3]
    %v414 = vadd.f32 %v413, %v407
    %s415 = scalar_lea.vmem [#allocation2], 28
    %v416 = vld [vmem:[%s415 + $0x2] sm:$0x3]
    %v417 = vadd.f32 %v416, %v409
    %v418 = vxor.u32 %v414, 2147483648
    %v419 = vmul.f32 %v418, 1.442695
    %v420 = vpow.pop %v419
    %v421 = vadd.f32 %v420, 1.0
    %v422 = vrcp.pop %v421
    %v423 = vmul.f32 1.0, %v422
    %v424 = vxor.u32 %v417, 2147483648
    %v425 = vmul.f32 %v424, 1.442695
    %v426 = vpow.pop %v425
    %v427 = vadd.f32 %v426, 1.0
    %v428 = vrcp.pop %v427
    %v429 = vmul.f32 1.0, %v428
    %v430 = vmul.f32 %v423, 0.0
    %v431 = vtanh.pop %v414
    %433 = vrot.lane.b32.xlu0 %v431, 32
    %v434 = vpop.permute.xlu0 %433
    %v436 = vmul.f32 %v423, %v434
    %438 = vrot.lane.b32.xlu0 %v436, 32
    %v439 = vpop.permute.xlu0 %438
    %v441 = vadd.f32 %v430, %v439
    %v442 = vmul.f32 %v429, 0.0
    %v443 = vtanh.pop %v417
    %445 = vrot.lane.b32.xlu0 %v443, 32
    %v446 = vpop.permute.xlu0 %445
    %v448 = vmul.f32 %v429, %v446
    %450 = vrot.lane.b32.xlu0 %v448, 32
    %v451 = vpop.permute.xlu0 %450
    %v453 = vadd.f32 %v442, %v451
    %v454 = vtanh.pop %v441
    %456 = vrot.lane.b32.xlu0 %v454, 32
    %v457 = vpop.permute.xlu0 %456
    %v459 = vmul.f32 %v423, %v457
    %v460 = vtanh.pop %v453
    %462 = vrot.lane.b32.xlu0 %v460, 32
    %v463 = vpop.permute.xlu0 %462
    %v465 = vmul.f32 %v429, %v463
    %v468 = vunpack.c.l.s4 1983009808
    %v469 = vunpack.c.0.s8 %v468
    %v470 = vlaneseq
    %v471 = vshrl.u32 %v470, 7
    %v472 = vsub.s32 %v469, %v471
    %v473 = vrot.slane %v459, %v472
    %474 = vrot.lane.b32.xlu0 %v473, 64
    %v475 = vpop.permute.xlu0 %474
    %vm477 = vcmask 254976
    %478 = vst.msk [vmem:[#allocation3] sm:$0x3] %vm477, %v475
    %v481 = vunpack.c.l.s4 1983009808
    %v482 = vunpack.c.0.s8 %v481
    %v483 = vlaneseq
    %v484 = vshrl.u32 %v483, 7
    %v485 = vsub.s32 %v482, %v484
    %v486 = vrot.slane %v465, %v485
    %487 = vrot.lane.b32.xlu0 %v486, 64
    %v488 = vpop.permute.xlu0 %487
    %s490 = scalar_lea.vmem [#allocation4], 14
    %491 = vst.msk [vmem:[%s490] sm:$0x3] %vm477, %v488
    %492 = vrot.lane.b32.xlu0 %v486, 96
    %v493 = vpop.permute.xlu0 %492
    %v495 = vsel %vm217, %v475, %v493
    %v496 = vpack.c.bf16 %v495, %v495
    %v498 = vsel %vm368, %v496, 0
    %500 = vmatprep.subr.bf16.mxu0 %v353
    %501 = vmatpush1.bf16.msra.mxu0 %v352
    %502 = vmatprep.subr.bf16.mxu0 %v355
    %503 = vmatpush1.bf16.msra.mxu0 %v354
    %504 = vmatprep.subr.bf16.mxu0 %v357
    %505 = vmatpush1.bf16.msra.mxu0 %v356
    %506 = vmatprep.subr.bf16.mxu0 %v359
    %507 = vmatpush1.bf16.msra.mxu0 %v358
    %508 = vmatprep.subr.bf16.mxu0 0
    %509 = vmatpush1.bf16.msra.mxu0 0
    %510 = vmatprep.subr.bf16.mxu0 0
    %511 = vmatpush1.bf16.msra.mxu0 0
    %512 = vmatprep.subr.bf16.mxu0 0
    %513 = vmatpush1.bf16.msra.mxu0 0
    %514 = vmatprep.subr.bf16.mxu0 0
    %515 = vmatpush1.bf16.msra.mxu0 0
    %516 = vmatprep.subr.bf16.mxu0 0
    %517 = vmatpush1.bf16.msra.mxu0 0
    %518 = vmatprep.subr.bf16.mxu0 0
    %519 = vmatpush1.bf16.msra.mxu0 0
    %520 = vmatprep.subr.bf16.mxu0 0
    %521 = vmatpush1.bf16.msra.mxu0 0
    %522 = vmatprep.subr.bf16.mxu0 0
    %523 = vmatpush1.bf16.msra.mxu0 0
    %524 = vmatprep.subr.bf16.mxu0 0
    %525 = vmatpush1.bf16.msra.mxu0 0
    %526 = vmatprep.subr.bf16.mxu0 0
    %527 = vmatpush1.bf16.msra.mxu0 0
    %528 = vmatprep.subr.bf16.mxu0 0
    %529 = vmatpush1.bf16.msra.mxu0 0
    %530 = vmatprep.subr.bf16.mxu0 0
    %531 = vmatpush1.bf16.msra.mxu0 0
    %532 = vmatprep.mubr.bf16.mxu0 0
    %533 = vmatmul.mubr.bf16.gmra.mrb[0].mxu0 %v498
    %v534 = vpop.f32.mrb[0].mxu0
    %v535 = vadd.f32 0.0, %v534
    %v536 = vpop.f32.mrb[0].mxu0
    %v537 = vadd.f32 0.0, %v536
    %v538 = vpop.f32.mrb[0].mxu0
    %v539 = vpop.f32.mrb[0].mxu0
    %540 = vdwg.mxu0
    %s541 = scalar_lea.vmem [#allocation2], 4
    %v542 = vld [vmem:[%s541] sm:$0x3]
    %v543 = vadd.f32 %v542, %v535
    %s544 = scalar_lea.vmem [#allocation2], 24
    %v545 = vld [vmem:[%s544 + $0x2] sm:$0x3]
    %v546 = vadd.f32 %v545, %v537
    %v547 = vxor.u32 %v543, 2147483648
    %v548 = vmul.f32 %v547, 1.442695
    %v549 = vpow.pop %v548
    %v550 = vadd.f32 %v549, 1.0
    %v551 = vrcp.pop %v550
    %v552 = vmul.f32 1.0, %v551
    %v553 = vxor.u32 %v546, 2147483648
    %v554 = vmul.f32 %v553, 1.442695
    %v555 = vpow.pop %v554
    %v556 = vadd.f32 %v555, 1.0
    %v557 = vrcp.pop %v556
    %v558 = vmul.f32 1.0, %v557
    %v559 = vmul.f32 %v552, %v441
    %v560 = vtanh.pop %v543
    %562 = vrot.lane.b32.xlu0 %v560, 32
    %v563 = vpop.permute.xlu0 %562
    %v565 = vmul.f32 %v552, %v563
    %567 = vrot.lane.b32.xlu0 %v565, 32
    %v568 = vpop.permute.xlu0 %567
    %v570 = vadd.f32 %v559, %v568
    %v571 = vmul.f32 %v558, %v453
    %v572 = vtanh.pop %v546
    %574 = vrot.lane.b32.xlu0 %v572, 32
    %v575 = vpop.permute.xlu0 %574
    %v577 = vmul.f32 %v558, %v575
    %579 = vrot.lane.b32.xlu0 %v577, 32
    %v580 = vpop.permute.xlu0 %579
    %v582 = vadd.f32 %v571, %v580
    %v583 = vtanh.pop %v570
    %585 = vrot.lane.b32.xlu0 %v583, 32
    %v586 = vpop.permute.xlu0 %585
    %v588 = vmul.f32 %v552, %v586
    %v589 = vtanh.pop %v582
    %591 = vrot.lane.b32.xlu0 %v589, 32
    %v592 = vpop.permute.xlu0 %591
    %v594 = vmul.f32 %v558, %v592
    %v597 = vunpack.c.l.s4 1983009808
    %v598 = vunpack.c.0.s8 %v597
    %v599 = vlaneseq
    %v600 = vshrl.u32 %v599, 7
    %v601 = vsub.s32 %v598, %v600
    %v602 = vrot.slane %v588, %v601
    %603 = vrot.lane.b32.xlu0 %v602, 64
    %v604 = vpop.permute.xlu0 %603
    %s606 = scalar_lea.vmem [#allocation3], 2
    %607 = vst.msk [vmem:[%s606] sm:$0x3] %vm477, %v604
    %v610 = vunpack.c.l.s4 1983009808
    %v611 = vunpack.c.0.s8 %v610
    %v612 = vlaneseq
    %v613 = vshrl.u32 %v612, 7
    %v614 = vsub.s32 %v611, %v613
    %v615 = vrot.slane %v594, %v614
    %616 = vrot.lane.b32.xlu0 %v615, 64
    %v617 = vpop.permute.xlu0 %616
    %s619 = scalar_lea.vmem [#allocation4], 12
    %620 = vst.msk [vmem:[%s619] sm:$0x3] %vm477, %v617
    %621 = vrot.lane.b32.xlu0 %v615, 96
    %v622 = vpop.permute.xlu0 %621
    %v624 = vsel %vm217, %v604, %v622
    %v625 = vpack.c.bf16 %v624, %v624
    %v627 = vsel %vm368, %v625, 0
    %629 = vmatprep.subr.bf16.mxu0 %v353
    %630 = vmatpush1.bf16.msra.mxu0 %v352
    %631 = vmatprep.subr.bf16.mxu0 %v355
    %632 = vmatpush1.bf16.msra.mxu0 %v354
    %633 = vmatprep.subr.bf16.mxu0 %v357
    %634 = vmatpush1.bf16.msra.mxu0 %v356
    %635 = vmatprep.subr.bf16.mxu0 %v359
    %636 = vmatpush1.bf16.msra.mxu0 %v358
    %637 = vmatprep.subr.bf16.mxu0 0
    %638 = vmatpush1.bf16.msra.mxu0 0
    %639 = vmatprep.subr.bf16.mxu0 0
    %640 = vmatpush1.bf16.msra.mxu0 0
    %641 = vmatprep.subr.bf16.mxu0 0
    %642 = vmatpush1.bf16.msra.mxu0 0
    %643 = vmatprep.subr.bf16.mxu0 0
    %644 = vmatpush1.bf16.msra.mxu0 0
    %645 = vmatprep.subr.bf16.mxu0 0
    %646 = vmatpush1.bf16.msra.mxu0 0
    %647 = vmatprep.subr.bf16.mxu0 0
    %648 = vmatpush1.bf16.msra.mxu0 0
    %649 = vmatprep.subr.bf16.mxu0 0
    %650 = vmatpush1.bf16.msra.mxu0 0
    %651 = vmatprep.subr.bf16.mxu0 0
    %652 = vmatpush1.bf16.msra.mxu0 0
    %653 = vmatprep.subr.bf16.mxu0 0
    %654 = vmatpush1.bf16.msra.mxu0 0
    %655 = vmatprep.subr.bf16.mxu0 0
    %656 = vmatpush1.bf16.msra.mxu0 0
    %657 = vmatprep.subr.bf16.mxu0 0
    %658 = vmatpush1.bf16.msra.mxu0 0
    %659 = vmatprep.subr.bf16.mxu0 0
    %660 = vmatpush1.bf16.msra.mxu0 0
    %661 = vmatprep.mubr.bf16.mxu0 0
    %662 = vmatmul.mubr.bf16.gmra.mrb[0].mxu0 %v627
    %v663 = vpop.f32.mrb[0].mxu0
    %v664 = vadd.f32 0.0, %v663
    %v665 = vpop.f32.mrb[0].mxu0
    %v666 = vadd.f32 0.0, %v665
    %v667 = vpop.f32.mrb[0].mxu0
    %v668 = vpop.f32.mrb[0].mxu0
    %669 = vdwg.mxu0
    %s670 = scalar_lea.vmem [#allocation2], 8
    %v671 = vld [vmem:[%s670] sm:$0x3]
    %v672 = vadd.f32 %v671, %v664
    %s673 = scalar_lea.vmem [#allocation2], 20
    %v674 = vld [vmem:[%s673 + $0x2] sm:$0x3]
    %v675 = vadd.f32 %v674, %v666
    %v676 = vxor.u32 %v672, 2147483648
    %v677 = vmul.f32 %v676, 1.442695
    %v678 = vpow.pop %v677
    %v679 = vadd.f32 %v678, 1.0
    %v680 = vrcp.pop %v679
    %v681 = vmul.f32 1.0, %v680
    %v682 = vxor.u32 %v675, 2147483648
    %v683 = vmul.f32 %v682, 1.442695
    %v684 = vpow.pop %v683
    %v685 = vadd.f32 %v684, 1.0
    %v686 = vrcp.pop %v685
    %v687 = vmul.f32 1.0, %v686
    %v688 = vmul.f32 %v681, %v570
    %v689 = vtanh.pop %v672
    %691 = vrot.lane.b32.xlu0 %v689, 32
    %v692 = vpop.permute.xlu0 %691
    %v694 = vmul.f32 %v681, %v692
    %696 = vrot.lane.b32.xlu0 %v694, 32
    %v697 = vpop.permute.xlu0 %696
    %v699 = vadd.f32 %v688, %v697
    %v700 = vmul.f32 %v687, %v582
    %v701 = vtanh.pop %v675
    %703 = vrot.lane.b32.xlu0 %v701, 32
    %v704 = vpop.permute.xlu0 %703
    %v706 = vmul.f32 %v687, %v704
    %708 = vrot.lane.b32.xlu0 %v706, 32
    %v709 = vpop.permute.xlu0 %708
    %v711 = vadd.f32 %v700, %v709
    %v712 = vtanh.pop %v699
    %714 = vrot.lane.b32.xlu0 %v712, 32
    %v715 = vpop.permute.xlu0 %714
    %v717 = vmul.f32 %v681, %v715
    %v718 = vtanh.pop %v711
    %720 = vrot.lane.b32.xlu0 %v718, 32
    %v721 = vpop.permute.xlu0 %720
    %v723 = vmul.f32 %v687, %v721
    %v726 = vunpack.c.l.s4 1983009808
    %v727 = vunpack.c.0.s8 %v726
    %v728 = vlaneseq
    %v729 = vshrl.u32 %v728, 7
    %v730 = vsub.s32 %v727, %v729
    %v731 = vrot.slane %v717, %v730
    %732 = vrot.lane.b32.xlu0 %v731, 64
    %v733 = vpop.permute.xlu0 %732
    %s735 = scalar_lea.vmem [#allocation3], 4
    %736 = vst.msk [vmem:[%s735] sm:$0x3] %vm477, %v733
    %v739 = vunpack.c.l.s4 1983009808
    %v740 = vunpack.c.0.s8 %v739
    %v741 = vlaneseq
    %v742 = vshrl.u32 %v741, 7
    %v743 = vsub.s32 %v740, %v742
    %v744 = vrot.slane %v723, %v743
    %745 = vrot.lane.b32.xlu0 %v744, 64
    %v746 = vpop.permute.xlu0 %745
    %s748 = scalar_lea.vmem [#allocation4], 10
    %749 = vst.msk [vmem:[%s748] sm:$0x3] %vm477, %v746
    %750 = vrot.lane.b32.xlu0 %v744, 96
    %v751 = vpop.permute.xlu0 %750
    %v753 = vsel %vm217, %v733, %v751
    %v754 = vpack.c.bf16 %v753, %v753
    %v756 = vsel %vm368, %v754, 0
    %758 = vmatprep.subr.bf16.mxu0 %v353
    %759 = vmatpush1.bf16.msra.mxu0 %v352
    %760 = vmatprep.subr.bf16.mxu0 %v355
    %761 = vmatpush1.bf16.msra.mxu0 %v354
    %762 = vmatprep.subr.bf16.mxu0 %v357
    %763 = vmatpush1.bf16.msra.mxu0 %v356
    %764 = vmatprep.subr.bf16.mxu0 %v359
    %765 = vmatpush1.bf16.msra.mxu0 %v358
    %766 = vmatprep.subr.bf16.mxu0 0
    %767 = vmatpush1.bf16.msra.mxu0 0
    %768 = vmatprep.subr.bf16.mxu0 0
    %769 = vmatpush1.bf16.msra.mxu0 0
    %770 = vmatprep.subr.bf16.mxu0 0
    %771 = vmatpush1.bf16.msra.mxu0 0
    %772 = vmatprep.subr.bf16.mxu0 0
    %773 = vmatpush1.bf16.msra.mxu0 0
    %774 = vmatprep.subr.bf16.mxu0 0
    %775 = vmatpush1.bf16.msra.mxu0 0
    %776 = vmatprep.subr.bf16.mxu0 0
    %777 = vmatpush1.bf16.msra.mxu0 0
    %778 = vmatprep.subr.bf16.mxu0 0
    %779 = vmatpush1.bf16.msra.mxu0 0
    %780 = vmatprep.subr.bf16.mxu0 0
    %781 = vmatpush1.bf16.msra.mxu0 0
    %782 = vmatprep.subr.bf16.mxu0 0
    %783 = vmatpush1.bf16.msra.mxu0 0
    %784 = vmatprep.subr.bf16.mxu0 0
    %785 = vmatpush1.bf16.msra.mxu0 0
    %786 = vmatprep.subr.bf16.mxu0 0
    %787 = vmatpush1.bf16.msra.mxu0 0
    %788 = vmatprep.subr.bf16.mxu0 0
    %789 = vmatpush1.bf16.msra.mxu0 0
    %790 = vmatprep.mubr.bf16.mxu0 0
    %791 = vmatmul.mubr.bf16.gmra.mrb[0].mxu0 %v756
    %v792 = vpop.f32.mrb[0].mxu0
    %v793 = vadd.f32 0.0, %v792
    %v794 = vpop.f32.mrb[0].mxu0
    %v795 = vadd.f32 0.0, %v794
    %v796 = vpop.f32.mrb[0].mxu0
    %v797 = vpop.f32.mrb[0].mxu0
    %798 = vdwg.mxu0
    %s799 = scalar_lea.vmem [#allocation2], 12
    %v800 = vld [vmem:[%s799] sm:$0x3]
    %v801 = vadd.f32 %v800, %v793
    %s802 = scalar_lea.vmem [#allocation2], 16
    %v803 = vld [vmem:[%s802 + $0x2] sm:$0x3]
    %v804 = vadd.f32 %v803, %v795
    %v805 = vxor.u32 %v801, 2147483648
    %v806 = vmul.f32 %v805, 1.442695
    %v807 = vpow.pop %v806
    %v808 = vadd.f32 %v807, 1.0
    %v809 = vrcp.pop %v808
    %v810 = vmul.f32 1.0, %v809
    %v811 = vxor.u32 %v804, 2147483648
    %v812 = vmul.f32 %v811, 1.442695
    %v813 = vpow.pop %v812
    %v814 = vadd.f32 %v813, 1.0
    %v815 = vrcp.pop %v814
    %v816 = vmul.f32 1.0, %v815
    %v817 = vmul.f32 %v810, %v699
    %v818 = vtanh.pop %v801
    %820 = vrot.lane.b32.xlu0 %v818, 32
    %v821 = vpop.permute.xlu0 %820
    %v823 = vmul.f32 %v810, %v821
    %825 = vrot.lane.b32.xlu0 %v823, 32
    %v826 = vpop.permute.xlu0 %825
    %v828 = vadd.f32 %v817, %v826
    %v829 = vmul.f32 %v816, %v711
    %v830 = vtanh.pop %v804
    %832 = vrot.lane.b32.xlu0 %v830, 32
    %v833 = vpop.permute.xlu0 %832
    %v835 = vmul.f32 %v816, %v833
    %837 = vrot.lane.b32.xlu0 %v835, 32
    %v838 = vpop.permute.xlu0 %837
    %v840 = vadd.f32 %v829, %v838
    %v841 = vtanh.pop %v828
    %843 = vrot.lane.b32.xlu0 %v841, 32
    %v844 = vpop.permute.xlu0 %843
    %v846 = vmul.f32 %v810, %v844
    %v847 = vtanh.pop %v840
    %849 = vrot.lane.b32.xlu0 %v847, 32
    %v850 = vpop.permute.xlu0 %849
    %v852 = vmul.f32 %v816, %v850
    %v855 = vunpack.c.l.s4 1983009808
    %v856 = vunpack.c.0.s8 %v855
    %v857 = vlaneseq
    %v858 = vshrl.u32 %v857, 7
    %v859 = vsub.s32 %v856, %v858
    %v860 = vrot.slane %v846, %v859
    %861 = vrot.lane.b32.xlu0 %v860, 64
    %v862 = vpop.permute.xlu0 %861
    %s864 = scalar_lea.vmem [#allocation3], 6
    %865 = vst.msk [vmem:[%s864] sm:$0x3] %vm477, %v862
    %v868 = vunpack.c.l.s4 1983009808
    %v869 = vunpack.c.0.s8 %v868
    %v870 = vlaneseq
    %v871 = vshrl.u32 %v870, 7
    %v872 = vsub.s32 %v869, %v871
    %v873 = vrot.slane %v852, %v872
    %874 = vrot.lane.b32.xlu0 %v873, 64
    %v875 = vpop.permute.xlu0 %874
    %s877 = scalar_lea.vmem [#allocation4], 8
    %878 = vst.msk [vmem:[%s877] sm:$0x3] %vm477, %v875
    %879 = vrot.lane.b32.xlu0 %v873, 96
    %v880 = vpop.permute.xlu0 %879
    %v882 = vsel %vm217, %v862, %v880
    %v883 = vpack.c.bf16 %v882, %v882
    %v885 = vsel %vm368, %v883, 0
    %887 = vmatprep.subr.bf16.mxu0 %v353
    %888 = vmatpush1.bf16.msra.mxu0 %v352
    %889 = vmatprep.subr.bf16.mxu0 %v355
    %890 = vmatpush1.bf16.msra.mxu0 %v354
    %891 = vmatprep.subr.bf16.mxu0 %v357
    %892 = vmatpush1.bf16.msra.mxu0 %v356
    %893 = vmatprep.subr.bf16.mxu0 %v359
    %894 = vmatpush1.bf16.msra.mxu0 %v358
    %895 = vmatprep.subr.bf16.mxu0 0
    %896 = vmatpush1.bf16.msra.mxu0 0
    %897 = vmatprep.subr.bf16.mxu0 0
    %898 = vmatpush1.bf16.msra.mxu0 0
    %899 = vmatprep.subr.bf16.mxu0 0
    %900 = vmatpush1.bf16.msra.mxu0 0
    %901 = vmatprep.subr.bf16.mxu0 0
    %902 = vmatpush1.bf16.msra.mxu0 0
    %903 = vmatprep.subr.bf16.mxu0 0
    %904 = vmatpush1.bf16.msra.mxu0 0
    %905 = vmatprep.subr.bf16.mxu0 0
    %906 = vmatpush1.bf16.msra.mxu0 0
    %907 = vmatprep.subr.bf16.mxu0 0
    %908 = vmatpush1.bf16.msra.mxu0 0
    %909 = vmatprep.subr.bf16.mxu0 0
    %910 = vmatpush1.bf16.msra.mxu0 0
    %911 = vmatprep.subr.bf16.mxu0 0
    %912 = vmatpush1.bf16.msra.mxu0 0
    %913 = vmatprep.subr.bf16.mxu0 0
    %914 = vmatpush1.bf16.msra.mxu0 0
    %915 = vmatprep.subr.bf16.mxu0 0
    %916 = vmatpush1.bf16.msra.mxu0 0
    %917 = vmatprep.subr.bf16.mxu0 0
    %918 = vmatpush1.bf16.msra.mxu0 0
    %919 = vmatprep.mubr.bf16.mxu0 0
    %920 = vmatmul.mubr.bf16.gmra.mrb[0].mxu0 %v885
    %v921 = vpop.f32.mrb[0].mxu0
    %v922 = vadd.f32 0.0, %v921
    %v923 = vpop.f32.mrb[0].mxu0
    %v924 = vadd.f32 0.0, %v923
    %v925 = vpop.f32.mrb[0].mxu0
    %v926 = vpop.f32.mrb[0].mxu0
    %927 = vdwg.mxu0
    %v928 = vld [vmem:[%s802] sm:$0x3]
    %v929 = vadd.f32 %v928, %v922
    %v930 = vld [vmem:[%s799 + $0x2] sm:$0x3]
    %v931 = vadd.f32 %v930, %v924
    %v932 = vxor.u32 %v929, 2147483648
    %v933 = vmul.f32 %v932, 1.442695
    %v934 = vpow.pop %v933
    %v935 = vadd.f32 %v934, 1.0
    %v936 = vrcp.pop %v935
    %v937 = vmul.f32 1.0, %v936
    %v938 = vxor.u32 %v931, 2147483648
    %v939 = vmul.f32 %v938, 1.442695
    %v940 = vpow.pop %v939
    %v941 = vadd.f32 %v940, 1.0
    %v942 = vrcp.pop %v941
    %v943 = vmul.f32 1.0, %v942
    %v944 = vmul.f32 %v937, %v828
    %v945 = vtanh.pop %v929
    %947 = vrot.lane.b32.xlu0 %v945, 32
    %v948 = vpop.permute.xlu0 %947
    %v950 = vmul.f32 %v937, %v948
    %952 = vrot.lane.b32.xlu0 %v950, 32
    %v953 = vpop.permute.xlu0 %952
    %v955 = vadd.f32 %v944, %v953
    %v956 = vmul.f32 %v943, %v840
    %v957 = vtanh.pop %v931
    %959 = vrot.lane.b32.xlu0 %v957, 32
    %v960 = vpop.permute.xlu0 %959
    %v962 = vmul.f32 %v943, %v960
    %964 = vrot.lane.b32.xlu0 %v962, 32
    %v965 = vpop.permute.xlu0 %964
    %v967 = vadd.f32 %v956, %v965
    %v968 = vtanh.pop %v955
    %970 = vrot.lane.b32.xlu0 %v968, 32
    %v971 = vpop.permute.xlu0 %970
    %v973 = vmul.f32 %v937, %v971
    %v974 = vtanh.pop %v967
    %976 = vrot.lane.b32.xlu0 %v974, 32
    %v977 = vpop.permute.xlu0 %976
    %v979 = vmul.f32 %v943, %v977
    %v982 = vunpack.c.l.s4 1983009808
    %v983 = vunpack.c.0.s8 %v982
    %v984 = vlaneseq
    %v985 = vshrl.u32 %v984, 7
    %v986 = vsub.s32 %v983, %v985
    %v987 = vrot.slane %v973, %v986
    %988 = vrot.lane.b32.xlu0 %v987, 64
    %v989 = vpop.permute.xlu0 %988
    %s991 = scalar_lea.vmem [#allocation3], 8
    %992 = vst.msk [vmem:[%s991] sm:$0x3] %vm477, %v989
    %v995 = vunpack.c.l.s4 1983009808
    %v996 = vunpack.c.0.s8 %v995
    %v997 = vlaneseq
    %v998 = vshrl.u32 %v997, 7
    %v999 = vsub.s32 %v996, %v998
    %v1000 = vrot.slane %v979, %v999
    %1001 = vrot.lane.b32.xlu0 %v1000, 64
    %v1002 = vpop.permute.xlu0 %1001
    %s1004 = scalar_lea.vmem [#allocation4], 6
    %1005 = vst.msk [vmem:[%s1004] sm:$0x3] %vm477, %v1002
    %1006 = vrot.lane.b32.xlu0 %v1000, 96
    %v1007 = vpop.permute.xlu0 %1006
    %v1009 = vsel %vm217, %v989, %v1007
    %v1010 = vpack.c.bf16 %v1009, %v1009
    %v1012 = vsel %vm368, %v1010, 0
    %1014 = vmatprep.subr.bf16.mxu0 %v353
    %1015 = vmatpush1.bf16.msra.mxu0 %v352
    %1016 = vmatprep.subr.bf16.mxu0 %v355
    %1017 = vmatpush1.bf16.msra.mxu0 %v354
    %1018 = vmatprep.subr.bf16.mxu0 %v357
    %1019 = vmatpush1.bf16.msra.mxu0 %v356
    %1020 = vmatprep.subr.bf16.mxu0 %v359
    %1021 = vmatpush1.bf16.msra.mxu0 %v358
    %1022 = vmatprep.subr.bf16.mxu0 0
    %1023 = vmatpush1.bf16.msra.mxu0 0
    %1024 = vmatprep.subr.bf16.mxu0 0
    %1025 = vmatpush1.bf16.msra.mxu0 0
    %1026 = vmatprep.subr.bf16.mxu0 0
    %1027 = vmatpush1.bf16.msra.mxu0 0
    %1028 = vmatprep.subr.bf16.mxu0 0
    %1029 = vmatpush1.bf16.msra.mxu0 0
    %1030 = vmatprep.subr.bf16.mxu0 0
    %1031 = vmatpush1.bf16.msra.mxu0 0
    %1032 = vmatprep.subr.bf16.mxu0 0
    %1033 = vmatpush1.bf16.msra.mxu0 0
    %1034 = vmatprep.subr.bf16.mxu0 0
    %1035 = vmatpush1.bf16.msra.mxu0 0
    %1036 = vmatprep.subr.bf16.mxu0 0
    %1037 = vmatpush1.bf16.msra.mxu0 0
    %1038 = vmatprep.subr.bf16.mxu0 0
    %1039 = vmatpush1.bf16.msra.mxu0 0
    %1040 = vmatprep.subr.bf16.mxu0 0
    %1041 = vmatpush1.bf16.msra.mxu0 0
    %1042 = vmatprep.subr.bf16.mxu0 0
    %1043 = vmatpush1.bf16.msra.mxu0 0
    %1044 = vmatprep.subr.bf16.mxu0 0
    %1045 = vmatpush1.bf16.msra.mxu0 0
    %1046 = vmatprep.mubr.bf16.mxu0 0
    %1047 = vmatmul.mubr.bf16.gmra.mrb[0].mxu0 %v1012
    %v1048 = vpop.f32.mrb[0].mxu0
    %v1049 = vadd.f32 0.0, %v1048
    %v1050 = vpop.f32.mrb[0].mxu0
    %v1051 = vadd.f32 0.0, %v1050
    %v1052 = vpop.f32.mrb[0].mxu0
    %v1053 = vpop.f32.mrb[0].mxu0
    %1054 = vdwg.mxu0
    %v1055 = vld [vmem:[%s673] sm:$0x3]
    %v1056 = vadd.f32 %v1055, %v1049
    %v1057 = vld [vmem:[%s670 + $0x2] sm:$0x3]
    %v1058 = vadd.f32 %v1057, %v1051
    %v1059 = vxor.u32 %v1056, 2147483648
    %v1060 = vmul.f32 %v1059, 1.442695
    %v1061 = vpow.pop %v1060
    %v1062 = vadd.f32 %v1061, 1.0
    %v1063 = vrcp.pop %v1062
    %v1064 = vmul.f32 1.0, %v1063
    %v1065 = vxor.u32 %v1058, 2147483648
    %v1066 = vmul.f32 %v1065, 1.442695
    %v1067 = vpow.pop %v1066
    %v1068 = vadd.f32 %v1067, 1.0
    %v1069 = vrcp.pop %v1068
    %v1070 = vmul.f32 1.0, %v1069
    %v1071 = vmul.f32 %v1064, %v955
    %v1072 = vtanh.pop %v1056
    %1074 = vrot.lane.b32.xlu0 %v1072, 32
    %v1075 = vpop.permute.xlu0 %1074
    %v1077 = vmul.f32 %v1064, %v1075
    %1079 = vrot.lane.b32.xlu0 %v1077, 32
    %v1080 = vpop.permute.xlu0 %1079
    %v1082 = vadd.f32 %v1071, %v1080
    %v1083 = vmul.f32 %v1070, %v967
    %v1084 = vtanh.pop %v1058
    %1086 = vrot.lane.b32.xlu0 %v1084, 32
    %v1087 = vpop.permute.xlu0 %1086
    %v1089 = vmul.f32 %v1070, %v1087
    %1091 = vrot.lane.b32.xlu0 %v1089, 32
    %v1092 = vpop.permute.xlu0 %1091
    %v1094 = vadd.f32 %v1083, %v1092
    %v1095 = vtanh.pop %v1082
    %1097 = vrot.lane.b32.xlu0 %v1095, 32
    %v1098 = vpop.permute.xlu0 %1097
    %v1100 = vmul.f32 %v1064, %v1098
    %v1101 = vtanh.pop %v1094
    %1103 = vrot.lane.b32.xlu0 %v1101, 32
    %v1104 = vpop.permute.xlu0 %1103
    %v1106 = vmul.f32 %v1070, %v1104
    %v1109 = vunpack.c.l.s4 1983009808
    %v1110 = vunpack.c.0.s8 %v1109
    %v1111 = vlaneseq
    %v1112 = vshrl.u32 %v1111, 7
    %v1113 = vsub.s32 %v1110, %v1112
    %v1114 = vrot.slane %v1100, %v1113
    %1115 = vrot.lane.b32.xlu0 %v1114, 64
    %v1116 = vpop.permute.xlu0 %1115
    %s1118 = scalar_lea.vmem [#allocation3], 10
    %1119 = vst.msk [vmem:[%s1118] sm:$0x3] %vm477, %v1116
    %v1122 = vunpack.c.l.s4 1983009808
    %v1123 = vunpack.c.0.s8 %v1122
    %v1124 = vlaneseq
    %v1125 = vshrl.u32 %v1124, 7
    %v1126 = vsub.s32 %v1123, %v1125
    %v1127 = vrot.slane %v1106, %v1126
    %1128 = vrot.lane.b32.xlu0 %v1127, 64
    %v1129 = vpop.permute.xlu0 %1128
    %s1131 = scalar_lea.vmem [#allocation4], 4
    %1132 = vst.msk [vmem:[%s1131] sm:$0x3] %vm477, %v1129
    %1133 = vrot.lane.b32.xlu0 %v1127, 96
    %v1134 = vpop.permute.xlu0 %1133
    %v1136 = vsel %vm217, %v1116, %v1134
    %v1137 = vpack.c.bf16 %v1136, %v1136
    %v1139 = vsel %vm368, %v1137, 0
    %1141 = vmatprep.subr.bf16.mxu0 %v353
    %1142 = vmatpush1.bf16.msra.mxu0 %v352
    %1143 = vmatprep.subr.bf16.mxu0 %v355
    %1144 = vmatpush1.bf16.msra.mxu0 %v354
    %1145 = vmatprep.subr.bf16.mxu0 %v357
    %1146 = vmatpush1.bf16.msra.mxu0 %v356
    %1147 = vmatprep.subr.bf16.mxu0 %v359
    %1148 = vmatpush1.bf16.msra.mxu0 %v358
    %1149 = vmatprep.subr.bf16.mxu0 0
    %1150 = vmatpush1.bf16.msra.mxu0 0
    %1151 = vmatprep.subr.bf16.mxu0 0
    %1152 = vmatpush1.bf16.msra.mxu0 0
    %1153 = vmatprep.subr.bf16.mxu0 0
    %1154 = vmatpush1.bf16.msra.mxu0 0
    %1155 = vmatprep.subr.bf16.mxu0 0
    %1156 = vmatpush1.bf16.msra.mxu0 0
    %1157 = vmatprep.subr.bf16.mxu0 0
    %1158 = vmatpush1.bf16.msra.mxu0 0
    %1159 = vmatprep.subr.bf16.mxu0 0
    %1160 = vmatpush1.bf16.msra.mxu0 0
    %1161 = vmatprep.subr.bf16.mxu0 0
    %1162 = vmatpush1.bf16.msra.mxu0 0
    %1163 = vmatprep.subr.bf16.mxu0 0
    %1164 = vmatpush1.bf16.msra.mxu0 0
    %1165 = vmatprep.subr.bf16.mxu0 0
    %1166 = vmatpush1.bf16.msra.mxu0 0
    %1167 = vmatprep.subr.bf16.mxu0 0
    %1168 = vmatpush1.bf16.msra.mxu0 0
    %1169 = vmatprep.subr.bf16.mxu0 0
    %1170 = vmatpush1.bf16.msra.mxu0 0
    %1171 = vmatprep.subr.bf16.mxu0 0
    %1172 = vmatpush1.bf16.msra.mxu0 0
    %1173 = vmatprep.mubr.bf16.mxu0 0
    %1174 = vmatmul.mubr.bf16.gmra.mrb[0].mxu0 %v1139
    %v1175 = vpop.f32.mrb[0].mxu0
    %v1176 = vadd.f32 0.0, %v1175
    %v1177 = vpop.f32.mrb[0].mxu0
    %v1178 = vadd.f32 0.0, %v1177
    %v1179 = vpop.f32.mrb[0].mxu0
    %v1180 = vpop.f32.mrb[0].mxu0
    %1181 = vdwg.mxu0
    %v1182 = vld [vmem:[%s544] sm:$0x3]
    %v1183 = vadd.f32 %v1182, %v1176
    %v1184 = vld [vmem:[%s541 + $0x2] sm:$0x3]
    %v1185 = vadd.f32 %v1184, %v1178
    %v1186 = vxor.u32 %v1183, 2147483648
    %v1187 = vmul.f32 %v1186, 1.442695
    %v1188 = vpow.pop %v1187
    %v1189 = vadd.f32 %v1188, 1.0
    %v1190 = vrcp.pop %v1189
    %v1191 = vmul.f32 1.0, %v1190
    %v1192 = vxor.u32 %v1185, 2147483648
    %v1193 = vmul.f32 %v1192, 1.442695
    %v1194 = vpow.pop %v1193
    %v1195 = vadd.f32 %v1194, 1.0
    %v1196 = vrcp.pop %v1195
    %v1197 = vmul.f32 1.0, %v1196
    %v1198 = vmul.f32 %v1191, %v1082
    %v1199 = vtanh.pop %v1183
    %1201 = vrot.lane.b32.xlu0 %v1199, 32
    %v1202 = vpop.permute.xlu0 %1201
    %v1204 = vmul.f32 %v1191, %v1202
    %1206 = vrot.lane.b32.xlu0 %v1204, 32
    %v1207 = vpop.permute.xlu0 %1206
    %v1209 = vadd.f32 %v1198, %v1207
    %v1210 = vmul.f32 %v1197, %v1094
    %v1211 = vtanh.pop %v1185
    %1213 = vrot.lane.b32.xlu0 %v1211, 32
    %v1214 = vpop.permute.xlu0 %1213
    %v1216 = vmul.f32 %v1197, %v1214
    %1218 = vrot.lane.b32.xlu0 %v1216, 32
    %v1219 = vpop.permute.xlu0 %1218
    %v1221 = vadd.f32 %v1210, %v1219
    %v1222 = vtanh.pop %v1209
    %1224 = vrot.lane.b32.xlu0 %v1222, 32
    %v1225 = vpop.permute.xlu0 %1224
    %v1227 = vmul.f32 %v1191, %v1225
    %v1228 = vtanh.pop %v1221
    %1230 = vrot.lane.b32.xlu0 %v1228, 32
    %v1231 = vpop.permute.xlu0 %1230
    %v1233 = vmul.f32 %v1197, %v1231
    %v1236 = vunpack.c.l.s4 1983009808
    %v1237 = vunpack.c.0.s8 %v1236
    %v1238 = vlaneseq
    %v1239 = vshrl.u32 %v1238, 7
    %v1240 = vsub.s32 %v1237, %v1239
    %v1241 = vrot.slane %v1227, %v1240
    %1242 = vrot.lane.b32.xlu0 %v1241, 64
    %v1243 = vpop.permute.xlu0 %1242
    %s1245 = scalar_lea.vmem [#allocation3], 12
    %1246 = vst.msk [vmem:[%s1245] sm:$0x3] %vm477, %v1243
    %v1249 = vunpack.c.l.s4 1983009808
    %v1250 = vunpack.c.0.s8 %v1249
    %v1251 = vlaneseq
    %v1252 = vshrl.u32 %v1251, 7
    %v1253 = vsub.s32 %v1250, %v1252
    %v1254 = vrot.slane %v1233, %v1253
    %1255 = vrot.lane.b32.xlu0 %v1254, 64
    %v1256 = vpop.permute.xlu0 %1255
    %s1258 = scalar_lea.vmem [#allocation4], 2
    %1259 = vst.msk [vmem:[%s1258] sm:$0x3] %vm477, %v1256
    %1260 = vrot.lane.b32.xlu0 %v1254, 96
    %v1261 = vpop.permute.xlu0 %1260
    %v1263 = vsel %vm217, %v1243, %v1261
    %v1264 = vpack.c.bf16 %v1263, %v1263
    %v1266 = vsel %vm368, %v1264, 0
    %1268 = vmatprep.subr.bf16.mxu0 %v353
    %1269 = vmatpush1.bf16.msra.mxu0 %v352
    %1270 = vmatprep.subr.bf16.mxu0 %v355
    %1271 = vmatpush1.bf16.msra.mxu0 %v354
    %1272 = vmatprep.subr.bf16.mxu0 %v357
    %1273 = vmatpush1.bf16.msra.mxu0 %v356
    %1274 = vmatprep.subr.bf16.mxu0 %v359
    %1275 = vmatpush1.bf16.msra.mxu0 %v358
    %1276 = vmatprep.subr.bf16.mxu0 0
    %1277 = vmatpush1.bf16.msra.mxu0 0
    %1278 = vmatprep.subr.bf16.mxu0 0
    %1279 = vmatpush1.bf16.msra.mxu0 0
    %1280 = vmatprep.subr.bf16.mxu0 0
    %1281 = vmatpush1.bf16.msra.mxu0 0
    %1282 = vmatprep.subr.bf16.mxu0 0
    %1283 = vmatpush1.bf16.msra.mxu0 0
    %1284 = vmatprep.subr.bf16.mxu0 0
    %1285 = vmatpush1.bf16.msra.mxu0 0
    %1286 = vmatprep.subr.bf16.mxu0 0
    %1287 = vmatpush1.bf16.msra.mxu0 0
    %1288 = vmatprep.subr.bf16.mxu0 0
    %1289 = vmatpush1.bf16.msra.mxu0 0
    %1290 = vmatprep.subr.bf16.mxu0 0
    %1291 = vmatpush1.bf16.msra.mxu0 0
    %1292 = vmatprep.subr.bf16.mxu0 0
    %1293 = vmatpush1.bf16.msra.mxu0 0
    %1294 = vmatprep.subr.bf16.mxu0 0
    %1295 = vmatpush1.bf16.msra.mxu0 0
    %1296 = vmatprep.subr.bf16.mxu0 0
    %1297 = vmatpush1.bf16.msra.mxu0 0
    %1298 = vmatprep.subr.bf16.mxu0 0
    %1299 = vmatpush1.bf16.msra.mxu0 0
    %1300 = vmatprep.mubr.bf16.mxu0 0
    %1301 = vmatmul.mubr.bf16.gmra.mrb[0].mxu0 %v1266
    %v1302 = vpop.f32.mrb[0].mxu0
    %v1303 = vadd.f32 0.0, %v1302
    %v1304 = vpop.f32.mrb[0].mxu0
    %v1305 = vadd.f32 0.0, %v1304
    %v1306 = vpop.f32.mrb[0].mxu0
    %v1307 = vpop.f32.mrb[0].mxu0
    %1308 = vdwg.mxu0
    %v1309 = vld [vmem:[%s415] sm:$0x3]
    %v1310 = vadd.f32 %v1309, %v1303
    %v1311 = vld [vmem:[#allocation2 + $0x2] sm:$0x3]
    %v1312 = vadd.f32 %v1311, %v1305
    %v1313 = vxor.u32 %v1310, 2147483648
    %v1314 = vmul.f32 %v1313, 1.442695
    %v1315 = vpow.pop %v1314
    %v1316 = vadd.f32 %v1315, 1.0
    %v1317 = vrcp.pop %v1316
    %v1318 = vmul.f32 1.0, %v1317
    %v1319 = vxor.u32 %v1312, 2147483648
    %v1320 = vmul.f32 %v1319, 1.442695
    %v1321 = vpow.pop %v1320
    %v1322 = vadd.f32 %v1321, 1.0
    %v1323 = vrcp.pop %v1322
    %v1324 = vmul.f32 1.0, %v1323
    %v1325 = vmul.f32 %v1318, %v1209
    %v1326 = vtanh.pop %v1310
    %1328 = vrot.lane.b32.xlu0 %v1326, 32
    %v1329 = vpop.permute.xlu0 %1328
    %v1331 = vmul.f32 %v1318, %v1329
    %1333 = vrot.lane.b32.xlu0 %v1331, 32
    %v1334 = vpop.permute.xlu0 %1333
    %v1336 = vadd.f32 %v1325, %v1334
    %v1337 = vmul.f32 %v1324, %v1221
    %v1338 = vtanh.pop %v1312
    %1340 = vrot.lane.b32.xlu0 %v1338, 32
    %v1341 = vpop.permute.xlu0 %1340
    %v1343 = vmul.f32 %v1324, %v1341
    %1345 = vrot.lane.b32.xlu0 %v1343, 32
    %v1346 = vpop.permute.xlu0 %1345
    %v1348 = vadd.f32 %v1337, %v1346
    %v1349 = vtanh.pop %v1336
    %1351 = vrot.lane.b32.xlu0 %v1349, 32
    %v1352 = vpop.permute.xlu0 %1351
    %v1354 = vmul.f32 %v1318, %v1352
    %v1355 = vtanh.pop %v1348
    %1357 = vrot.lane.b32.xlu0 %v1355, 32
    %v1358 = vpop.permute.xlu0 %1357
    %v1360 = vmul.f32 %v1324, %v1358
    %v1363 = vunpack.c.l.s4 1983009808
    %v1364 = vunpack.c.0.s8 %v1363
    %v1365 = vlaneseq
    %v1366 = vshrl.u32 %v1365, 7
    %v1367 = vsub.s32 %v1364, %v1366
    %v1368 = vrot.slane %v1354, %v1367
    %1369 = vrot.lane.b32.xlu0 %v1368, 64
    %v1370 = vpop.permute.xlu0 %1369
    %s1372 = scalar_lea.vmem [#allocation3], 14
    %1373 = vst.msk [vmem:[%s1372] sm:$0x3] %vm477, %v1370
    %v1376 = vunpack.c.l.s4 1983009808
    %v1377 = vunpack.c.0.s8 %v1376
    %v1378 = vlaneseq
    %v1379 = vshrl.u32 %v1378, 7
    %v1380 = vsub.s32 %v1377, %v1379
    %v1381 = vrot.slane %v1360, %v1380
    %1382 = vrot.lane.b32.xlu0 %v1381, 64
    %v1383 = vpop.permute.xlu0 %1382
    %1385 = vst.msk [vmem:[#allocation4] sm:$0x3] %vm477, %v1383
    %v1386 = vld [vmem:[#allocation13] sm:$0xff]
    %v1387 = vld [vmem:[#allocation13 + $0x8] sm:$0xff]
    %v1388 = vld [vmem:[#allocation13 + $0x10] sm:$0xff]
    %v1389 = vld [vmem:[#allocation13 + $0x18] sm:$0xff]
    %v1390 = vld [vmem:[#allocation13 + $0x20] sm:$0xff]
    %v1391 = vld [vmem:[#allocation13 + $0x28] sm:$0xff]
    %v1392 = vld [vmem:[#allocation13 + $0x30] sm:$0xff]
    %v1393 = vld [vmem:[#allocation13 + $0x38] sm:$0xff]
    %v1394 = vld [vmem:[#allocation3] sm:$0x3]
    %v1395 = vld [vmem:[#allocation3 + $0x2] sm:$0x3]
    %v1396 = vld [vmem:[#allocation3 + $0x4] sm:$0x3]
    %v1397 = vld [vmem:[#allocation3 + $0x6] sm:$0x3]
    %v1398 = vld [vmem:[#allocation3 + $0x8] sm:$0x3]
    %v1399 = vld [vmem:[#allocation3 + $0xa] sm:$0x3]
    %v1400 = vld [vmem:[#allocation3 + $0xc] sm:$0x3]
    %v1401 = vld [vmem:[#allocation3 + $0xe] sm:$0x3]
    %v1410 = vcombine.low %v1394, %v1395
    %v1411 = vcombine.low %v1396, %v1397
    %v1413 = vunpack.c.l.s4 1983009808
    %v1414 = vunpack.c.0.s8 %v1413
    %v1415 = vlaneseq
    %v1416 = vshrl.u32 %v1415, 7
    %v1417 = vsub.s32 %v1414, %v1416
    %v1418 = vrot.slane %v1410, %v1417
    %v1420 = vunpack.c.l.s4 1983009808
    %v1421 = vunpack.c.0.s8 %v1420
    %v1422 = vlaneseq
    %v1423 = vshrl.u32 %v1422, 7
    %v1424 = vsub.s32 %v1421, %v1423
    %v1425 = vrot.slane %v1411, %v1424
    %v1426 = vcombine.low %v1418, %v1425
    %v1427 = vcombine.low %v1398, %v1399
    %v1428 = vcombine.low %v1400, %v1401
    %v1430 = vunpack.c.l.s4 1983009808
    %v1431 = vunpack.c.0.s8 %v1430
    %v1432 = vlaneseq
    %v1433 = vshrl.u32 %v1432, 7
    %v1434 = vsub.s32 %v1431, %v1433
    %v1435 = vrot.slane %v1427, %v1434
    %v1437 = vunpack.c.l.s4 1983009808
    %v1438 = vunpack.c.0.s8 %v1437
    %v1439 = vlaneseq
    %v1440 = vshrl.u32 %v1439, 7
    %v1441 = vsub.s32 %v1438, %v1440
    %v1442 = vrot.slane %v1428, %v1441
    %v1443 = vcombine.low %v1435, %v1442
    %v1446 = vpack.c.bf16 %v1443, %v1426
    %v1447 = vld [vmem:[#allocation4] sm:$0x3]
    %v1448 = vld [vmem:[#allocation4 + $0x2] sm:$0x3]
    %v1449 = vld [vmem:[#allocation4 + $0x4] sm:$0x3]
    %v1450 = vld [vmem:[#allocation4 + $0x6] sm:$0x3]
    %v1451 = vld [vmem:[#allocation4 + $0x8] sm:$0x3]
    %v1452 = vld [vmem:[#allocation4 + $0xa] sm:$0x3]
    %v1453 = vld [vmem:[#allocation4 + $0xc] sm:$0x3]
    %v1454 = vld [vmem:[#allocation4 + $0xe] sm:$0x3]
    %v1463 = vcombine.low %v1447, %v1448
    %v1464 = vcombine.low %v1449, %v1450
    %v1466 = vunpack.c.l.s4 1983009808
    %v1467 = vunpack.c.0.s8 %v1466
    %v1468 = vlaneseq
    %v1469 = vshrl.u32 %v1468, 7
    %v1470 = vsub.s32 %v1467, %v1469
    %v1471 = vrot.slane %v1463, %v1470
    %v1473 = vunpack.c.l.s4 1983009808
    %v1474 = vunpack.c.0.s8 %v1473
    %v1475 = vlaneseq
    %v1476 = vshrl.u32 %v1475, 7
    %v1477 = vsub.s32 %v1474, %v1476
    %v1478 = vrot.slane %v1464, %v1477
    %v1479 = vcombine.low %v1471, %v1478
    %v1480 = vcombine.low %v1451, %v1452
    %v1481 = vcombine.low %v1453, %v1454
    %v1483 = vunpack.c.l.s4 1983009808
    %v1484 = vunpack.c.0.s8 %v1483
    %v1485 = vlaneseq
    %v1486 = vshrl.u32 %v1485, 7
    %v1487 = vsub.s32 %v1484, %v1486
    %v1488 = vrot.slane %v1480, %v1487
    %v1490 = vunpack.c.l.s4 1983009808
    %v1491 = vunpack.c.0.s8 %v1490
    %v1492 = vlaneseq
    %v1493 = vshrl.u32 %v1492, 7
    %v1494 = vsub.s32 %v1491, %v1493
    %v1495 = vrot.slane %v1481, %v1494
    %v1496 = vcombine.low %v1488, %v1495
    %v1499 = vpack.c.bf16 %v1496, %v1479
    %v1504 = vunpack.c.l.b16 %v1390
    %v1505 = vunpack.c.h.b16 %v1390
    %v1506 = vunpack.c.l.b16 %v1391
    %v1507 = vunpack.c.h.b16 %v1391
    %v1508 = vunpack.c.l.b16 %v1392
    %v1509 = vunpack.c.h.b16 %v1392
    %v1510 = vunpack.c.l.b16 %v1393
    %v1511 = vunpack.c.h.b16 %v1393
    %v1512 = vpack.c.b16 %v1506, %v1504
    %v1513 = vpack.c.b16 %v1507, %v1505
    %v1514 = vpack.c.b16 %v1510, %v1508
    %v1515 = vpack.c.b16 %v1511, %v1509
    %v1521 = vsel %vm217, %v1499, 0
    %1523 = vmatprep.subr.bf16.mxu0 %v1513
    %1524 = vmatpush1.bf16.msra.mxu0 %v1512
    %1525 = vmatprep.subr.bf16.mxu0 %v1515
    %1526 = vmatpush1.bf16.msra.mxu0 %v1514
    %1527 = vmatprep.subr.bf16.mxu0 0
    %1528 = vmatpush1.bf16.msra.mxu0 0
    %1529 = vmatprep.subr.bf16.mxu0 0
    %1530 = vmatpush1.bf16.msra.mxu0 0
    %1531 = vmatprep.subr.bf16.mxu0 0
    %1532 = vmatpush1.bf16.msra.mxu0 0
    %1533 = vmatprep.subr.bf16.mxu0 0
    %1534 = vmatpush1.bf16.msra.mxu0 0
    %1535 = vmatprep.subr.bf16.mxu0 0
    %1536 = vmatpush1.bf16.msra.mxu0 0
    %1537 = vmatprep.subr.bf16.mxu0 0
    %1538 = vmatpush1.bf16.msra.mxu0 0
    %1539 = vmatprep.subr.bf16.mxu0 0
    %1540 = vmatpush1.bf16.msra.mxu0 0
    %1541 = vmatprep.subr.bf16.mxu0 0
    %1542 = vmatpush1.bf16.msra.mxu0 0
    %1543 = vmatprep.subr.bf16.mxu0 0
    %1544 = vmatpush1.bf16.msra.mxu0 0
    %1545 = vmatprep.subr.bf16.mxu0 0
    %1546 = vmatpush1.bf16.msra.mxu0 0
    %1547 = vmatprep.subr.bf16.mxu0 0
    %1548 = vmatpush1.bf16.msra.mxu0 0
    %1549 = vmatprep.subr.bf16.mxu0 0
    %1550 = vmatpush1.bf16.msra.mxu0 0
    %1551 = vmatprep.subr.bf16.mxu0 0
    %1552 = vmatpush1.bf16.msra.mxu0 0
    %1553 = vmatprep.subr.bf16.mxu0 0
    %1554 = vmatpush1.bf16.msra.mxu0 0
    %1555 = vmatprep.mubr.bf16.mxu0 0
    %1556 = vmatmul.mubr.bf16.gmra.mrb[0].mxu0 %v1521
    %v1557 = vpop.f32.mrb[0].mxu0
    %v1558 = vadd.f32 0.0, %v1557
    %v1559 = vpop.f32.mrb[0].mxu0
    %v1560 = vadd.f32 0.0, %v1559
    %v1561 = vpop.f32.mrb[0].mxu0
    %v1562 = vadd.f32 0.0, %v1561
    %v1563 = vpop.f32.mrb[0].mxu0
    %v1564 = vadd.f32 0.0, %v1563
    %1565 = vdwg.mxu0
    %v1570 = vunpack.c.l.b16 %v1386
    %v1571 = vunpack.c.h.b16 %v1386
    %v1572 = vunpack.c.l.b16 %v1387
    %v1573 = vunpack.c.h.b16 %v1387
    %v1574 = vunpack.c.l.b16 %v1388
    %v1575 = vunpack.c.h.b16 %v1388
    %v1576 = vunpack.c.l.b16 %v1389
    %v1577 = vunpack.c.h.b16 %v1389
    %v1578 = vpack.c.b16 %v1572, %v1570
    %v1579 = vpack.c.b16 %v1573, %v1571
    %v1580 = vpack.c.b16 %v1576, %v1574
    %v1581 = vpack.c.b16 %v1577, %v1575
    %v1587 = vsel %vm217, %v1446, 0
    %1589 = vmatprep.subr.bf16.mxu0 %v1579
    %1590 = vmatpush1.bf16.msra.mxu0 %v1578
    %1591 = vmatprep.subr.bf16.mxu0 %v1581
    %1592 = vmatpush1.bf16.msra.mxu0 %v1580
    %1593 = vmatprep.subr.bf16.mxu0 0
    %1594 = vmatpush1.bf16.msra.mxu0 0
    %1595 = vmatprep.subr.bf16.mxu0 0
    %1596 = vmatpush1.bf16.msra.mxu0 0
    %1597 = vmatprep.subr.bf16.mxu0 0
    %1598 = vmatpush1.bf16.msra.mxu0 0
    %1599 = vmatprep.subr.bf16.mxu0 0
    %1600 = vmatpush1.bf16.msra.mxu0 0
    %1601 = vmatprep.subr.bf16.mxu0 0
    %1602 = vmatpush1.bf16.msra.mxu0 0
    %1603 = vmatprep.subr.bf16.mxu0 0
    %1604 = vmatpush1.bf16.msra.mxu0 0
    %1605 = vmatprep.subr.bf16.mxu0 0
    %1606 = vmatpush1.bf16.msra.mxu0 0
    %1607 = vmatprep.subr.bf16.mxu0 0
    %1608 = vmatpush1.bf16.msra.mxu0 0
    %1609 = vmatprep.subr.bf16.mxu0 0
    %1610 = vmatpush1.bf16.msra.mxu0 0
    %1611 = vmatprep.subr.bf16.mxu0 0
    %1612 = vmatpush1.bf16.msra.mxu0 0
    %1613 = vmatprep.subr.bf16.mxu0 0
    %1614 = vmatpush1.bf16.msra.mxu0 0
    %1615 = vmatprep.subr.bf16.mxu0 0
    %1616 = vmatpush1.bf16.msra.mxu0 0
    %1617 = vmatprep.subr.bf16.mxu0 0
    %1618 = vmatpush1.bf16.msra.mxu0 0
    %1619 = vmatprep.subr.bf16.mxu0 0
    %1620 = vmatpush1.bf16.msra.mxu0 0
    %1621 = vmatprep.mubr.bf16.mxu0 0
    %1622 = vmatmul.mubr.bf16.gmra.mrb[0].mxu0 %v1587
    %v1623 = vpop.f32.mrb[0].mxu0
    %v1624 = vadd.f32 %v1558, %v1623
    %v1625 = vpop.f32.mrb[0].mxu0
    %v1626 = vadd.f32 %v1560, %v1625
    %v1627 = vpop.f32.mrb[0].mxu0
    %v1628 = vadd.f32 %v1562, %v1627
    %v1629 = vpop.f32.mrb[0].mxu0
    %v1630 = vadd.f32 %v1564, %v1629
    %1631 = vdwg.mxu0
    %v1632 = vld [vmem:[%s6] sm:$0x3]
    %v1634 = vlaneseq
    %v1635 = vshrl.u32 %v1634, 7
    %v1636 = vsub.s32 0, %v1635
    %v1637 = vrot.slane %v1632, %v1636
    %v1638 = vlaneseq
    %v1639 = vshrl.u32 %v1638, 7
    %v1640 = vsub.s32 1, %v1639
    %v1641 = vrot.slane %v1632, %v1640
    %v1644 = vadd.f32 %v1624, %v1637
    %v1645 = vadd.f32 %v1626, %v1641
    %v1646 = vadd.f32 %v1628, %v1637
    %v1647 = vadd.f32 %v1630, %v1641
    %v1652 = vcombine.low %v1644, %v1645
    %v1653 = vcombine.high %v1644, %v1645
    %v1655 = vunpack.c.l.s4 1983009808
    %v1656 = vunpack.c.0.s8 %v1655
    %v1657 = vlaneseq
    %v1658 = vshrl.u32 %v1657, 7
    %v1659 = vsub.s32 %v1656, %v1658
    %v1660 = vrot.slane %v1652, %v1659
    %v1662 = vunpack.c.l.s4 1983009808
    %v1663 = vunpack.c.0.s8 %v1662
    %v1664 = vlaneseq
    %v1665 = vshrl.u32 %v1664, 7
    %v1666 = vsub.s32 %v1663, %v1665
    %v1667 = vrot.slane %v1653, %v1666
    %v1668 = vcombine.high %v1660, %v1660
    %v1669 = vcombine.high %v1667, %v1667
    %v1670 = vcombine.low %v1646, %v1647
    %v1671 = vcombine.high %v1646, %v1647
    %v1673 = vunpack.c.l.s4 1983009808
    %v1674 = vunpack.c.0.s8 %v1673
    %v1675 = vlaneseq
    %v1676 = vshrl.u32 %v1675, 7
    %v1677 = vsub.s32 %v1674, %v1676
    %v1678 = vrot.slane %v1670, %v1677
    %v1680 = vunpack.c.l.s4 1983009808
    %v1681 = vunpack.c.0.s8 %v1680
    %v1682 = vlaneseq
    %v1683 = vshrl.u32 %v1682, 7
    %v1684 = vsub.s32 %v1681, %v1683
    %v1685 = vrot.slane %v1671, %v1684
    %v1686 = vcombine.high %v1678, %v1678
    %v1687 = vcombine.high %v1685, %v1685
    %1696 = vst [vmem:[#allocation2] sm:$0xf] %v1660
    %1697 = vst [vmem:[#allocation2 + $0x4] sm:$0xf] %v1668
    %1698 = vst [vmem:[#allocation2 + $0x8] sm:$0xf] %v1667
    %1699 = vst [vmem:[#allocation2 + $0xc] sm:$0xf] %v1669
    %1700 = vst [vmem:[#allocation2 + $0x10] sm:$0xf] %v1678
    %1701 = vst [vmem:[#allocation2 + $0x14] sm:$0xf] %v1686
    %1702 = vst [vmem:[#allocation2 + $0x18] sm:$0xf] %v1685
    %1703 = vst [vmem:[#allocation2 + $0x1c] sm:$0xf] %v1687
    %v1704 = vld [vmem:[#allocation15] sm:$0xff]
    %v1705 = vld [vmem:[#allocation15 + $0x8] sm:$0xff]
    %v1706 = vld [vmem:[#allocation15 + $0x10] sm:$0xff]
    %v1707 = vld [vmem:[#allocation15 + $0x18] sm:$0xff]
    %v1708 = vld [vmem:[#allocation15 + $0x20] sm:$0xff]
    %v1709 = vld [vmem:[#allocation15 + $0x28] sm:$0xff]
    %v1710 = vld [vmem:[#allocation15 + $0x30] sm:$0xff]
    %v1711 = vld [vmem:[#allocation15 + $0x38] sm:$0xff]
    %v1720 = vunpack.c.l.b16 %v1704
    %v1721 = vunpack.c.h.b16 %v1704
    %v1722 = vunpack.c.l.b16 %v1705
    %v1723 = vunpack.c.h.b16 %v1705
    %v1724 = vunpack.c.l.b16 %v1706
    %v1725 = vunpack.c.h.b16 %v1706
    %v1726 = vunpack.c.l.b16 %v1707
    %v1727 = vunpack.c.h.b16 %v1707
    %v1728 = vunpack.c.l.b16 %v1708
    %v1729 = vunpack.c.h.b16 %v1708
    %v1730 = vunpack.c.l.b16 %v1709
    %v1731 = vunpack.c.h.b16 %v1709
    %v1732 = vunpack.c.l.b16 %v1710
    %v1733 = vunpack.c.h.b16 %v1710
    %v1734 = vunpack.c.l.b16 %v1711
    %v1735 = vunpack.c.h.b16 %v1711
    %v1736 = vpack.c.b16 %v1722, %v1720
    %v1737 = vpack.c.b16 %v1723, %v1721
    %v1738 = vpack.c.b16 %v1726, %v1724
    %v1739 = vpack.c.b16 %v1727, %v1725
    %v1740 = vpack.c.b16 %v1730, %v1728
    %v1741 = vpack.c.b16 %v1731, %v1729
    %v1742 = vpack.c.b16 %v1734, %v1732
    %v1743 = vpack.c.b16 %v1735, %v1733
    %1752 = vmatprep.subr.bf16.mxu0 %v1737
    %1753 = vmatpush1.bf16.msra.mxu0 %v1736
    %1754 = vmatprep.subr.bf16.mxu0 %v1739
    %1755 = vmatpush1.bf16.msra.mxu0 %v1738
    %1756 = vmatprep.subr.bf16.mxu0 %v1741
    %1757 = vmatpush1.bf16.msra.mxu0 %v1740
    %1758 = vmatprep.subr.bf16.mxu0 %v1743
    %1759 = vmatpush1.bf16.msra.mxu0 %v1742
    %1760 = vmatprep.subr.bf16.mxu0 0
    %1761 = vmatpush1.bf16.msra.mxu0 0
    %1762 = vmatprep.subr.bf16.mxu0 0
    %1763 = vmatpush1.bf16.msra.mxu0 0
    %1764 = vmatprep.subr.bf16.mxu0 0
    %1765 = vmatpush1.bf16.msra.mxu0 0
    %1766 = vmatprep.subr.bf16.mxu0 0
    %1767 = vmatpush1.bf16.msra.mxu0 0
    %1768 = vmatprep.subr.bf16.mxu0 0
    %1769 = vmatpush1.bf16.msra.mxu0 0
    %1770 = vmatprep.subr.bf16.mxu0 0
    %1771 = vmatpush1.bf16.msra.mxu0 0
    %1772 = vmatprep.subr.bf16.mxu0 0
    %1773 = vmatpush1.bf16.msra.mxu0 0
    %1774 = vmatprep.subr.bf16.mxu0 0
    %1775 = vmatpush1.bf16.msra.mxu0 0
    %1776 = vmatprep.subr.bf16.mxu0 0
    %1777 = vmatpush1.bf16.msra.mxu0 0
    %1778 = vmatprep.subr.bf16.mxu0 0
    %1779 = vmatpush1.bf16.msra.mxu0 0
    %1780 = vmatprep.subr.bf16.mxu0 0
    %1781 = vmatpush1.bf16.msra.mxu0 0
    %1782 = vmatprep.subr.bf16.mxu0 0
    %1783 = vmatpush1.bf16.msra.mxu0 0
    %1784 = vmatprep.mubr.bf16.mxu0 0
    %1785 = vmatmul.mubr.bf16.gmra.mrb[0].mxu0 %v370
    %v1786 = vpop.f32.mrb[0].mxu0
    %v1787 = vadd.f32 0.0, %v1786
    %v1788 = vpop.f32.mrb[0].mxu0
    %v1789 = vadd.f32 0.0, %v1788
    %v1790 = vpop.f32.mrb[0].mxu0
    %v1791 = vpop.f32.mrb[0].mxu0
    %1792 = vdwg.mxu0
    %v1793 = vld [vmem:[#allocation2] sm:$0x3]
    %v1794 = vadd.f32 %v1793, %v1787
    %v1795 = vld [vmem:[%s415 + $0x2] sm:$0x3]
    %v1796 = vadd.f32 %v1795, %v1789
    %v1797 = vxor.u32 %v1794, 2147483648
    %v1798 = vmul.f32 %v1797, 1.442695
    %v1799 = vpow.pop %v1798
    %v1800 = vadd.f32 %v1799, 1.0
    %v1801 = vrcp.pop %v1800
    %v1802 = vmul.f32 1.0, %v1801
    %v1803 = vxor.u32 %v1796, 2147483648
    %v1804 = vmul.f32 %v1803, 1.442695
    %v1805 = vpow.pop %v1804
    %v1806 = vadd.f32 %v1805, 1.0
    %v1807 = vrcp.pop %v1806
    %v1808 = vmul.f32 1.0, %v1807
    %v1809 = vmul.f32 %v1802, 0.0
    %v1810 = vtanh.pop %v1794
    %1812 = vrot.lane.b32.xlu0 %v1810, 32
    %v1813 = vpop.permute.xlu0 %1812
    %v1815 = vmul.f32 %v1802, %v1813
    %1817 = vrot.lane.b32.xlu0 %v1815, 32
    %v1818 = vpop.permute.xlu0 %1817
    %v1820 = vadd.f32 %v1809, %v1818
    %v1821 = vmul.f32 %v1808, 0.0
    %v1822 = vtanh.pop %v1796
    %1824 = vrot.lane.b32.xlu0 %v1822, 32
    %v1825 = vpop.permute.xlu0 %1824
    %v1827 = vmul.f32 %v1808, %v1825
    %1829 = vrot.lane.b32.xlu0 %v1827, 32
    %v1830 = vpop.permute.xlu0 %1829
    %v1832 = vadd.f32 %v1821, %v1830
    %v1833 = vtanh.pop %v1820
    %1835 = vrot.lane.b32.xlu0 %v1833, 32
    %v1836 = vpop.permute.xlu0 %1835
    %v1838 = vmul.f32 %v1802, %v1836
    %v1839 = vtanh.pop %v1832
    %1841 = vrot.lane.b32.xlu0 %v1839, 32
    %v1842 = vpop.permute.xlu0 %1841
    %v1844 = vmul.f32 %v1808, %v1842
    %v1847 = vunpack.c.l.s4 1983009808
    %v1848 = vunpack.c.0.s8 %v1847
    %v1849 = vlaneseq
    %v1850 = vshrl.u32 %v1849, 7
    %v1851 = vsub.s32 %v1848, %v1850
    %v1852 = vrot.slane %v1838, %v1851
    %1853 = vrot.lane.b32.xlu0 %v1852, 64
    %v1854 = vpop.permute.xlu0 %1853
    %1856 = vst.msk [vmem:[#allocation5] sm:$0x3] %vm477, %v1854
    %v1859 = vunpack.c.l.s4 1983009808
    %v1860 = vunpack.c.0.s8 %v1859
    %v1861 = vlaneseq
    %v1862 = vshrl.u32 %v1861, 7
    %v1863 = vsub.s32 %v1860, %v1862
    %v1864 = vrot.slane %v1844, %v1863
    %1865 = vrot.lane.b32.xlu0 %v1864, 64
    %v1866 = vpop.permute.xlu0 %1865
    %s1868 = scalar_lea.vmem [#allocation6], 14
    %1869 = vst.msk [vmem:[%s1868] sm:$0x3] %vm477, %v1866
    %1870 = vrot.lane.b32.xlu0 %v1864, 96
    %v1871 = vpop.permute.xlu0 %1870
    %v1873 = vsel %vm217, %v1854, %v1871
    %v1874 = vpack.c.bf16 %v1873, %v1873
    %v1876 = vsel %vm368, %v1874, 0
    %1878 = vmatprep.subr.bf16.mxu0 %v1737
    %1879 = vmatpush1.bf16.msra.mxu0 %v1736
    %1880 = vmatprep.subr.bf16.mxu0 %v1739
    %1881 = vmatpush1.bf16.msra.mxu0 %v1738
    %1882 = vmatprep.subr.bf16.mxu0 %v1741
    %1883 = vmatpush1.bf16.msra.mxu0 %v1740
    %1884 = vmatprep.subr.bf16.mxu0 %v1743
    %1885 = vmatpush1.bf16.msra.mxu0 %v1742
    %1886 = vmatprep.subr.bf16.mxu0 0
    %1887 = vmatpush1.bf16.msra.mxu0 0
    %1888 = vmatprep.subr.bf16.mxu0 0
    %1889 = vmatpush1.bf16.msra.mxu0 0
    %1890 = vmatprep.subr.bf16.mxu0 0
    %1891 = vmatpush1.bf16.msra.mxu0 0
    %1892 = vmatprep.subr.bf16.mxu0 0
    %1893 = vmatpush1.bf16.msra.mxu0 0
    %1894 = vmatprep.subr.bf16.mxu0 0
    %1895 = vmatpush1.bf16.msra.mxu0 0
    %1896 = vmatprep.subr.bf16.mxu0 0
    %1897 = vmatpush1.bf16.msra.mxu0 0
    %1898 = vmatprep.subr.bf16.mxu0 0
    %1899 = vmatpush1.bf16.msra.mxu0 0
    %1900 = vmatprep.subr.bf16.mxu0 0
    %1901 = vmatpush1.bf16.msra.mxu0 0
    %1902 = vmatprep.subr.bf16.mxu0 0
    %1903 = vmatpush1.bf16.msra.mxu0 0
    %1904 = vmatprep.subr.bf16.mxu0 0
    %1905 = vmatpush1.bf16.msra.mxu0 0
    %1906 = vmatprep.subr.bf16.mxu0 0
    %1907 = vmatpush1.bf16.msra.mxu0 0
    %1908 = vmatprep.subr.bf16.mxu0 0
    %1909 = vmatpush1.bf16.msra.mxu0 0
    %1910 = vmatprep.mubr.bf16.mxu0 0
    %1911 = vmatmul.mubr.bf16.gmra.mrb[0].mxu0 %v1876
    %v1912 = vpop.f32.mrb[0].mxu0
    %v1913 = vadd.f32 0.0, %v1912
    %v1914 = vpop.f32.mrb[0].mxu0
    %v1915 = vadd.f32 0.0, %v1914
    %v1916 = vpop.f32.mrb[0].mxu0
    %v1917 = vpop.f32.mrb[0].mxu0
    %1918 = vdwg.mxu0
    %v1919 = vld [vmem:[%s541] sm:$0x3]
    %v1920 = vadd.f32 %v1919, %v1913
    %v1921 = vld [vmem:[%s544 + $0x2] sm:$0x3]
    %v1922 = vadd.f32 %v1921, %v1915
    %v1923 = vxor.u32 %v1920, 2147483648
    %v1924 = vmul.f32 %v1923, 1.442695
    %v1925 = vpow.pop %v1924
    %v1926 = vadd.f32 %v1925, 1.0
    %v1927 = vrcp.pop %v1926
    %v1928 = vmul.f32 1.0, %v1927
    %v1929 = vxor.u32 %v1922, 2147483648
    %v1930 = vmul.f32 %v1929, 1.442695
    %v1931 = vpow.pop %v1930
    %v1932 = vadd.f32 %v1931, 1.0
    %v1933 = vrcp.pop %v1932
    %v1934 = vmul.f32 1.0, %v1933
    %v1935 = vmul.f32 %v1928, %v1820
    %v1936 = vtanh.pop %v1920
    %1938 = vrot.lane.b32.xlu0 %v1936, 32
    %v1939 = vpop.permute.xlu0 %1938
    %v1941 = vmul.f32 %v1928, %v1939
    %1943 = vrot.lane.b32.xlu0 %v1941, 32
    %v1944 = vpop.permute.xlu0 %1943
    %v1946 = vadd.f32 %v1935, %v1944
    %v1947 = vmul.f32 %v1934, %v1832
    %v1948 = vtanh.pop %v1922
    %1950 = vrot.lane.b32.xlu0 %v1948, 32
    %v1951 = vpop.permute.xlu0 %1950
    %v1953 = vmul.f32 %v1934, %v1951
    %1955 = vrot.lane.b32.xlu0 %v1953, 32
    %v1956 = vpop.permute.xlu0 %1955
    %v1958 = vadd.f32 %v1947, %v1956
    %v1959 = vtanh.pop %v1946
    %1961 = vrot.lane.b32.xlu0 %v1959, 32
    %v1962 = vpop.permute.xlu0 %1961
    %v1964 = vmul.f32 %v1928, %v1962
    %v1965 = vtanh.pop %v1958
    %1967 = vrot.lane.b32.xlu0 %v1965, 32
    %v1968 = vpop.permute.xlu0 %1967
    %v1970 = vmul.f32 %v1934, %v1968
    %v1973 = vunpack.c.l.s4 1983009808
    %v1974 = vunpack.c.0.s8 %v1973
    %v1975 = vlaneseq
    %v1976 = vshrl.u32 %v1975, 7
    %v1977 = vsub.s32 %v1974, %v1976
    %v1978 = vrot.slane %v1964, %v1977
    %1979 = vrot.lane.b32.xlu0 %v1978, 64
    %v1980 = vpop.permute.xlu0 %1979
    %s1982 = scalar_lea.vmem [#allocation5], 2
    %1983 = vst.msk [vmem:[%s1982] sm:$0x3] %vm477, %v1980
    %v1986 = vunpack.c.l.s4 1983009808
    %v1987 = vunpack.c.0.s8 %v1986
    %v1988 = vlaneseq
    %v1989 = vshrl.u32 %v1988, 7
    %v1990 = vsub.s32 %v1987, %v1989
    %v1991 = vrot.slane %v1970, %v1990
    %1992 = vrot.lane.b32.xlu0 %v1991, 64
    %v1993 = vpop.permute.xlu0 %1992
    %s1995 = scalar_lea.vmem [#allocation6], 12
    %1996 = vst.msk [vmem:[%s1995] sm:$0x3] %vm477, %v1993
    %1997 = vrot.lane.b32.xlu0 %v1991, 96
    %v1998 = vpop.permute.xlu0 %1997
    %v2000 = vsel %vm217, %v1980, %v1998
    %v2001 = vpack.c.bf16 %v2000, %v2000
    %v2003 = vsel %vm368, %v2001, 0
    %2005 = vmatprep.subr.bf16.mxu0 %v1737
    %2006 = vmatpush1.bf16.msra.mxu0 %v1736
    %2007 = vmatprep.subr.bf16.mxu0 %v1739
    %2008 = vmatpush1.bf16.msra.mxu0 %v1738
    %2009 = vmatprep.subr.bf16.mxu0 %v1741
    %2010 = vmatpush1.bf16.msra.mxu0 %v1740
    %2011 = vmatprep.subr.bf16.mxu0 %v1743
    %2012 = vmatpush1.bf16.msra.mxu0 %v1742
    %2013 = vmatprep.subr.bf16.mxu0 0
    %2014 = vmatpush1.bf16.msra.mxu0 0
    %2015 = vmatprep.subr.bf16.mxu0 0
    %2016 = vmatpush1.bf16.msra.mxu0 0
    %2017 = vmatprep.subr.bf16.mxu0 0
    %2018 = vmatpush1.bf16.msra.mxu0 0
    %2019 = vmatprep.subr.bf16.mxu0 0
    %2020 = vmatpush1.bf16.msra.mxu0 0
    %2021 = vmatprep.subr.bf16.mxu0 0
    %2022 = vmatpush1.bf16.msra.mxu0 0
    %2023 = vmatprep.subr.bf16.mxu0 0
    %2024 = vmatpush1.bf16.msra.mxu0 0
    %2025 = vmatprep.subr.bf16.mxu0 0
    %2026 = vmatpush1.bf16.msra.mxu0 0
    %2027 = vmatprep.subr.bf16.mxu0 0
    %2028 = vmatpush1.bf16.msra.mxu0 0
    %2029 = vmatprep.subr.bf16.mxu0 0
    %2030 = vmatpush1.bf16.msra.mxu0 0
    %2031 = vmatprep.subr.bf16.mxu0 0
    %2032 = vmatpush1.bf16.msra.mxu0 0
    %2033 = vmatprep.subr.bf16.mxu0 0
    %2034 = vmatpush1.bf16.msra.mxu0 0
    %2035 = vmatprep.subr.bf16.mxu0 0
    %2036 = vmatpush1.bf16.msra.mxu0 0
    %2037 = vmatprep.mubr.bf16.mxu0 0
    %2038 = vmatmul.mubr.bf16.gmra.mrb[0].mxu0 %v2003
    %v2039 = vpop.f32.mrb[0].mxu0
    %v2040 = vadd.f32 0.0, %v2039
    %v2041 = vpop.f32.mrb[0].mxu0
    %v2042 = vadd.f32 0.0, %v2041
    %v2043 = vpop.f32.mrb[0].mxu0
    %v2044 = vpop.f32.mrb[0].mxu0
    %2045 = vdwg.mxu0
    %v2046 = vld [vmem:[%s670] sm:$0x3]
    %v2047 = vadd.f32 %v2046, %v2040
    %v2048 = vld [vmem:[%s673 + $0x2] sm:$0x3]
    %v2049 = vadd.f32 %v2048, %v2042
    %v2050 = vxor.u32 %v2047, 2147483648
    %v2051 = vmul.f32 %v2050, 1.442695
    %v2052 = vpow.pop %v2051
    %v2053 = vadd.f32 %v2052, 1.0
    %v2054 = vrcp.pop %v2053
    %v2055 = vmul.f32 1.0, %v2054
    %v2056 = vxor.u32 %v2049, 2147483648
    %v2057 = vmul.f32 %v2056, 1.442695
    %v2058 = vpow.pop %v2057
    %v2059 = vadd.f32 %v2058, 1.0
    %v2060 = vrcp.pop %v2059
    %v2061 = vmul.f32 1.0, %v2060
    %v2062 = vmul.f32 %v2055, %v1946
    %v2063 = vtanh.pop %v2047
    %2065 = vrot.lane.b32.xlu0 %v2063, 32
    %v2066 = vpop.permute.xlu0 %2065
    %v2068 = vmul.f32 %v2055, %v2066
    %2070 = vrot.lane.b32.xlu0 %v2068, 32
    %v2071 = vpop.permute.xlu0 %2070
    %v2073 = vadd.f32 %v2062, %v2071
    %v2074 = vmul.f32 %v2061, %v1958
    %v2075 = vtanh.pop %v2049
    %2077 = vrot.lane.b32.xlu0 %v2075, 32
    %v2078 = vpop.permute.xlu0 %2077
    %v2080 = vmul.f32 %v2061, %v2078
    %2082 = vrot.lane.b32.xlu0 %v2080, 32
    %v2083 = vpop.permute.xlu0 %2082
    %v2085 = vadd.f32 %v2074, %v2083
    %v2086 = vtanh.pop %v2073
    %2088 = vrot.lane.b32.xlu0 %v2086, 32
    %v2089 = vpop.permute.xlu0 %2088
    %v2091 = vmul.f32 %v2055, %v2089
    %v2092 = vtanh.pop %v2085
    %2094 = vrot.lane.b32.xlu0 %v2092, 32
    %v2095 = vpop.permute.xlu0 %2094
    %v2097 = vmul.f32 %v2061, %v2095
    %v2100 = vunpack.c.l.s4 1983009808
    %v2101 = vunpack.c.0.s8 %v2100
    %v2102 = vlaneseq
    %v2103 = vshrl.u32 %v2102, 7
    %v2104 = vsub.s32 %v2101, %v2103
    %v2105 = vrot.slane %v2091, %v2104
    %2106 = vrot.lane.b32.xlu0 %v2105, 64
    %v2107 = vpop.permute.xlu0 %2106
    %s2109 = scalar_lea.vmem [#allocation5], 4
    %2110 = vst.msk [vmem:[%s2109] sm:$0x3] %vm477, %v2107
    %v2113 = vunpack.c.l.s4 1983009808
    %v2114 = vunpack.c.0.s8 %v2113
    %v2115 = vlaneseq
    %v2116 = vshrl.u32 %v2115, 7
    %v2117 = vsub.s32 %v2114, %v2116
    %v2118 = vrot.slane %v2097, %v2117
    %2119 = vrot.lane.b32.xlu0 %v2118, 64
    %v2120 = vpop.permute.xlu0 %2119
    %s2122 = scalar_lea.vmem [#allocation6], 10
    %2123 = vst.msk [vmem:[%s2122] sm:$0x3] %vm477, %v2120
    %2124 = vrot.lane.b32.xlu0 %v2118, 96
    %v2125 = vpop.permute.xlu0 %2124
    %v2127 = vsel %vm217, %v2107, %v2125
    %v2128 = vpack.c.bf16 %v2127, %v2127
    %v2130 = vsel %vm368, %v2128, 0
    %2132 = vmatprep.subr.bf16.mxu0 %v1737
    %2133 = vmatpush1.bf16.msra.mxu0 %v1736
    %2134 = vmatprep.subr.bf16.mxu0 %v1739
    %2135 = vmatpush1.bf16.msra.mxu0 %v1738
    %2136 = vmatprep.subr.bf16.mxu0 %v1741
    %2137 = vmatpush1.bf16.msra.mxu0 %v1740
    %2138 = vmatprep.subr.bf16.mxu0 %v1743
    %2139 = vmatpush1.bf16.msra.mxu0 %v1742
    %2140 = vmatprep.subr.bf16.mxu0 0
    %2141 = vmatpush1.bf16.msra.mxu0 0
    %2142 = vmatprep.subr.bf16.mxu0 0
    %2143 = vmatpush1.bf16.msra.mxu0 0
    %2144 = vmatprep.subr.bf16.mxu0 0
    %2145 = vmatpush1.bf16.msra.mxu0 0
    %2146 = vmatprep.subr.bf16.mxu0 0
    %2147 = vmatpush1.bf16.msra.mxu0 0
    %2148 = vmatprep.subr.bf16.mxu0 0
    %2149 = vmatpush1.bf16.msra.mxu0 0
    %2150 = vmatprep.subr.bf16.mxu0 0
    %2151 = vmatpush1.bf16.msra.mxu0 0
    %2152 = vmatprep.subr.bf16.mxu0 0
    %2153 = vmatpush1.bf16.msra.mxu0 0
    %2154 = vmatprep.subr.bf16.mxu0 0
    %2155 = vmatpush1.bf16.msra.mxu0 0
    %2156 = vmatprep.subr.bf16.mxu0 0
    %2157 = vmatpush1.bf16.msra.mxu0 0
    %2158 = vmatprep.subr.bf16.mxu0 0
    %2159 = vmatpush1.bf16.msra.mxu0 0
    %2160 = vmatprep.subr.bf16.mxu0 0
    %2161 = vmatpush1.bf16.msra.mxu0 0
    %2162 = vmatprep.subr.bf16.mxu0 0
    %2163 = vmatpush1.bf16.msra.mxu0 0
    %2164 = vmatprep.mubr.bf16.mxu0 0
    %2165 = vmatmul.mubr.bf16.gmra.mrb[0].mxu0 %v2130
    %v2166 = vpop.f32.mrb[0].mxu0
    %v2167 = vadd.f32 0.0, %v2166
    %v2168 = vpop.f32.mrb[0].mxu0
    %v2169 = vadd.f32 0.0, %v2168
    %v2170 = vpop.f32.mrb[0].mxu0
    %v2171 = vpop.f32.mrb[0].mxu0
    %2172 = vdwg.mxu0
    %v2173 = vld [vmem:[%s799] sm:$0x3]
    %v2174 = vadd.f32 %v2173, %v2167
    %v2175 = vld [vmem:[%s802 + $0x2] sm:$0x3]
    %v2176 = vadd.f32 %v2175, %v2169
    %v2177 = vxor.u32 %v2174, 2147483648
    %v2178 = vmul.f32 %v2177, 1.442695
    %v2179 = vpow.pop %v2178
    %v2180 = vadd.f32 %v2179, 1.0
    %v2181 = vrcp.pop %v2180
    %v2182 = vmul.f32 1.0, %v2181
    %v2183 = vxor.u32 %v2176, 2147483648
    %v2184 = vmul.f32 %v2183, 1.442695
    %v2185 = vpow.pop %v2184
    %v2186 = vadd.f32 %v2185, 1.0
    %v2187 = vrcp.pop %v2186
    %v2188 = vmul.f32 1.0, %v2187
    %v2189 = vmul.f32 %v2182, %v2073
    %v2190 = vtanh.pop %v2174
    %2192 = vrot.lane.b32.xlu0 %v2190, 32
    %v2193 = vpop.permute.xlu0 %2192
    %v2195 = vmul.f32 %v2182, %v2193
    %2197 = vrot.lane.b32.xlu0 %v2195, 32
    %v2198 = vpop.permute.xlu0 %2197
    %v2200 = vadd.f32 %v2189, %v2198
    %v2201 = vmul.f32 %v2188, %v2085
    %v2202 = vtanh.pop %v2176
    %2204 = vrot.lane.b32.xlu0 %v2202, 32
    %v2205 = vpop.permute.xlu0 %2204
    %v2207 = vmul.f32 %v2188, %v2205
    %2209 = vrot.lane.b32.xlu0 %v2207, 32
    %v2210 = vpop.permute.xlu0 %2209
    %v2212 = vadd.f32 %v2201, %v2210
    %v2213 = vtanh.pop %v2200
    %2215 = vrot.lane.b32.xlu0 %v2213, 32
    %v2216 = vpop.permute.xlu0 %2215
    %v2218 = vmul.f32 %v2182, %v2216
    %v2219 = vtanh.pop %v2212
    %2221 = vrot.lane.b32.xlu0 %v2219, 32
    %v2222 = vpop.permute.xlu0 %2221
    %v2224 = vmul.f32 %v2188, %v2222
    %v2227 = vunpack.c.l.s4 1983009808
    %v2228 = vunpack.c.0.s8 %v2227
    %v2229 = vlaneseq
    %v2230 = vshrl.u32 %v2229, 7
    %v2231 = vsub.s32 %v2228, %v2230
    %v2232 = vrot.slane %v2218, %v2231
    %2233 = vrot.lane.b32.xlu0 %v2232, 64
    %v2234 = vpop.permute.xlu0 %2233
    %s2236 = scalar_lea.vmem [#allocation5], 6
    %2237 = vst.msk [vmem:[%s2236] sm:$0x3] %vm477, %v2234
    %v2240 = vunpack.c.l.s4 1983009808
    %v2241 = vunpack.c.0.s8 %v2240
    %v2242 = vlaneseq
    %v2243 = vshrl.u32 %v2242, 7
    %v2244 = vsub.s32 %v2241, %v2243
    %v2245 = vrot.slane %v2224, %v2244
    %2246 = vrot.lane.b32.xlu0 %v2245, 64
    %v2247 = vpop.permute.xlu0 %2246
    %s2249 = scalar_lea.vmem [#allocation6], 8
    %2250 = vst.msk [vmem:[%s2249] sm:$0x3] %vm477, %v2247
    %2251 = vrot.lane.b32.xlu0 %v2245, 96
    %v2252 = vpop.permute.xlu0 %2251
    %v2254 = vsel %vm217, %v2234, %v2252
    %v2255 = vpack.c.bf16 %v2254, %v2254
    %v2257 = vsel %vm368, %v2255, 0
    %2259 = vmatprep.subr.bf16.mxu0 %v1737
    %2260 = vmatpush1.bf16.msra.mxu0 %v1736
    %2261 = vmatprep.subr.bf16.mxu0 %v1739
    %2262 = vmatpush1.bf16.msra.mxu0 %v1738
    %2263 = vmatprep.subr.bf16.mxu0 %v1741
    %2264 = vmatpush1.bf16.msra.mxu0 %v1740
    %2265 = vmatprep.subr.bf16.mxu0 %v1743
    %2266 = vmatpush1.bf16.msra.mxu0 %v1742
    %2267 = vmatprep.subr.bf16.mxu0 0
    %2268 = vmatpush1.bf16.msra.mxu0 0
    %2269 = vmatprep.subr.bf16.mxu0 0
    %2270 = vmatpush1.bf16.msra.mxu0 0
    %2271 = vmatprep.subr.bf16.mxu0 0
    %2272 = vmatpush1.bf16.msra.mxu0 0
    %2273 = vmatprep.subr.bf16.mxu0 0
    %2274 = vmatpush1.bf16.msra.mxu0 0
    %2275 = vmatprep.subr.bf16.mxu0 0
    %2276 = vmatpush1.bf16.msra.mxu0 0
    %2277 = vmatprep.subr.bf16.mxu0 0
    %2278 = vmatpush1.bf16.msra.mxu0 0
    %2279 = vmatprep.subr.bf16.mxu0 0
    %2280 = vmatpush1.bf16.msra.mxu0 0
    %2281 = vmatprep.subr.bf16.mxu0 0
    %2282 = vmatpush1.bf16.msra.mxu0 0
    %2283 = vmatprep.subr.bf16.mxu0 0
    %2284 = vmatpush1.bf16.msra.mxu0 0
    %2285 = vmatprep.subr.bf16.mxu0 0
    %2286 = vmatpush1.bf16.msra.mxu0 0
    %2287 = vmatprep.subr.bf16.mxu0 0
    %2288 = vmatpush1.bf16.msra.mxu0 0
    %2289 = vmatprep.subr.bf16.mxu0 0
    %2290 = vmatpush1.bf16.msra.mxu0 0
    %2291 = vmatprep.mubr.bf16.mxu0 0
    %2292 = vmatmul.mubr.bf16.gmra.mrb[0].mxu0 %v2257
    %v2293 = vpop.f32.mrb[0].mxu0
    %v2294 = vadd.f32 0.0, %v2293
    %v2295 = vpop.f32.mrb[0].mxu0
    %v2296 = vadd.f32 0.0, %v2295
    %v2297 = vpop.f32.mrb[0].mxu0
    %v2298 = vpop.f32.mrb[0].mxu0
    %2299 = vdwg.mxu0
    %v2300 = vld [vmem:[%s802] sm:$0x3]
    %v2301 = vadd.f32 %v2300, %v2294
    %v2302 = vld [vmem:[%s799 + $0x2] sm:$0x3]
    %v2303 = vadd.f32 %v2302, %v2296
    %v2304 = vxor.u32 %v2301, 2147483648
    %v2305 = vmul.f32 %v2304, 1.442695
    %v2306 = vpow.pop %v2305
    %v2307 = vadd.f32 %v2306, 1.0
    %v2308 = vrcp.pop %v2307
    %v2309 = vmul.f32 1.0, %v2308
    %v2310 = vxor.u32 %v2303, 2147483648
    %v2311 = vmul.f32 %v2310, 1.442695
    %v2312 = vpow.pop %v2311
    %v2313 = vadd.f32 %v2312, 1.0
    %v2314 = vrcp.pop %v2313
    %v2315 = vmul.f32 1.0, %v2314
    %v2316 = vmul.f32 %v2309, %v2200
    %v2317 = vtanh.pop %v2301
    %2319 = vrot.lane.b32.xlu0 %v2317, 32
    %v2320 = vpop.permute.xlu0 %2319
    %v2322 = vmul.f32 %v2309, %v2320
    %2324 = vrot.lane.b32.xlu0 %v2322, 32
    %v2325 = vpop.permute.xlu0 %2324
    %v2327 = vadd.f32 %v2316, %v2325
    %v2328 = vmul.f32 %v2315, %v2212
    %v2329 = vtanh.pop %v2303
    %2331 = vrot.lane.b32.xlu0 %v2329, 32
    %v2332 = vpop.permute.xlu0 %2331
    %v2334 = vmul.f32 %v2315, %v2332
    %2336 = vrot.lane.b32.xlu0 %v2334, 32
    %v2337 = vpop.permute.xlu0 %2336
    %v2339 = vadd.f32 %v2328, %v2337
    %v2340 = vtanh.pop %v2327
    %2342 = vrot.lane.b32.xlu0 %v2340, 32
    %v2343 = vpop.permute.xlu0 %2342
    %v2345 = vmul.f32 %v2309, %v2343
    %v2346 = vtanh.pop %v2339
    %2348 = vrot.lane.b32.xlu0 %v2346, 32
    %v2349 = vpop.permute.xlu0 %2348
    %v2351 = vmul.f32 %v2315, %v2349
    %v2354 = vunpack.c.l.s4 1983009808
    %v2355 = vunpack.c.0.s8 %v2354
    %v2356 = vlaneseq
    %v2357 = vshrl.u32 %v2356, 7
    %v2358 = vsub.s32 %v2355, %v2357
    %v2359 = vrot.slane %v2345, %v2358
    %2360 = vrot.lane.b32.xlu0 %v2359, 64
    %v2361 = vpop.permute.xlu0 %2360
    %s2363 = scalar_lea.vmem [#allocation5], 8
    %2364 = vst.msk [vmem:[%s2363] sm:$0x3] %vm477, %v2361
    %v2367 = vunpack.c.l.s4 1983009808
    %v2368 = vunpack.c.0.s8 %v2367
    %v2369 = vlaneseq
    %v2370 = vshrl.u32 %v2369, 7
    %v2371 = vsub.s32 %v2368, %v2370
    %v2372 = vrot.slane %v2351, %v2371
    %2373 = vrot.lane.b32.xlu0 %v2372, 64
    %v2374 = vpop.permute.xlu0 %2373
    %s2376 = scalar_lea.vmem [#allocation6], 6
    %2377 = vst.msk [vmem:[%s2376] sm:$0x3] %vm477, %v2374
    %2378 = vrot.lane.b32.xlu0 %v2372, 96
    %v2379 = vpop.permute.xlu0 %2378
    %v2381 = vsel %vm217, %v2361, %v2379
    %v2382 = vpack.c.bf16 %v2381, %v2381
    %v2384 = vsel %vm368, %v2382, 0
    %2386 = vmatprep.subr.bf16.mxu0 %v1737
    %2387 = vmatpush1.bf16.msra.mxu0 %v1736
    %2388 = vmatprep.subr.bf16.mxu0 %v1739
    %2389 = vmatpush1.bf16.msra.mxu0 %v1738
    %2390 = vmatprep.subr.bf16.mxu0 %v1741
    %2391 = vmatpush1.bf16.msra.mxu0 %v1740
    %2392 = vmatprep.subr.bf16.mxu0 %v1743
    %2393 = vmatpush1.bf16.msra.mxu0 %v1742
    %2394 = vmatprep.subr.bf16.mxu0 0
    %2395 = vmatpush1.bf16.msra.mxu0 0
    %2396 = vmatprep.subr.bf16.mxu0 0
    %2397 = vmatpush1.bf16.msra.mxu0 0
    %2398 = vmatprep.subr.bf16.mxu0 0
    %2399 = vmatpush1.bf16.msra.mxu0 0
    %2400 = vmatprep.subr.bf16.mxu0 0
    %2401 = vmatpush1.bf16.msra.mxu0 0
    %2402 = vmatprep.subr.bf16.mxu0 0
    %2403 = vmatpush1.bf16.msra.mxu0 0
    %2404 = vmatprep.subr.bf16.mxu0 0
    %2405 = vmatpush1.bf16.msra.mxu0 0
    %2406 = vmatprep.subr.bf16.mxu0 0
    %2407 = vmatpush1.bf16.msra.mxu0 0
    %2408 = vmatprep.subr.bf16.mxu0 0
    %2409 = vmatpush1.bf16.msra.mxu0 0
    %2410 = vmatprep.subr.bf16.mxu0 0
    %2411 = vmatpush1.bf16.msra.mxu0 0
    %2412 = vmatprep.subr.bf16.mxu0 0
    %2413 = vmatpush1.bf16.msra.mxu0 0
    %2414 = vmatprep.subr.bf16.mxu0 0
    %2415 = vmatpush1.bf16.msra.mxu0 0
    %2416 = vmatprep.subr.bf16.mxu0 0
    %2417 = vmatpush1.bf16.msra.mxu0 0
    %2418 = vmatprep.mubr.bf16.mxu0 0
    %2419 = vmatmul.mubr.bf16.gmra.mrb[0].mxu0 %v2384
    %v2420 = vpop.f32.mrb[0].mxu0
    %v2421 = vadd.f32 0.0, %v2420
    %v2422 = vpop.f32.mrb[0].mxu0
    %v2423 = vadd.f32 0.0, %v2422
    %v2424 = vpop.f32.mrb[0].mxu0
    %v2425 = vpop.f32.mrb[0].mxu0
    %2426 = vdwg.mxu0
    %v2427 = vld [vmem:[%s673] sm:$0x3]
    %v2428 = vadd.f32 %v2427, %v2421
    %v2429 = vld [vmem:[%s670 + $0x2] sm:$0x3]
    %v2430 = vadd.f32 %v2429, %v2423
    %v2431 = vxor.u32 %v2428, 2147483648
    %v2432 = vmul.f32 %v2431, 1.442695
    %v2433 = vpow.pop %v2432
    %v2434 = vadd.f32 %v2433, 1.0
    %v2435 = vrcp.pop %v2434
    %v2436 = vmul.f32 1.0, %v2435
    %v2437 = vxor.u32 %v2430, 2147483648
    %v2438 = vmul.f32 %v2437, 1.442695
    %v2439 = vpow.pop %v2438
    %v2440 = vadd.f32 %v2439, 1.0
    %v2441 = vrcp.pop %v2440
    %v2442 = vmul.f32 1.0, %v2441
    %v2443 = vmul.f32 %v2436, %v2327
    %v2444 = vtanh.pop %v2428
    %2446 = vrot.lane.b32.xlu0 %v2444, 32
    %v2447 = vpop.permute.xlu0 %2446
    %v2449 = vmul.f32 %v2436, %v2447
    %2451 = vrot.lane.b32.xlu0 %v2449, 32
    %v2452 = vpop.permute.xlu0 %2451
    %v2454 = vadd.f32 %v2443, %v2452
    %v2455 = vmul.f32 %v2442, %v2339
    %v2456 = vtanh.pop %v2430
    %2458 = vrot.lane.b32.xlu0 %v2456, 32
    %v2459 = vpop.permute.xlu0 %2458
    %v2461 = vmul.f32 %v2442, %v2459
    %2463 = vrot.lane.b32.xlu0 %v2461, 32
    %v2464 = vpop.permute.xlu0 %2463
    %v2466 = vadd.f32 %v2455, %v2464
    %v2467 = vtanh.pop %v2454
    %2469 = vrot.lane.b32.xlu0 %v2467, 32
    %v2470 = vpop.permute.xlu0 %2469
    %v2472 = vmul.f32 %v2436, %v2470
    %v2473 = vtanh.pop %v2466
    %2475 = vrot.lane.b32.xlu0 %v2473, 32
    %v2476 = vpop.permute.xlu0 %2475
    %v2478 = vmul.f32 %v2442, %v2476
    %v2481 = vunpack.c.l.s4 1983009808
    %v2482 = vunpack.c.0.s8 %v2481
    %v2483 = vlaneseq
    %v2484 = vshrl.u32 %v2483, 7
    %v2485 = vsub.s32 %v2482, %v2484
    %v2486 = vrot.slane %v2472, %v2485
    %2487 = vrot.lane.b32.xlu0 %v2486, 64
    %v2488 = vpop.permute.xlu0 %2487
    %s2490 = scalar_lea.vmem [#allocation5], 10
    %2491 = vst.msk [vmem:[%s2490] sm:$0x3] %vm477, %v2488
    %v2494 = vunpack.c.l.s4 1983009808
    %v2495 = vunpack.c.0.s8 %v2494
    %v2496 = vlaneseq
    %v2497 = vshrl.u32 %v2496, 7
    %v2498 = vsub.s32 %v2495, %v2497
    %v2499 = vrot.slane %v2478, %v2498
    %2500 = vrot.lane.b32.xlu0 %v2499, 64
    %v2501 = vpop.permute.xlu0 %2500
    %s2503 = scalar_lea.vmem [#allocation6], 4
    %2504 = vst.msk [vmem:[%s2503] sm:$0x3] %vm477, %v2501
    %2505 = vrot.lane.b32.xlu0 %v2499, 96
    %v2506 = vpop.permute.xlu0 %2505
    %v2508 = vsel %vm217, %v2488, %v2506
    %v2509 = vpack.c.bf16 %v2508, %v2508
    %v2511 = vsel %vm368, %v2509, 0
    %2513 = vmatprep.subr.bf16.mxu0 %v1737
    %2514 = vmatpush1.bf16.msra.mxu0 %v1736
    %2515 = vmatprep.subr.bf16.mxu0 %v1739
    %2516 = vmatpush1.bf16.msra.mxu0 %v1738
    %2517 = vmatprep.subr.bf16.mxu0 %v1741
    %2518 = vmatpush1.bf16.msra.mxu0 %v1740
    %2519 = vmatprep.subr.bf16.mxu0 %v1743
    %2520 = vmatpush1.bf16.msra.mxu0 %v1742
    %2521 = vmatprep.subr.bf16.mxu0 0
    %2522 = vmatpush1.bf16.msra.mxu0 0
    %2523 = vmatprep.subr.bf16.mxu0 0
    %2524 = vmatpush1.bf16.msra.mxu0 0
    %2525 = vmatprep.subr.bf16.mxu0 0
    %2526 = vmatpush1.bf16.msra.mxu0 0
    %2527 = vmatprep.subr.bf16.mxu0 0
    %2528 = vmatpush1.bf16.msra.mxu0 0
    %2529 = vmatprep.subr.bf16.mxu0 0
    %2530 = vmatpush1.bf16.msra.mxu0 0
    %2531 = vmatprep.subr.bf16.mxu0 0
    %2532 = vmatpush1.bf16.msra.mxu0 0
    %2533 = vmatprep.subr.bf16.mxu0 0
    %2534 = vmatpush1.bf16.msra.mxu0 0
    %2535 = vmatprep.subr.bf16.mxu0 0
    %2536 = vmatpush1.bf16.msra.mxu0 0
    %2537 = vmatprep.subr.bf16.mxu0 0
    %2538 = vmatpush1.bf16.msra.mxu0 0
    %2539 = vmatprep.subr.bf16.mxu0 0
    %2540 = vmatpush1.bf16.msra.mxu0 0
    %2541 = vmatprep.subr.bf16.mxu0 0
    %2542 = vmatpush1.bf16.msra.mxu0 0
    %2543 = vmatprep.subr.bf16.mxu0 0
    %2544 = vmatpush1.bf16.msra.mxu0 0
    %2545 = vmatprep.mubr.bf16.mxu0 0
    %2546 = vmatmul.mubr.bf16.gmra.mrb[0].mxu0 %v2511
    %v2547 = vpop.f32.mrb[0].mxu0
    %v2548 = vadd.f32 0.0, %v2547
    %v2549 = vpop.f32.mrb[0].mxu0
    %v2550 = vadd.f32 0.0, %v2549
    %v2551 = vpop.f32.mrb[0].mxu0
    %v2552 = vpop.f32.mrb[0].mxu0
    %2553 = vdwg.mxu0
    %v2554 = vld [vmem:[%s544] sm:$0x3]
    %v2555 = vadd.f32 %v2554, %v2548
    %v2556 = vld [vmem:[%s541 + $0x2] sm:$0x3]
    %v2557 = vadd.f32 %v2556, %v2550
    %v2558 = vxor.u32 %v2555, 2147483648
    %v2559 = vmul.f32 %v2558, 1.442695
    %v2560 = vpow.pop %v2559
    %v2561 = vadd.f32 %v2560, 1.0
    %v2562 = vrcp.pop %v2561
    %v2563 = vmul.f32 1.0, %v2562
    %v2564 = vxor.u32 %v2557, 2147483648
    %v2565 = vmul.f32 %v2564, 1.442695
    %v2566 = vpow.pop %v2565
    %v2567 = vadd.f32 %v2566, 1.0
    %v2568 = vrcp.pop %v2567
    %v2569 = vmul.f32 1.0, %v2568
    %v2570 = vmul.f32 %v2563, %v2454
    %v2571 = vtanh.pop %v2555
    %2573 = vrot.lane.b32.xlu0 %v2571, 32
    %v2574 = vpop.permute.xlu0 %2573
    %v2576 = vmul.f32 %v2563, %v2574
    %2578 = vrot.lane.b32.xlu0 %v2576, 32
    %v2579 = vpop.permute.xlu0 %2578
    %v2581 = vadd.f32 %v2570, %v2579
    %v2582 = vmul.f32 %v2569, %v2466
    %v2583 = vtanh.pop %v2557
    %2585 = vrot.lane.b32.xlu0 %v2583, 32
    %v2586 = vpop.permute.xlu0 %2585
    %v2588 = vmul.f32 %v2569, %v2586
    %2590 = vrot.lane.b32.xlu0 %v2588, 32
    %v2591 = vpop.permute.xlu0 %2590
    %v2593 = vadd.f32 %v2582, %v2591
    %v2594 = vtanh.pop %v2581
    %2596 = vrot.lane.b32.xlu0 %v2594, 32
    %v2597 = vpop.permute.xlu0 %2596
    %v2599 = vmul.f32 %v2563, %v2597
    %v2600 = vtanh.pop %v2593
    %2602 = vrot.lane.b32.xlu0 %v2600, 32
    %v2603 = vpop.permute.xlu0 %2602
    %v2605 = vmul.f32 %v2569, %v2603
    %v2608 = vunpack.c.l.s4 1983009808
    %v2609 = vunpack.c.0.s8 %v2608
    %v2610 = vlaneseq
    %v2611 = vshrl.u32 %v2610, 7
    %v2612 = vsub.s32 %v2609, %v2611
    %v2613 = vrot.slane %v2599, %v2612
    %2614 = vrot.lane.b32.xlu0 %v2613, 64
    %v2615 = vpop.permute.xlu0 %2614
    %s2617 = scalar_lea.vmem [#allocation5], 12
    %2618 = vst.msk [vmem:[%s2617] sm:$0x3] %vm477, %v2615
    %v2621 = vunpack.c.l.s4 1983009808
    %v2622 = vunpack.c.0.s8 %v2621
    %v2623 = vlaneseq
    %v2624 = vshrl.u32 %v2623, 7
    %v2625 = vsub.s32 %v2622, %v2624
    %v2626 = vrot.slane %v2605, %v2625
    %2627 = vrot.lane.b32.xlu0 %v2626, 64
    %v2628 = vpop.permute.xlu0 %2627
    %s2630 = scalar_lea.vmem [#allocation6], 2
    %2631 = vst.msk [vmem:[%s2630] sm:$0x3] %vm477, %v2628
    %2632 = vrot.lane.b32.xlu0 %v2626, 96
    %v2633 = vpop.permute.xlu0 %2632
    %v2635 = vsel %vm217, %v2615, %v2633
    %v2636 = vpack.c.bf16 %v2635, %v2635
    %v2638 = vsel %vm368, %v2636, 0
    %2640 = vmatprep.subr.bf16.mxu0 %v1737
    %2641 = vmatpush1.bf16.msra.mxu0 %v1736
    %2642 = vmatprep.subr.bf16.mxu0 %v1739
    %2643 = vmatpush1.bf16.msra.mxu0 %v1738
    %2644 = vmatprep.subr.bf16.mxu0 %v1741
    %2645 = vmatpush1.bf16.msra.mxu0 %v1740
    %2646 = vmatprep.subr.bf16.mxu0 %v1743
    %2647 = vmatpush1.bf16.msra.mxu0 %v1742
    %2648 = vmatprep.subr.bf16.mxu0 0
    %2649 = vmatpush1.bf16.msra.mxu0 0
    %2650 = vmatprep.subr.bf16.mxu0 0
    %2651 = vmatpush1.bf16.msra.mxu0 0
    %2652 = vmatprep.subr.bf16.mxu0 0
    %2653 = vmatpush1.bf16.msra.mxu0 0
    %2654 = vmatprep.subr.bf16.mxu0 0
    %2655 = vmatpush1.bf16.msra.mxu0 0
    %2656 = vmatprep.subr.bf16.mxu0 0
    %2657 = vmatpush1.bf16.msra.mxu0 0
    %2658 = vmatprep.subr.bf16.mxu0 0
    %2659 = vmatpush1.bf16.msra.mxu0 0
    %2660 = vmatprep.subr.bf16.mxu0 0
    %2661 = vmatpush1.bf16.msra.mxu0 0
    %2662 = vmatprep.subr.bf16.mxu0 0
    %2663 = vmatpush1.bf16.msra.mxu0 0
    %2664 = vmatprep.subr.bf16.mxu0 0
    %2665 = vmatpush1.bf16.msra.mxu0 0
    %2666 = vmatprep.subr.bf16.mxu0 0
    %2667 = vmatpush1.bf16.msra.mxu0 0
    %2668 = vmatprep.subr.bf16.mxu0 0
    %2669 = vmatpush1.bf16.msra.mxu0 0
    %2670 = vmatprep.subr.bf16.mxu0 0
    %2671 = vmatpush1.bf16.msra.mxu0 0
    %2672 = vmatprep.mubr.bf16.mxu0 0
    %2673 = vmatmul.mubr.bf16.gmra.mrb[0].mxu0 %v2638
    %v2674 = vpop.f32.mrb[0].mxu0
    %v2675 = vadd.f32 0.0, %v2674
    %v2676 = vpop.f32.mrb[0].mxu0
    %v2677 = vadd.f32 0.0, %v2676
    %v2678 = vpop.f32.mrb[0].mxu0
    %v2679 = vpop.f32.mrb[0].mxu0
    %2680 = vdwg.mxu0
    %v2681 = vld [vmem:[%s415] sm:$0x3]
    %v2682 = vadd.f32 %v2681, %v2675
    %v2683 = vld [vmem:[#allocation2 + $0x2] sm:$0x3]
    %v2684 = vadd.f32 %v2683, %v2677
    %v2685 = vxor.u32 %v2682, 2147483648
    %v2686 = vmul.f32 %v2685, 1.442695
    %v2687 = vpow.pop %v2686
    %v2688 = vadd.f32 %v2687, 1.0
    %v2689 = vrcp.pop %v2688
    %v2690 = vmul.f32 1.0, %v2689
    %v2691 = vxor.u32 %v2684, 2147483648
    %v2692 = vmul.f32 %v2691, 1.442695
    %v2693 = vpow.pop %v2692
    %v2694 = vadd.f32 %v2693, 1.0
    %v2695 = vrcp.pop %v2694
    %v2696 = vmul.f32 1.0, %v2695
    %v2697 = vmul.f32 %v2690, %v2581
    %v2698 = vtanh.pop %v2682
    %2700 = vrot.lane.b32.xlu0 %v2698, 32
    %v2701 = vpop.permute.xlu0 %2700
    %v2703 = vmul.f32 %v2690, %v2701
    %2705 = vrot.lane.b32.xlu0 %v2703, 32
    %v2706 = vpop.permute.xlu0 %2705
    %v2708 = vadd.f32 %v2697, %v2706
    %v2709 = vmul.f32 %v2696, %v2593
    %v2710 = vtanh.pop %v2684
    %2712 = vrot.lane.b32.xlu0 %v2710, 32
    %v2713 = vpop.permute.xlu0 %2712
    %v2715 = vmul.f32 %v2696, %v2713
    %2717 = vrot.lane.b32.xlu0 %v2715, 32
    %v2718 = vpop.permute.xlu0 %2717
    %v2720 = vadd.f32 %v2709, %v2718
    %v2721 = vtanh.pop %v2708
    %2723 = vrot.lane.b32.xlu0 %v2721, 32
    %v2724 = vpop.permute.xlu0 %2723
    %v2726 = vmul.f32 %v2690, %v2724
    %v2727 = vtanh.pop %v2720
    %2729 = vrot.lane.b32.xlu0 %v2727, 32
    %v2730 = vpop.permute.xlu0 %2729
    %v2732 = vmul.f32 %v2696, %v2730
    %v2735 = vunpack.c.l.s4 1983009808
    %v2736 = vunpack.c.0.s8 %v2735
    %v2737 = vlaneseq
    %v2738 = vshrl.u32 %v2737, 7
    %v2739 = vsub.s32 %v2736, %v2738
    %v2740 = vrot.slane %v2726, %v2739
    %2741 = vrot.lane.b32.xlu0 %v2740, 64
    %v2742 = vpop.permute.xlu0 %2741
    %s2744 = scalar_lea.vmem [#allocation5], 14
    %2745 = vst.msk [vmem:[%s2744] sm:$0x3] %vm477, %v2742
    %v2748 = vunpack.c.l.s4 1983009808
    %v2749 = vunpack.c.0.s8 %v2748
    %v2750 = vlaneseq
    %v2751 = vshrl.u32 %v2750, 7
    %v2752 = vsub.s32 %v2749, %v2751
    %v2753 = vrot.slane %v2732, %v2752
    %2754 = vrot.lane.b32.xlu0 %v2753, 64
    %v2755 = vpop.permute.xlu0 %2754
    %2757 = vst.msk [vmem:[#allocation6] sm:$0x3] %vm477, %v2755
    %v2758 = vld [vmem:[#allocation16] sm:$0xf]
    %v2759 = vld [vmem:[#allocation16 + $0x4] sm:$0xf]
    %v2760 = vld [vmem:[#allocation16 + $0x8] sm:$0xf]
    %v2761 = vld [vmem:[#allocation16 + $0xc] sm:$0xf]
    %v2762 = vld [vmem:[#allocation16 + $0x10] sm:$0xf]
    %v2763 = vld [vmem:[#allocation16 + $0x14] sm:$0xf]
    %v2764 = vld [vmem:[#allocation16 + $0x18] sm:$0xf]
    %v2765 = vld [vmem:[#allocation16 + $0x1c] sm:$0xf]
    %v2766 = vld [vmem:[#allocation5] sm:$0x3]
    %v2767 = vld [vmem:[#allocation5 + $0x2] sm:$0x3]
    %v2768 = vld [vmem:[#allocation5 + $0x4] sm:$0x3]
    %v2769 = vld [vmem:[#allocation5 + $0x6] sm:$0x3]
    %v2770 = vld [vmem:[#allocation5 + $0x8] sm:$0x3]
    %v2771 = vld [vmem:[#allocation5 + $0xa] sm:$0x3]
    %v2772 = vld [vmem:[#allocation5 + $0xc] sm:$0x3]
    %v2773 = vld [vmem:[#allocation5 + $0xe] sm:$0x3]
    %v2782 = vcombine.low %v2766, %v2767
    %v2783 = vcombine.low %v2768, %v2769
    %v2785 = vunpack.c.l.s4 1983009808
    %v2786 = vunpack.c.0.s8 %v2785
    %v2787 = vlaneseq
    %v2788 = vshrl.u32 %v2787, 7
    %v2789 = vsub.s32 %v2786, %v2788
    %v2790 = vrot.slane %v2782, %v2789
    %v2792 = vunpack.c.l.s4 1983009808
    %v2793 = vunpack.c.0.s8 %v2792
    %v2794 = vlaneseq
    %v2795 = vshrl.u32 %v2794, 7
    %v2796 = vsub.s32 %v2793, %v2795
    %v2797 = vrot.slane %v2783, %v2796
    %v2798 = vcombine.low %v2790, %v2797
    %v2799 = vcombine.low %v2770, %v2771
    %v2800 = vcombine.low %v2772, %v2773
    %v2802 = vunpack.c.l.s4 1983009808
    %v2803 = vunpack.c.0.s8 %v2802
    %v2804 = vlaneseq
    %v2805 = vshrl.u32 %v2804, 7
    %v2806 = vsub.s32 %v2803, %v2805
    %v2807 = vrot.slane %v2799, %v2806
    %v2809 = vunpack.c.l.s4 1983009808
    %v2810 = vunpack.c.0.s8 %v2809
    %v2811 = vlaneseq
    %v2812 = vshrl.u32 %v2811, 7
    %v2813 = vsub.s32 %v2810, %v2812
    %v2814 = vrot.slane %v2800, %v2813
    %v2815 = vcombine.low %v2807, %v2814
    %v2818 = vpack.c.bf16 %v2815, %v2798
    %v2819 = vld [vmem:[#allocation6] sm:$0x3]
    %v2820 = vld [vmem:[#allocation6 + $0x2] sm:$0x3]
    %v2821 = vld [vmem:[#allocation6 + $0x4] sm:$0x3]
    %v2822 = vld [vmem:[#allocation6 + $0x6] sm:$0x3]
    %v2823 = vld [vmem:[#allocation6 + $0x8] sm:$0x3]
    %v2824 = vld [vmem:[#allocation6 + $0xa] sm:$0x3]
    %v2825 = vld [vmem:[#allocation6 + $0xc] sm:$0x3]
    %v2826 = vld [vmem:[#allocation6 + $0xe] sm:$0x3]
    %v2835 = vcombine.low %v2819, %v2820
    %v2836 = vcombine.low %v2821, %v2822
    %v2838 = vunpack.c.l.s4 1983009808
    %v2839 = vunpack.c.0.s8 %v2838
    %v2840 = vlaneseq
    %v2841 = vshrl.u32 %v2840, 7
    %v2842 = vsub.s32 %v2839, %v2841
    %v2843 = vrot.slane %v2835, %v2842
    %v2845 = vunpack.c.l.s4 1983009808
    %v2846 = vunpack.c.0.s8 %v2845
    %v2847 = vlaneseq
    %v2848 = vshrl.u32 %v2847, 7
    %v2849 = vsub.s32 %v2846, %v2848
    %v2850 = vrot.slane %v2836, %v2849
    %v2851 = vcombine.low %v2843, %v2850
    %v2852 = vcombine.low %v2823, %v2824
    %v2853 = vcombine.low %v2825, %v2826
    %v2855 = vunpack.c.l.s4 1983009808
    %v2856 = vunpack.c.0.s8 %v2855
    %v2857 = vlaneseq
    %v2858 = vshrl.u32 %v2857, 7
    %v2859 = vsub.s32 %v2856, %v2858
    %v2860 = vrot.slane %v2852, %v2859
    %v2862 = vunpack.c.l.s4 1983009808
    %v2863 = vunpack.c.0.s8 %v2862
    %v2864 = vlaneseq
    %v2865 = vshrl.u32 %v2864, 7
    %v2866 = vsub.s32 %v2863, %v2865
    %v2867 = vrot.slane %v2853, %v2866
    %v2868 = vcombine.low %v2860, %v2867
    %v2871 = vpack.c.bf16 %v2868, %v2851
    %v2876 = vunpack.c.l.b16 %v2762
    %v2877 = vunpack.c.l.b16 %v2763
    %v2878 = vunpack.c.l.b16 %v2764
    %v2879 = vunpack.c.l.b16 %v2765
    %v2880 = vpack.c.b16 %v2877, %v2876
    %v2881 = vpack.c.b16 %v2879, %v2878
    %v2885 = vsel %vm217, %v2871, 0
    %2887 = vmatprep.subr.bf16.mxu0 0
    %2888 = vmatpush1.bf16.msra.mxu0 %v2880
    %2889 = vmatprep.subr.bf16.mxu0 0
    %2890 = vmatpush1.bf16.msra.mxu0 %v2881
    %2891 = vmatprep.subr.bf16.mxu0 0
    %2892 = vmatpush1.bf16.msra.mxu0 0
    %2893 = vmatprep.subr.bf16.mxu0 0
    %2894 = vmatpush1.bf16.msra.mxu0 0
    %2895 = vmatprep.subr.bf16.mxu0 0
    %2896 = vmatpush1.bf16.msra.mxu0 0
    %2897 = vmatprep.subr.bf16.mxu0 0
    %2898 = vmatpush1.bf16.msra.mxu0 0
    %2899 = vmatprep.subr.bf16.mxu0 0
    %2900 = vmatpush1.bf16.msra.mxu0 0
    %2901 = vmatprep.subr.bf16.mxu0 0
    %2902 = vmatpush1.bf16.msra.mxu0 0
    %2903 = vmatprep.subr.bf16.mxu0 0
    %2904 = vmatpush1.bf16.msra.mxu0 0
    %2905 = vmatprep.subr.bf16.mxu0 0
    %2906 = vmatpush1.bf16.msra.mxu0 0
    %2907 = vmatprep.subr.bf16.mxu0 0
    %2908 = vmatpush1.bf16.msra.mxu0 0
    %2909 = vmatprep.subr.bf16.mxu0 0
    %2910 = vmatpush1.bf16.msra.mxu0 0
    %2911 = vmatprep.subr.bf16.mxu0 0
    %2912 = vmatpush1.bf16.msra.mxu0 0
    %2913 = vmatprep.subr.bf16.mxu0 0
    %2914 = vmatpush1.bf16.msra.mxu0 0
    %2915 = vmatprep.subr.bf16.mxu0 0
    %2916 = vmatpush1.bf16.msra.mxu0 0
    %2917 = vmatprep.subr.bf16.mxu0 0
    %2918 = vmatpush1.bf16.msra.mxu0 0
    %2919 = vmatprep.mubr.bf16.mxu0 0
    %2920 = vmatmul.mubr.bf16.gmra.mrb[0].mxu0 %v2885
    %v2921 = vpop.f32.mrb[0].mxu0
    %v2922 = vadd.f32 0.0, %v2921
    %v2923 = vpop.f32.mrb[0].mxu0
    %v2924 = vpop.f32.mrb[0].mxu0
    %v2925 = vadd.f32 0.0, %v2924
    %v2926 = vpop.f32.mrb[0].mxu0
    %2927 = vdwg.mxu0
    %v2932 = vunpack.c.l.b16 %v2758
    %v2933 = vunpack.c.l.b16 %v2759
    %v2934 = vunpack.c.l.b16 %v2760
    %v2935 = vunpack.c.l.b16 %v2761
    %v2936 = vpack.c.b16 %v2933, %v2932
    %v2937 = vpack.c.b16 %v2935, %v2934
    %v2941 = vsel %vm217, %v2818, 0
    %2943 = vmatprep.subr.bf16.mxu0 0
    %2944 = vmatpush1.bf16.msra.mxu0 %v2936
    %2945 = vmatprep.subr.bf16.mxu0 0
    %2946 = vmatpush1.bf16.msra.mxu0 %v2937
    %2947 = vmatprep.subr.bf16.mxu0 0
    %2948 = vmatpush1.bf16.msra.mxu0 0
    %2949 = vmatprep.subr.bf16.mxu0 0
    %2950 = vmatpush1.bf16.msra.mxu0 0
    %2951 = vmatprep.subr.bf16.mxu0 0
    %2952 = vmatpush1.bf16.msra.mxu0 0
    %2953 = vmatprep.subr.bf16.mxu0 0
    %2954 = vmatpush1.bf16.msra.mxu0 0
    %2955 = vmatprep.subr.bf16.mxu0 0
    %2956 = vmatpush1.bf16.msra.mxu0 0
    %2957 = vmatprep.subr.bf16.mxu0 0
    %2958 = vmatpush1.bf16.msra.mxu0 0
    %2959 = vmatprep.subr.bf16.mxu0 0
    %2960 = vmatpush1.bf16.msra.mxu0 0
    %2961 = vmatprep.subr.bf16.mxu0 0
    %2962 = vmatpush1.bf16.msra.mxu0 0
    %2963 = vmatprep.subr.bf16.mxu0 0
    %2964 = vmatpush1.bf16.msra.mxu0 0
    %2965 = vmatprep.subr.bf16.mxu0 0
    %2966 = vmatpush1.bf16.msra.mxu0 0
    %2967 = vmatprep.subr.bf16.mxu0 0
    %2968 = vmatpush1.bf16.msra.mxu0 0
    %2969 = vmatprep.subr.bf16.mxu0 0
    %2970 = vmatpush1.bf16.msra.mxu0 0
    %2971 = vmatprep.subr.bf16.mxu0 0
    %2972 = vmatpush1.bf16.msra.mxu0 0
    %2973 = vmatprep.subr.bf16.mxu0 0
    %2974 = vmatpush1.bf16.msra.mxu0 0
    %2975 = vmatprep.mubr.bf16.mxu0 0
    %2976 = vmatmul.mubr.bf16.gmra.mrb[0].mxu0 %v2941
    %v2977 = vpop.f32.mrb[0].mxu0
    %v2978 = vadd.f32 %v2922, %v2977
    %v2979 = vpop.f32.mrb[0].mxu0
    %v2980 = vpop.f32.mrb[0].mxu0
    %v2981 = vadd.f32 %v2925, %v2980
    %v2982 = vpop.f32.mrb[0].mxu0
    %2983 = vdwg.mxu0
    %v2984 = vld [vmem:[%s8] sm:$0x1]
    %v2986 = vlaneseq
    %v2987 = vshrl.u32 %v2986, 7
    %v2988 = vsub.s32 0, %v2987
    %v2989 = vrot.slane %v2984, %v2988
    %v2991 = vadd.f32 %v2978, %v2989
    %v2992 = vadd.f32 %v2981, %v2989
    %v2995 = vcombine.high %v2991, %v2991
    %v2997 = vunpack.c.l.s4 1983009808
    %v2998 = vunpack.c.0.s8 %v2997
    %v2999 = vlaneseq
    %v3000 = vshrl.u32 %v2999, 7
    %v3001 = vsub.s32 %v2998, %v3000
    %v3002 = vrot.slane %v2991, %v3001
    %v3004 = vunpack.c.l.s4 1983009808
    %v3005 = vunpack.c.0.s8 %v3004
    %v3006 = vlaneseq
    %v3007 = vshrl.u32 %v3006, 7
    %v3008 = vsub.s32 %v3005, %v3007
    %v3009 = vrot.slane %v2995, %v3008
    %v3010 = vcombine.high %v3002, %v3002
    %v3011 = vcombine.high %v3009, %v3009
    %v3012 = vcombine.high %v2992, %v2992
    %v3014 = vunpack.c.l.s4 1983009808
    %v3015 = vunpack.c.0.s8 %v3014
    %v3016 = vlaneseq
    %v3017 = vshrl.u32 %v3016, 7
    %v3018 = vsub.s32 %v3015, %v3017
    %v3019 = vrot.slane %v2992, %v3018
    %v3021 = vunpack.c.l.s4 1983009808
    %v3022 = vunpack.c.0.s8 %v3021
    %v3023 = vlaneseq
    %v3024 = vshrl.u32 %v3023, 7
    %v3025 = vsub.s32 %v3022, %v3024
    %v3026 = vrot.slane %v3012, %v3025
    %v3027 = vcombine.high %v3019, %v3019
    %v3028 = vcombine.high %v3026, %v3026
    %3037 = vst [vmem:[#allocation18] sm:$0x3] %v3002
    %3038 = vst [vmem:[#allocation18 + $0x2] sm:$0x3] %v3010
    %3039 = vst [vmem:[#allocation18 + $0x4] sm:$0x3] %v3009
    %3040 = vst [vmem:[#allocation18 + $0x6] sm:$0x3] %v3011
    %3041 = vst [vmem:[#allocation18 + $0x8] sm:$0x3] %v3019
    %3042 = vst [vmem:[#allocation18 + $0xa] sm:$0x3] %v3027
    %3043 = vst [vmem:[#allocation18 + $0xc] sm:$0x3] %v3026
    %3044 = vst [vmem:[#allocation18 + $0xe] sm:$0x3] %v3028
    // Predicated region
    $region62: #{tpu_custom_call.1} parent=1 // pred_check
      _
    $region63: #{tpu_custom_call.1} parent=1 // pred_check_branch
      %3046 = sbr.rel (0) target = $region65
    $region64: #{tpu_custom_call.1} parent=1 // pred_region
      %s3048 = ssub.s32 256, 256
      %3049 = vsyncadd [#allocation9], %s3048
      %s3050 = sshll.u32 [#allocation18], 4
      %s3051 = int_to_ptr.vmem [resolvable:$true] %s3050
      %3056 = dma.vmem_to_hbm [thread:$0]  %s3051, 256, %s9, [#allocation9], 32, 32, 2
    $region65: #{tpu_custom_call.1} parent=1 // pred_fallthru
      _
    // Predicated region
    $region66: #{tpu_custom_call.1} parent=1 // pred_check
      _
    $region67: #{tpu_custom_call.1} parent=1 // pred_check_branch
      %3058 = sbr.rel (0) target = $region69
    $region68: #{tpu_custom_call.1} parent=1 // pred_region
      %3059 = dma.done [#allocation9], 256
    $region69: #{tpu_custom_call.1} parent=1 // pred_fallthru
      _
    %3060 = vsyncpa [#allocation8], 1
    %3061 = vsyncpa [#allocation11], 1
    %3062 = vsyncpa [#allocation14], 1
    %3063 = vsyncpa [#allocation17], 1
    %3064 = vsyncpa [#allocation9], 1

</llo_original>
